<compile_context>
chip_gen: v6e
topology: v6e:2x2x1
jax: 0.10.0
libtpu: 0.0.40
codegen_flags: <defaults>
</compile_context>

<pallas_src>
import jax
import jax.numpy as jnp
from jax.experimental import pallas as pl
from jax.experimental.pallas import tpu as pltpu

_BN_EPS = 1e-5

# hyper-parameters fixed by the module definition
_KH = _KW = 7
_STRIDE = 2
_POOL = 2
_N_CLASSES = 10
_C_OUT = 32

# lane / contraction padding for MXU-friendly, lane-dense layouts
_C_PAD = 128          # conv output channels 32 -> 128 (unmasked stores / full MXU tile)
_K_PAD = 64           # im2col contraction 49 -> 64
_CLS_PAD = 128        # fc classes 10 -> 128 (lane-dense FC output)


def _round_up(v, m):
    return (v + m - 1) // m * m


# --------------------------------- fused kernel --------------------------------

def _make_kernel(n_img_pad, n_pos, tap_rows, main_rows, inv_count):
    """Whole ToyNet forward in one kernel.

    Inputs (all VMEM-resident, single block):
      p_ref   (R, K_PAD)            bf16  im2col patches; rows = 4 pool-tap blocks of
                                          tap_rows (= n_pos * n_img_pad) rows each,
                                          then a stats-only block for odd conv row/col.
      w_ref   (K_PAD, C_PAD)        bf16  conv weight (zero padded, NO bias)
      g_ref   (1, C_PAD)            f32   BN gamma (zero padded)
      b_ref   (1, C_PAD)            f32   BN beta  (zero padded)
      wfc_ref (n_pos*C_PAD, CLS_PAD) bf16 fc weight, (pos, channel) x class, zero padded
      bfc_ref (1, CLS_PAD)          f32   fc bias (zero padded)
    Output:
      o_ref   (n_img_pad, CLS_PAD)  f32   logits (rows >= n and lanes >= 10 are padding)
    """

    def kernel(p_ref, w_ref, g_ref, b_ref, wfc_ref, bfc_ref, o_ref):
        # ---- conv as one lane-dense MXU matmul (bf16 in, f32 accumulate).  The conv
        # bias is omitted: training-mode BN cancels it exactly, and with it gone every
        # layout-padding row is an exact zero, so no stats mask is needed. ----
        y = jnp.dot(p_ref[...], w_ref[...], preferred_element_type=jnp.float32)

        # ---- training-mode BatchNorm statistics in a single fused pass (f32):
        #      var = E[y^2] - mean^2; padded rows contribute exact zeros and the
        #      divisor is the real-element count. ----
        s1 = jnp.sum(y, axis=0, keepdims=True)
        s2 = jnp.sum(y * y, axis=0, keepdims=True)
        mean = s1 * inv_count
        var = s2 * inv_count - mean * mean
        scale = jax.lax.rsqrt(var + _BN_EPS) * g_ref[...]
        shift = b_ref[...] - mean * scale

        # ---- normalize + Mish only on the pooled region; stats-only rows are dropped
        #      here instead of being run through exp / approx-reciprocal. ----
        z = y[:main_rows] * scale + shift

        # Mish: x * tanh(softplus(x)) = x * u / (u + 2), u = e^x (e^x + 2)
        # (PyTorch softplus threshold 20 -> linear passthrough above 20.)
        t = jnp.exp(jnp.minimum(z, 20.0))
        u = t * (t + 2.0)
        z = jnp.where(z > 20.0, z, z * u * pl.reciprocal(u + 2.0, approx=True))

        # ---- MaxPool2d(2): the four pool taps are contiguous 8-aligned row blocks ----
        pooled = jnp.maximum(
            jnp.maximum(z[0 * tap_rows:1 * tap_rows], z[1 * tap_rows:2 * tap_rows]),
            jnp.maximum(z[2 * tap_rows:3 * tap_rows], z[3 * tap_rows:4 * tap_rows]))

        # ---- flatten + Linear as ONE lane-dense matmul: gather the per-position
        #      (n_img_pad, C_PAD) blocks along the lane axis (static 8-aligned slices,
        #      no VMEM scratch round trip), then a single
        #      (n_img_pad, n_pos*C_PAD) @ (n_pos*C_PAD, CLS_PAD) bf16 MXU matmul whose
        #      output tile is fully lane-dense (classes padded to 128). ----
        lhs = jnp.concatenate(
            [pooled[p * n_img_pad:(p + 1) * n_img_pad, :] for p in range(n_pos)],
            axis=1)
        logits = jnp.dot(lhs.astype(jnp.bfloat16), wfc_ref[...],
                         preferred_element_type=jnp.float32)
        o_ref[...] = logits + bfc_ref[...]

    return kernel


# ------------------------------- host-side wrapper ------------------------------

def toynet_forward(params, x):
    n, c_in, h, w_in = x.shape
    assert c_in == 1, "ToyNet takes single-channel input"
    oh = (h - _KH) // _STRIDE + 1
    ow = (w_in - _KW) // _STRIDE + 1
    ph, pw = oh // _POOL, ow // _POOL
    n_pos = ph * pw
    k_raw = c_in * _KH * _KW
    n_img_pad = _round_up(n, 8)
    tap_rows = n_pos * n_img_pad
    main_rows = 4 * tap_rows

    # ---------------- lean host-side im2col prologue (bf16, single regroup) -------------
    # TODO(synk): at large batch, move this regrouping into the kernel (grid over tap
    # blocks with scalar-prefetch row offsets over a natural-order im2col) to cut the
    # host-side HBM traffic further.
    x2 = x[:, 0, :, :].astype(jnp.bfloat16)
    taps = [x2[:, i:i + _STRIDE * (oh - 1) + 1:_STRIDE,
               j:j + _STRIDE * (ow - 1) + 1:_STRIDE]
            for i in range(_KH) for j in range(_KW)]
    p_full = jnp.stack(taps, axis=-1)                       # (n, oh, ow, k_raw) bf16

    # main rows: 4 pool-tap blocks, each (pos-major, image padded to 8) — one
    # reshape/transpose/pad instead of four padded copies + concatenate.
    p_pool = p_full[:, :_POOL * ph, :_POOL * pw, :]
    p_pool = p_pool.reshape(n, ph, _POOL, pw, _POOL, k_raw)
    p_pool = p_pool.transpose(2, 4, 1, 3, 0, 5)             # (dy, dx, ph, pw, n, k)
    p_pool = jnp.pad(p_pool, ((0, 0),) * 4 + ((0, n_img_pad - n), (0, 0)))
    rows = p_pool.reshape(main_rows, k_raw)

    # conv positions not covered by the 2x2 pool (odd last row/col) still feed the
    # BatchNorm batch statistics -> appended as a stats-only block.
    left_parts = []
    if oh > _POOL * ph:
        left_parts.append(p_full[:, _POOL * ph:, :, :].reshape(-1, k_raw))
    if ow > _POOL * pw:
        left_parts.append(p_full[:, :_POOL * ph, _POOL * pw:, :].reshape(-1, k_raw))
    if left_parts:
        left = jnp.concatenate(left_parts, axis=0)
        left_rows = _round_up(left.shape[0], 8)
        left = jnp.pad(left, ((0, left_rows - left.shape[0]), (0, 0)))
        rows = jnp.concatenate([rows, left], axis=0)

    patches = jnp.pad(rows, ((0, 0), (0, _K_PAD - k_raw)))   # already bf16

    # ---------------- parameters in the lane-dense kernel layout ----------------
    c_out = params["conv_w"].shape[0]
    w_mat = params["conv_w"].reshape(c_out, k_raw).T
    w_mat = jnp.pad(w_mat, ((0, _K_PAD - k_raw), (0, _C_PAD - c_out))).astype(jnp.bfloat16)
    g = jnp.pad(params["gamma"], (0, _C_PAD - c_out)).reshape(1, _C_PAD).astype(jnp.float32)
    b = jnp.pad(params["beta"], (0, _C_PAD - c_out)).reshape(1, _C_PAD).astype(jnp.float32)
    # conv bias intentionally NOT passed: training-mode BN cancels it exactly.

    # fc weight (n_classes, c*ph*pw) reordered to (spatial pos, channel) x class and
    # zero padded to (n_pos*C_PAD, CLS_PAD) for the single lane-dense FC matmul.
    wfc = params["fc_w"].reshape(_N_CLASSES, c_out, ph, pw).transpose(2, 3, 1, 0)
    wfc = wfc.reshape(n_pos, c_out, _N_CLASSES)
    wfc = jnp.pad(wfc, ((0, 0), (0, _C_PAD - c_out), (0, _CLS_PAD - _N_CLASSES)))
    wfc = wfc.reshape(n_pos * _C_PAD, _CLS_PAD).astype(jnp.bfloat16)
    bfc = jnp.pad(params["fc_b"],
                  (0, _CLS_PAD - _N_CLASSES)).reshape(1, _CLS_PAD).astype(jnp.float32)

    kernel = _make_kernel(n_img_pad, n_pos, tap_rows, main_rows,
                          1.0 / float(n * oh * ow))
    vmem = lambda: pl.BlockSpec(memory_space=pltpu.MemorySpace.VMEM)
    # TODO(synk): at realistic batch, add a grid over the row axis ("parallel" so v7x
    # megacore shards it) with BN split into a stats pass + normalize pass, and re-derive
    # the row tile for v7x's 64 MiB VMEM; at this size one VMEM-resident block is optimal.
    out = pl.pallas_call(
        kernel,
        out_shape=jax.ShapeDtypeStruct((n_img_pad, _CLS_PAD), jnp.float32),
        in_specs=[vmem() for _ in range(6)],
        out_specs=vmem(),
        compiler_params=pltpu.CompilerParams(vmem_limit_bytes=32 * 1024 * 1024),
    )(patches, w_mat, g, b, wfc, bfc)
    return out[:n, :_N_CLASSES]


# ------------------------- pure-JAX reference (for checking) --------------------------

def toynet_reference(params, x):
    """ToyNet.forward in plain JAX (training-mode BN).  Conv runs in bf16 with f32
    accumulation, mirroring the kernel's MXU precision choice; BN/Mish/pool/FC in f32."""
    y = jax.lax.conv_general_dilated(
        x.astype(jnp.bfloat16), params["conv_w"].astype(jnp.bfloat16),
        window_strides=(_STRIDE, _STRIDE), padding="VALID",
        dimension_numbers=("NCHW", "OIHW", "NCHW"),
        preferred_element_type=jnp.float32)
    y = y + params["conv_b"].reshape(1, -1, 1, 1)
    mean = jnp.mean(y, axis=(0, 2, 3), keepdims=True)
    var = jnp.mean(jnp.square(y - mean), axis=(0, 2, 3), keepdims=True)
    y = ((y - mean) * jax.lax.rsqrt(var + _BN_EPS)
         * params["gamma"].reshape(1, -1, 1, 1) + params["beta"].reshape(1, -1, 1, 1))
    sp = jnp.where(y > 20.0, y, jnp.log1p(jnp.exp(jnp.minimum(y, 20.0))))
    y = y * jnp.tanh(sp)
    n, c, hc, wc = y.shape
    ph, pw = hc // _POOL, wc // _POOL
    y = y[:, :, :ph * _POOL, :pw * _POOL].reshape(n, c, ph, _POOL, pw, _POOL)
    y = y.max(axis=(3, 5))
    flat = y.reshape(n, -1)
    return flat @ params["fc_w"].T + params["fc_b"]


# --------------------------------------- main -----------------------------------------

def init_params(key):
    ks = jax.random.split(key, 6)
    fan_in = 1 * _KH * _KW
    feat = _C_OUT * 5 * 5          # 800, as hard-coded by ToyNet's Linear(800, 10)
    return {
        "conv_w": (jax.random.normal(ks[0], (_C_OUT, 1, _KH, _KW), jnp.float32)
                   * jnp.sqrt(2.0 / fan_in)),
        "conv_b": 0.05 * jax.random.normal(ks[1], (_C_OUT,), jnp.float32),
        "gamma": 1.0 + 0.1 * jax.random.normal(ks[2], (_C_OUT,), jnp.float32),
        "beta": 0.1 * jax.random.normal(ks[3], (_C_OUT,), jnp.float32),
        "fc_w": 0.05 * jax.random.normal(ks[4], (_N_CLASSES, feat), jnp.float32),
        "fc_b": 0.01 * jax.random.normal(ks[5], (_N_CLASSES,), jnp.float32),
    }


if __name__ == "__main__":
    key = jax.random.PRNGKey(0)
    pkey, xkey = jax.random.split(key)
    params = init_params(pkey)
    # ToyNet's fc expects 800 = 32*5*5 features -> 28x28 single-channel input (MNIST-sized)
    x = jax.random.normal(xkey, (2, 1, 28, 28), jnp.float32)

    logits = jax.jit(toynet_forward)(params, x)
    logits = jax.block_until_ready(logits)

    assert logits.shape == (2, _N_CLASSES), logits.shape
    assert bool(jnp.all(jnp.isfinite(logits)))

    ref = toynet_reference(params, x)
    err = float(jnp.max(jnp.abs(logits - ref)))
    assert err < 0.15, f"max |pallas - reference| = {err}"
    print("KERNEL_OK")
</pallas_src>

<mosaic_0001>
module attributes {stable_mosaic.version = 11 : i64} {
  func.func @kernel(%arg0: memref<848x64xbf16, #tpu.memory_space<vmem>>, %arg1: memref<64x128xbf16, #tpu.memory_space<vmem>>, %arg2: memref<1x128xf32, #tpu.memory_space<vmem>>, %arg3: memref<1x128xf32, #tpu.memory_space<vmem>>, %arg4: memref<3200x128xbf16, #tpu.memory_space<vmem>>, %arg5: memref<1x128xf32, #tpu.memory_space<vmem>>, %arg6: memref<8x128xf32, #tpu.memory_space<vmem>>) attributes {dimension_semantics = [], scalar_prefetch = 0 : i64, scratch_operands = 0 : i64, tpu.core_type = #tpu.core_type<tc>} {
    %c0 = arith.constant 0 : index
    %c0_0 = arith.constant 0 : index
    %0 = vector.load %arg0[%c0, %c0_0] : memref<848x64xbf16, #tpu.memory_space<vmem>>, vector<848x64xbf16>
    %c0_1 = arith.constant 0 : index
    %c0_2 = arith.constant 0 : index
    %1 = vector.load %arg1[%c0_1, %c0_2] : memref<64x128xbf16, #tpu.memory_space<vmem>>, vector<64x128xbf16>
    %cst = arith.constant dense<0.000000e+00> : vector<848x128xf32>
    %2 = tpu.matmul %0, %1, %cst {dimension_numbers = #tpu.dot_dimension_numbers<[1], [0], [0], [1], [0, 0, 1, 1], [], []>} : vector<848x64xbf16>, vector<64x128xbf16>, vector<848x128xf32> -> vector<848x128xf32>
    %cst_3 = arith.constant dense<0.000000e+00> : vector<128xf32>
    %3 = vector.multi_reduction <add>, %2, %cst_3 [0] : vector<848x128xf32> to vector<128xf32>
    %4 = vector.shape_cast %3 : vector<128xf32> to vector<1x128xf32>
    %5 = arith.mulf %2, %2 : vector<848x128xf32>
    %cst_4 = arith.constant dense<0.000000e+00> : vector<128xf32>
    %6 = vector.multi_reduction <add>, %5, %cst_4 [0] : vector<848x128xf32> to vector<128xf32>
    %7 = vector.shape_cast %6 : vector<128xf32> to vector<1x128xf32>
    %cst_5 = arith.constant 0.00413223123 : f32
    %8 = vector.broadcast %cst_5 : f32 to vector<1x128xf32>
    %9 = arith.mulf %4, %8 : vector<1x128xf32>
    %cst_6 = arith.constant 0.00413223123 : f32
    %10 = vector.broadcast %cst_6 : f32 to vector<1x128xf32>
    %11 = arith.mulf %7, %10 : vector<1x128xf32>
    %12 = arith.mulf %9, %9 : vector<1x128xf32>
    %13 = arith.subf %11, %12 : vector<1x128xf32>
    %cst_7 = arith.constant 9.99999974E-6 : f32
    %14 = vector.broadcast %cst_7 : f32 to vector<1x128xf32>
    %15 = arith.addf %13, %14 : vector<1x128xf32>
    %16 = math.rsqrt %15 : vector<1x128xf32>
    %c0_8 = arith.constant 0 : index
    %c0_9 = arith.constant 0 : index
    %17 = vector.load %arg2[%c0_8, %c0_9] : memref<1x128xf32, #tpu.memory_space<vmem>>, vector<1x128xf32>
    %18 = arith.mulf %16, %17 : vector<1x128xf32>
    %c0_10 = arith.constant 0 : index
    %c0_11 = arith.constant 0 : index
    %19 = vector.load %arg3[%c0_10, %c0_11] : memref<1x128xf32, #tpu.memory_space<vmem>>, vector<1x128xf32>
    %20 = arith.mulf %9, %18 : vector<1x128xf32>
    %21 = arith.subf %19, %20 : vector<1x128xf32>
    %22 = vector.extract_strided_slice %2 {offsets = [0, 0], sizes = [800, 128], strides = [1, 1]} : vector<848x128xf32> to vector<800x128xf32>
    %23 = vector.broadcast %18 : vector<1x128xf32> to vector<800x128xf32>
    %24 = arith.mulf %22, %23 : vector<800x128xf32>
    %25 = vector.broadcast %21 : vector<1x128xf32> to vector<800x128xf32>
    %26 = arith.addf %24, %25 : vector<800x128xf32>
    %cst_12 = arith.constant 2.000000e+01 : f32
    %27 = vector.broadcast %cst_12 : f32 to vector<800x128xf32>
    %28 = arith.minimumf %26, %27 : vector<800x128xf32>
    %29 = math.exp %28 : vector<800x128xf32>
    %cst_13 = arith.constant 2.000000e+00 : f32
    %30 = vector.broadcast %cst_13 : f32 to vector<800x128xf32>
    %31 = arith.addf %29, %30 : vector<800x128xf32>
    %32 = arith.mulf %29, %31 : vector<800x128xf32>
    %cst_14 = arith.constant 2.000000e+01 : f32
    %33 = vector.broadcast %cst_14 : f32 to vector<800x128xf32>
    %34 = arith.cmpf ogt, %26, %33 : vector<800x128xf32>
    %35 = arith.mulf %26, %32 : vector<800x128xf32>
    %cst_15 = arith.constant 2.000000e+00 : f32
    %36 = vector.broadcast %cst_15 : f32 to vector<800x128xf32>
    %37 = arith.addf %32, %36 : vector<800x128xf32>
    %38 = tpu.reciprocal %37 {approx = true} : vector<800x128xf32> -> vector<800x128xf32>
    %39 = arith.mulf %35, %38 : vector<800x128xf32>
    %40 = arith.select %34, %26, %39 : vector<800x128xi1>, vector<800x128xf32>
    %41 = vector.extract_strided_slice %40 {offsets = [0, 0], sizes = [200, 128], strides = [1, 1]} : vector<800x128xf32> to vector<200x128xf32>
    %42 = vector.extract_strided_slice %40 {offsets = [200, 0], sizes = [200, 128], strides = [1, 1]} : vector<800x128xf32> to vector<200x128xf32>
    %43 = arith.maximumf %41, %42 : vector<200x128xf32>
    %44 = vector.extract_strided_slice %40 {offsets = [400, 0], sizes = [200, 128], strides = [1, 1]} : vector<800x128xf32> to vector<200x128xf32>
    %45 = vector.extract_strided_slice %40 {offsets = [600, 0], sizes = [200, 128], strides = [1, 1]} : vector<800x128xf32> to vector<200x128xf32>
    %46 = arith.maximumf %44, %45 : vector<200x128xf32>
    %47 = arith.maximumf %43, %46 : vector<200x128xf32>
    %48 = vector.extract_strided_slice %47 {offsets = [0, 0], sizes = [8, 128], strides = [1, 1]} : vector<200x128xf32> to vector<8x128xf32>
    %49 = vector.extract_strided_slice %47 {offsets = [8, 0], sizes = [8, 128], strides = [1, 1]} : vector<200x128xf32> to vector<8x128xf32>
    %50 = vector.extract_strided_slice %47 {offsets = [16, 0], sizes = [8, 128], strides = [1, 1]} : vector<200x128xf32> to vector<8x128xf32>
    %51 = vector.extract_strided_slice %47 {offsets = [24, 0], sizes = [8, 128], strides = [1, 1]} : vector<200x128xf32> to vector<8x128xf32>
    %52 = vector.extract_strided_slice %47 {offsets = [32, 0], sizes = [8, 128], strides = [1, 1]} : vector<200x128xf32> to vector<8x128xf32>
    %53 = vector.extract_strided_slice %47 {offsets = [40, 0], sizes = [8, 128], strides = [1, 1]} : vector<200x128xf32> to vector<8x128xf32>
    %54 = vector.extract_strided_slice %47 {offsets = [48, 0], sizes = [8, 128], strides = [1, 1]} : vector<200x128xf32> to vector<8x128xf32>
    %55 = vector.extract_strided_slice %47 {offsets = [56, 0], sizes = [8, 128], strides = [1, 1]} : vector<200x128xf32> to vector<8x128xf32>
    %56 = vector.extract_strided_slice %47 {offsets = [64, 0], sizes = [8, 128], strides = [1, 1]} : vector<200x128xf32> to vector<8x128xf32>
    %57 = vector.extract_strided_slice %47 {offsets = [72, 0], sizes = [8, 128], strides = [1, 1]} : vector<200x128xf32> to vector<8x128xf32>
    %58 = vector.extract_strided_slice %47 {offsets = [80, 0], sizes = [8, 128], strides = [1, 1]} : vector<200x128xf32> to vector<8x128xf32>
    %59 = vector.extract_strided_slice %47 {offsets = [88, 0], sizes = [8, 128], strides = [1, 1]} : vector<200x128xf32> to vector<8x128xf32>
    %60 = vector.extract_strided_slice %47 {offsets = [96, 0], sizes = [8, 128], strides = [1, 1]} : vector<200x128xf32> to vector<8x128xf32>
    %61 = vector.extract_strided_slice %47 {offsets = [104, 0], sizes = [8, 128], strides = [1, 1]} : vector<200x128xf32> to vector<8x128xf32>
    %62 = vector.extract_strided_slice %47 {offsets = [112, 0], sizes = [8, 128], strides = [1, 1]} : vector<200x128xf32> to vector<8x128xf32>
    %63 = vector.extract_strided_slice %47 {offsets = [120, 0], sizes = [8, 128], strides = [1, 1]} : vector<200x128xf32> to vector<8x128xf32>
    %64 = vector.extract_strided_slice %47 {offsets = [128, 0], sizes = [8, 128], strides = [1, 1]} : vector<200x128xf32> to vector<8x128xf32>
    %65 = vector.extract_strided_slice %47 {offsets = [136, 0], sizes = [8, 128], strides = [1, 1]} : vector<200x128xf32> to vector<8x128xf32>
    %66 = vector.extract_strided_slice %47 {offsets = [144, 0], sizes = [8, 128], strides = [1, 1]} : vector<200x128xf32> to vector<8x128xf32>
    %67 = vector.extract_strided_slice %47 {offsets = [152, 0], sizes = [8, 128], strides = [1, 1]} : vector<200x128xf32> to vector<8x128xf32>
    %68 = vector.extract_strided_slice %47 {offsets = [160, 0], sizes = [8, 128], strides = [1, 1]} : vector<200x128xf32> to vector<8x128xf32>
    %69 = vector.extract_strided_slice %47 {offsets = [168, 0], sizes = [8, 128], strides = [1, 1]} : vector<200x128xf32> to vector<8x128xf32>
    %70 = vector.extract_strided_slice %47 {offsets = [176, 0], sizes = [8, 128], strides = [1, 1]} : vector<200x128xf32> to vector<8x128xf32>
    %71 = vector.extract_strided_slice %47 {offsets = [184, 0], sizes = [8, 128], strides = [1, 1]} : vector<200x128xf32> to vector<8x128xf32>
    %72 = vector.extract_strided_slice %47 {offsets = [192, 0], sizes = [8, 128], strides = [1, 1]} : vector<200x128xf32> to vector<8x128xf32>
    %73 = tpu.concatenate %48, %49, %50, %51, %52, %53, %54, %55, %56, %57, %58, %59, %60, %61, %62, %63 in 1 : vector<8x128xf32>, vector<8x128xf32>, vector<8x128xf32>, vector<8x128xf32>, vector<8x128xf32>, vector<8x128xf32>, vector<8x128xf32>, vector<8x128xf32>, vector<8x128xf32>, vector<8x128xf32>, vector<8x128xf32>, vector<8x128xf32>, vector<8x128xf32>, vector<8x128xf32>, vector<8x128xf32>, vector<8x128xf32> -> vector<8x2048xf32>
    %74 = tpu.concatenate %64, %65, %66, %67, %68, %69, %70, %71, %72 in 1 : vector<8x128xf32>, vector<8x128xf32>, vector<8x128xf32>, vector<8x128xf32>, vector<8x128xf32>, vector<8x128xf32>, vector<8x128xf32>, vector<8x128xf32>, vector<8x128xf32> -> vector<8x1152xf32>
    %75 = tpu.concatenate %73, %74 in 1 : vector<8x2048xf32>, vector<8x1152xf32> -> vector<8x3200xf32>
    %76 = arith.truncf %75 : vector<8x3200xf32> to vector<8x3200xbf16>
    %c0_16 = arith.constant 0 : index
    %c0_17 = arith.constant 0 : index
    %77 = vector.load %arg4[%c0_16, %c0_17] : memref<3200x128xbf16, #tpu.memory_space<vmem>>, vector<3200x128xbf16>
    %cst_18 = arith.constant dense<0.000000e+00> : vector<8x128xf32>
    %78 = tpu.matmul %76, %77, %cst_18 {dimension_numbers = #tpu.dot_dimension_numbers<[1], [0], [0], [1], [0, 0, 1, 1], [], []>} : vector<8x3200xbf16>, vector<3200x128xbf16>, vector<8x128xf32> -> vector<8x128xf32>
    %c0_19 = arith.constant 0 : index
    %c0_20 = arith.constant 0 : index
    %79 = vector.load %arg5[%c0_19, %c0_20] : memref<1x128xf32, #tpu.memory_space<vmem>>, vector<1x128xf32>
    %80 = vector.broadcast %79 : vector<1x128xf32> to vector<8x128xf32>
    %81 = arith.addf %78, %80 : vector<8x128xf32>
    %c0_21 = arith.constant 0 : index
    %c0_22 = arith.constant 0 : index
    %82 = vector.load %arg6[%c0_21, %c0_22] : memref<8x128xf32, #tpu.memory_space<vmem>>, vector<8x128xf32>
    tpu.vector_store %arg6[%c0_21, %c0_22], %81 {strides = array<i32>} : memref<8x128xf32, #tpu.memory_space<vmem>>, vector<8x128xf32>,
    return
  }
}

</mosaic_0001>

<llo_original>
// kernel: toynet_forward.1
$region0: #{toynet_forward.1}
  #allocation0 [shape = 'u32[]', space=smem, size = 0x4, offset = 0x4, fixed_abs, tag = 'smem constant byte address 0x4 - core index']
  #allocation1 [shape = 'u32[144,128]{1,0:T(1,128)}', space=vmem, size = 0x12000, scoped, tag = 'internal scratch']
  %s0 = inlined_call_operand.vmem [shape: bf16[848,64], index: 0, kind: input, shape index: {}]
  %s1 = inlined_call_operand.vmem [shape: bf16[64,128], index: 1, kind: input, shape index: {}]
  %s2 = inlined_call_operand.vmem [shape: f32[1,128], index: 2, kind: input, shape index: {}]
  %s3 = inlined_call_operand.vmem [shape: f32[1,128], index: 3, kind: input, shape index: {}]
  %s4 = inlined_call_operand.vmem [shape: bf16[3200,128], index: 4, kind: input, shape index: {}]
  %s5 = inlined_call_operand.vmem [shape: f32[1,128], index: 5, kind: input, shape index: {}]
  %s6 = inlined_call_operand.vmem [shape: f32[8,128], index: 6, kind: output, shape index: {}]
  %s7 = sld [smem:[#allocation0]]
  $region34: #{toynet_forward.1} parent=0
    _
  %s9 = ssub.s32 1, %s7
  %s10 = scalar_select 0, %s9, %s7
  // Predicated region
  $region2: #{toynet_forward.1} parent=0 // pred_check
    _
  $region3: #{toynet_forward.1} parent=0 // pred_check_branch
    %12 = sbr.rel (0) target = $region5
  $region4: #{toynet_forward.1} parent=0 // pred_region
    _
  $region5: #{toynet_forward.1} parent=0 // pred_fallthru
    _
  // Predicated region
  $region6: #{toynet_forward.1} parent=0 // pred_check
    _
  $region7: #{toynet_forward.1} parent=0 // pred_check_branch
    %14 = sbr.rel (0) target = $region9
  $region8: #{toynet_forward.1} parent=0 // pred_region
    _
  $region9: #{toynet_forward.1} parent=0 // pred_fallthru
    _
  // Predicated region
  $region10: #{toynet_forward.1} parent=0 // pred_check
    _
  $region11: #{toynet_forward.1} parent=0 // pred_check_branch
    %16 = sbr.rel (0) target = $region13
  $region12: #{toynet_forward.1} parent=0 // pred_region
    _
  $region13: #{toynet_forward.1} parent=0 // pred_fallthru
    _
  // Predicated region
  $region14: #{toynet_forward.1} parent=0 // pred_check
    _
  $region15: #{toynet_forward.1} parent=0 // pred_check_branch
    %18 = sbr.rel (0) target = $region17
  $region16: #{toynet_forward.1} parent=0 // pred_region
    _
  $region17: #{toynet_forward.1} parent=0 // pred_fallthru
    _
  // Predicated region
  $region18: #{toynet_forward.1} parent=0 // pred_check
    _
  $region19: #{toynet_forward.1} parent=0 // pred_check_branch
    %20 = sbr.rel (0) target = $region21
  $region20: #{toynet_forward.1} parent=0 // pred_region
    _
  $region21: #{toynet_forward.1} parent=0 // pred_fallthru
    _
  // Predicated region
  $region22: #{toynet_forward.1} parent=0 // pred_check
    _
  $region23: #{toynet_forward.1} parent=0 // pred_check_branch
    %22 = sbr.rel (0) target = $region25
  $region24: #{toynet_forward.1} parent=0 // pred_region
    _
  $region25: #{toynet_forward.1} parent=0 // pred_fallthru
    _
  %v24 = vld [vmem:[%s0] sm:$0xf]
  %v25 = vld [vmem:[%s0 + $0x4] sm:$0xf]
  %v26 = vld [vmem:[%s0 + $0x8] sm:$0xf]
  %v27 = vld [vmem:[%s0 + $0xc] sm:$0xf]
  %v28 = vld [vmem:[%s0 + $0x10] sm:$0xf]
  %v29 = vld [vmem:[%s0 + $0x14] sm:$0xf]
  %v30 = vld [vmem:[%s0 + $0x18] sm:$0xf]
  %v31 = vld [vmem:[%s0 + $0x1c] sm:$0xf]
  %v32 = vld [vmem:[%s0 + $0x20] sm:$0xf]
  %v33 = vld [vmem:[%s0 + $0x24] sm:$0xf]
  %v34 = vld [vmem:[%s0 + $0x28] sm:$0xf]
  %v35 = vld [vmem:[%s0 + $0x2c] sm:$0xf]
  %v36 = vld [vmem:[%s0 + $0x30] sm:$0xf]
  %v37 = vld [vmem:[%s0 + $0x34] sm:$0xf]
  %v38 = vld [vmem:[%s0 + $0x38] sm:$0xf]
  %v39 = vld [vmem:[%s0 + $0x3c] sm:$0xf]
  %v40 = vld [vmem:[%s0 + $0x40] sm:$0xf]
  %v41 = vld [vmem:[%s0 + $0x44] sm:$0xf]
  %v42 = vld [vmem:[%s0 + $0x48] sm:$0xf]
  %v43 = vld [vmem:[%s0 + $0x4c] sm:$0xf]
  %v44 = vld [vmem:[%s0 + $0x50] sm:$0xf]
  %v45 = vld [vmem:[%s0 + $0x54] sm:$0xf]
  %v46 = vld [vmem:[%s0 + $0x58] sm:$0xf]
  %v47 = vld [vmem:[%s0 + $0x5c] sm:$0xf]
  %v48 = vld [vmem:[%s0 + $0x60] sm:$0xf]
  %v49 = vld [vmem:[%s0 + $0x64] sm:$0xf]
  %v50 = vld [vmem:[%s0 + $0x68] sm:$0xf]
  %v51 = vld [vmem:[%s0 + $0x6c] sm:$0xf]
  %v52 = vld [vmem:[%s0 + $0x70] sm:$0xf]
  %v53 = vld [vmem:[%s0 + $0x74] sm:$0xf]
  %v54 = vld [vmem:[%s0 + $0x78] sm:$0xf]
  %v55 = vld [vmem:[%s0 + $0x7c] sm:$0xf]
  %v56 = vld [vmem:[%s0 + $0x80] sm:$0xf]
  %v57 = vld [vmem:[%s0 + $0x84] sm:$0xf]
  %v58 = vld [vmem:[%s0 + $0x88] sm:$0xf]
  %v59 = vld [vmem:[%s0 + $0x8c] sm:$0xf]
  %v60 = vld [vmem:[%s0 + $0x90] sm:$0xf]
  %v61 = vld [vmem:[%s0 + $0x94] sm:$0xf]
  %v62 = vld [vmem:[%s0 + $0x98] sm:$0xf]
  %v63 = vld [vmem:[%s0 + $0x9c] sm:$0xf]
  %v64 = vld [vmem:[%s0 + $0xa0] sm:$0xf]
  %v65 = vld [vmem:[%s0 + $0xa4] sm:$0xf]
  %v66 = vld [vmem:[%s0 + $0xa8] sm:$0xf]
  %v67 = vld [vmem:[%s0 + $0xac] sm:$0xf]
  %v68 = vld [vmem:[%s0 + $0xb0] sm:$0xf]
  %v69 = vld [vmem:[%s0 + $0xb4] sm:$0xf]
  %v70 = vld [vmem:[%s0 + $0xb8] sm:$0xf]
  %v71 = vld [vmem:[%s0 + $0xbc] sm:$0xf]
  %v72 = vld [vmem:[%s0 + $0xc0] sm:$0xf]
  %v73 = vld [vmem:[%s0 + $0xc4] sm:$0xf]
  %v74 = vld [vmem:[%s0 + $0xc8] sm:$0xf]
  %v75 = vld [vmem:[%s0 + $0xcc] sm:$0xf]
  %v76 = vld [vmem:[%s0 + $0xd0] sm:$0xf]
  %v77 = vld [vmem:[%s0 + $0xd4] sm:$0xf]
  %v78 = vld [vmem:[%s0 + $0xd8] sm:$0xf]
  %v79 = vld [vmem:[%s0 + $0xdc] sm:$0xf]
  %v80 = vld [vmem:[%s0 + $0xe0] sm:$0xf]
  %v81 = vld [vmem:[%s0 + $0xe4] sm:$0xf]
  %v82 = vld [vmem:[%s0 + $0xe8] sm:$0xf]
  %v83 = vld [vmem:[%s0 + $0xec] sm:$0xf]
  %v84 = vld [vmem:[%s0 + $0xf0] sm:$0xf]
  %v85 = vld [vmem:[%s0 + $0xf4] sm:$0xf]
  %v86 = vld [vmem:[%s0 + $0xf8] sm:$0xf]
  %v87 = vld [vmem:[%s0 + $0xfc] sm:$0xf]
  %v88 = vld [vmem:[%s0 + $0x100] sm:$0xf]
  %v89 = vld [vmem:[%s0 + $0x104] sm:$0xf]
  %v90 = vld [vmem:[%s0 + $0x108] sm:$0xf]
  %v91 = vld [vmem:[%s0 + $0x10c] sm:$0xf]
  %v92 = vld [vmem:[%s0 + $0x110] sm:$0xf]
  %v93 = vld [vmem:[%s0 + $0x114] sm:$0xf]
  %v94 = vld [vmem:[%s0 + $0x118] sm:$0xf]
  %v95 = vld [vmem:[%s0 + $0x11c] sm:$0xf]
  %v96 = vld [vmem:[%s0 + $0x120] sm:$0xf]
  %v97 = vld [vmem:[%s0 + $0x124] sm:$0xf]
  %v98 = vld [vmem:[%s0 + $0x128] sm:$0xf]
  %v99 = vld [vmem:[%s0 + $0x12c] sm:$0xf]
  %v100 = vld [vmem:[%s0 + $0x130] sm:$0xf]
  %v101 = vld [vmem:[%s0 + $0x134] sm:$0xf]
  %v102 = vld [vmem:[%s0 + $0x138] sm:$0xf]
  %v103 = vld [vmem:[%s0 + $0x13c] sm:$0xf]
  %v104 = vld [vmem:[%s0 + $0x140] sm:$0xf]
  %v105 = vld [vmem:[%s0 + $0x144] sm:$0xf]
  %v106 = vld [vmem:[%s0 + $0x148] sm:$0xf]
  %v107 = vld [vmem:[%s0 + $0x14c] sm:$0xf]
  %v108 = vld [vmem:[%s0 + $0x150] sm:$0xf]
  %v109 = vld [vmem:[%s0 + $0x154] sm:$0xf]
  %v110 = vld [vmem:[%s0 + $0x158] sm:$0xf]
  %v111 = vld [vmem:[%s0 + $0x15c] sm:$0xf]
  %v112 = vld [vmem:[%s0 + $0x160] sm:$0xf]
  %v113 = vld [vmem:[%s0 + $0x164] sm:$0xf]
  %v114 = vld [vmem:[%s0 + $0x168] sm:$0xf]
  %v115 = vld [vmem:[%s0 + $0x16c] sm:$0xf]
  %v116 = vld [vmem:[%s0 + $0x170] sm:$0xf]
  %v117 = vld [vmem:[%s0 + $0x174] sm:$0xf]
  %v118 = vld [vmem:[%s0 + $0x178] sm:$0xf]
  %v119 = vld [vmem:[%s0 + $0x17c] sm:$0xf]
  %v120 = vld [vmem:[%s0 + $0x180] sm:$0xf]
  %v121 = vld [vmem:[%s0 + $0x184] sm:$0xf]
  %v122 = vld [vmem:[%s0 + $0x188] sm:$0xf]
  %v123 = vld [vmem:[%s0 + $0x18c] sm:$0xf]
  %v124 = vld [vmem:[%s0 + $0x190] sm:$0xf]
  %v125 = vld [vmem:[%s0 + $0x194] sm:$0xf]
  %v126 = vld [vmem:[%s0 + $0x198] sm:$0xf]
  %v127 = vld [vmem:[%s0 + $0x19c] sm:$0xf]
  %v128 = vld [vmem:[%s0 + $0x1a0] sm:$0xf]
  %v129 = vld [vmem:[%s0 + $0x1a4] sm:$0xf]
  %v130 = vld [vmem:[%s1] sm:$0xf]
  %v131 = vld [vmem:[%s1 + $0x4] sm:$0xf]
  %v132 = vld [vmem:[%s1 + $0x8] sm:$0xf]
  %v133 = vld [vmem:[%s1 + $0xc] sm:$0xf]
  %v134 = vld [vmem:[%s1 + $0x10] sm:$0xf]
  %v135 = vld [vmem:[%s1 + $0x14] sm:$0xf]
  %v136 = vld [vmem:[%s1 + $0x18] sm:$0xf]
  %v137 = vld [vmem:[%s1 + $0x1c] sm:$0xf]
  %v244 = vunpack.c.l.b16 %v24
  %v245 = vunpack.c.l.b16 %v25
  %v246 = vunpack.c.l.b16 %v26
  %v247 = vunpack.c.l.b16 %v27
  %v248 = vunpack.c.l.b16 %v28
  %v249 = vunpack.c.l.b16 %v29
  %v250 = vunpack.c.l.b16 %v30
  %v251 = vunpack.c.l.b16 %v31
  %v252 = vunpack.c.l.b16 %v32
  %v253 = vunpack.c.l.b16 %v33
  %v254 = vunpack.c.l.b16 %v34
  %v255 = vunpack.c.l.b16 %v35
  %v256 = vunpack.c.l.b16 %v36
  %v257 = vunpack.c.l.b16 %v37
  %v258 = vunpack.c.l.b16 %v38
  %v259 = vunpack.c.l.b16 %v39
  %v260 = vunpack.c.l.b16 %v40
  %v261 = vunpack.c.l.b16 %v41
  %v262 = vunpack.c.l.b16 %v42
  %v263 = vunpack.c.l.b16 %v43
  %v264 = vunpack.c.l.b16 %v44
  %v265 = vunpack.c.l.b16 %v45
  %v266 = vunpack.c.l.b16 %v46
  %v267 = vunpack.c.l.b16 %v47
  %v268 = vunpack.c.l.b16 %v48
  %v269 = vunpack.c.l.b16 %v49
  %v270 = vunpack.c.l.b16 %v50
  %v271 = vunpack.c.l.b16 %v51
  %v272 = vunpack.c.l.b16 %v52
  %v273 = vunpack.c.l.b16 %v53
  %v274 = vunpack.c.l.b16 %v54
  %v275 = vunpack.c.l.b16 %v55
  %v276 = vunpack.c.l.b16 %v56
  %v277 = vunpack.c.l.b16 %v57
  %v278 = vunpack.c.l.b16 %v58
  %v279 = vunpack.c.l.b16 %v59
  %v280 = vunpack.c.l.b16 %v60
  %v281 = vunpack.c.l.b16 %v61
  %v282 = vunpack.c.l.b16 %v62
  %v283 = vunpack.c.l.b16 %v63
  %v284 = vunpack.c.l.b16 %v64
  %v285 = vunpack.c.l.b16 %v65
  %v286 = vunpack.c.l.b16 %v66
  %v287 = vunpack.c.l.b16 %v67
  %v288 = vunpack.c.l.b16 %v68
  %v289 = vunpack.c.l.b16 %v69
  %v290 = vunpack.c.l.b16 %v70
  %v291 = vunpack.c.l.b16 %v71
  %v292 = vunpack.c.l.b16 %v72
  %v293 = vunpack.c.l.b16 %v73
  %v294 = vunpack.c.l.b16 %v74
  %v295 = vunpack.c.l.b16 %v75
  %v296 = vunpack.c.l.b16 %v76
  %v297 = vunpack.c.l.b16 %v77
  %v298 = vunpack.c.l.b16 %v78
  %v299 = vunpack.c.l.b16 %v79
  %v300 = vunpack.c.l.b16 %v80
  %v301 = vunpack.c.l.b16 %v81
  %v302 = vunpack.c.l.b16 %v82
  %v303 = vunpack.c.l.b16 %v83
  %v304 = vunpack.c.l.b16 %v84
  %v305 = vunpack.c.l.b16 %v85
  %v306 = vunpack.c.l.b16 %v86
  %v307 = vunpack.c.l.b16 %v87
  %v308 = vunpack.c.l.b16 %v88
  %v309 = vunpack.c.l.b16 %v89
  %v310 = vunpack.c.l.b16 %v90
  %v311 = vunpack.c.l.b16 %v91
  %v312 = vunpack.c.l.b16 %v92
  %v313 = vunpack.c.l.b16 %v93
  %v314 = vunpack.c.l.b16 %v94
  %v315 = vunpack.c.l.b16 %v95
  %v316 = vunpack.c.l.b16 %v96
  %v317 = vunpack.c.l.b16 %v97
  %v318 = vunpack.c.l.b16 %v98
  %v319 = vunpack.c.l.b16 %v99
  %v320 = vunpack.c.l.b16 %v100
  %v321 = vunpack.c.l.b16 %v101
  %v322 = vunpack.c.l.b16 %v102
  %v323 = vunpack.c.l.b16 %v103
  %v324 = vunpack.c.l.b16 %v104
  %v325 = vunpack.c.l.b16 %v105
  %v326 = vunpack.c.l.b16 %v106
  %v327 = vunpack.c.l.b16 %v107
  %v328 = vunpack.c.l.b16 %v108
  %v329 = vunpack.c.l.b16 %v109
  %v330 = vunpack.c.l.b16 %v110
  %v331 = vunpack.c.l.b16 %v111
  %v332 = vunpack.c.l.b16 %v112
  %v333 = vunpack.c.l.b16 %v113
  %v334 = vunpack.c.l.b16 %v114
  %v335 = vunpack.c.l.b16 %v115
  %v336 = vunpack.c.l.b16 %v116
  %v337 = vunpack.c.l.b16 %v117
  %v338 = vunpack.c.l.b16 %v118
  %v339 = vunpack.c.l.b16 %v119
  %v340 = vunpack.c.l.b16 %v120
  %v341 = vunpack.c.l.b16 %v121
  %v342 = vunpack.c.l.b16 %v122
  %v343 = vunpack.c.l.b16 %v123
  %v344 = vunpack.c.l.b16 %v124
  %v345 = vunpack.c.l.b16 %v125
  %v346 = vunpack.c.l.b16 %v126
  %v347 = vunpack.c.l.b16 %v127
  %v348 = vunpack.c.l.b16 %v128
  %v349 = vunpack.c.l.b16 %v129
  %v350 = vpack.c.b16 %v245, %v244
  %v351 = vpack.c.b16 %v247, %v246
  %v352 = vpack.c.b16 %v249, %v248
  %v353 = vpack.c.b16 %v251, %v250
  %v354 = vpack.c.b16 %v253, %v252
  %v355 = vpack.c.b16 %v255, %v254
  %v356 = vpack.c.b16 %v257, %v256
  %v357 = vpack.c.b16 %v259, %v258
  %v358 = vpack.c.b16 %v261, %v260
  %v359 = vpack.c.b16 %v263, %v262
  %v360 = vpack.c.b16 %v265, %v264
  %v361 = vpack.c.b16 %v267, %v266
  %v362 = vpack.c.b16 %v269, %v268
  %v363 = vpack.c.b16 %v271, %v270
  %v364 = vpack.c.b16 %v273, %v272
  %v365 = vpack.c.b16 %v275, %v274
  %v366 = vpack.c.b16 %v277, %v276
  %v367 = vpack.c.b16 %v279, %v278
  %v368 = vpack.c.b16 %v281, %v280
  %v369 = vpack.c.b16 %v283, %v282
  %v370 = vpack.c.b16 %v285, %v284
  %v371 = vpack.c.b16 %v287, %v286
  %v372 = vpack.c.b16 %v289, %v288
  %v373 = vpack.c.b16 %v291, %v290
  %v374 = vpack.c.b16 %v293, %v292
  %v375 = vpack.c.b16 %v295, %v294
  %v376 = vpack.c.b16 %v297, %v296
  %v377 = vpack.c.b16 %v299, %v298
  %v378 = vpack.c.b16 %v301, %v300
  %v379 = vpack.c.b16 %v303, %v302
  %v380 = vpack.c.b16 %v305, %v304
  %v381 = vpack.c.b16 %v307, %v306
  %v382 = vpack.c.b16 %v309, %v308
  %v383 = vpack.c.b16 %v311, %v310
  %v384 = vpack.c.b16 %v313, %v312
  %v385 = vpack.c.b16 %v315, %v314
  %v386 = vpack.c.b16 %v317, %v316
  %v387 = vpack.c.b16 %v319, %v318
  %v388 = vpack.c.b16 %v321, %v320
  %v389 = vpack.c.b16 %v323, %v322
  %v390 = vpack.c.b16 %v325, %v324
  %v391 = vpack.c.b16 %v327, %v326
  %v392 = vpack.c.b16 %v329, %v328
  %v393 = vpack.c.b16 %v331, %v330
  %v394 = vpack.c.b16 %v333, %v332
  %v395 = vpack.c.b16 %v335, %v334
  %v396 = vpack.c.b16 %v337, %v336
  %v397 = vpack.c.b16 %v339, %v338
  %v398 = vpack.c.b16 %v341, %v340
  %v399 = vpack.c.b16 %v343, %v342
  %v400 = vpack.c.b16 %v345, %v344
  %v401 = vpack.c.b16 %v347, %v346
  %v402 = vpack.c.b16 %v349, %v348
  %v411 = vunpack.c.l.b16 %v130
  %v412 = vunpack.c.l.b16 %v131
  %v413 = vunpack.c.l.b16 %v132
  %v414 = vunpack.c.l.b16 %v133
  %v415 = vunpack.c.l.b16 %v134
  %v416 = vunpack.c.l.b16 %v135
  %v417 = vunpack.c.l.b16 %v136
  %v418 = vunpack.c.l.b16 %v137
  %v419 = vpack.c.b16 %v412, %v411
  %v420 = vpack.c.b16 %v414, %v413
  %v421 = vpack.c.b16 %v416, %v415
  %v422 = vpack.c.b16 %v418, %v417
  %vm427 = vcmask 523264
  %v429 = vsel %vm427, %v350, 0
  %v432 = vsel %vm427, %v351, 0
  %v435 = vsel %vm427, %v352, 0
  %v438 = vsel %vm427, %v353, 0
  %v441 = vsel %vm427, %v354, 0
  %v444 = vsel %vm427, %v355, 0
  %v447 = vsel %vm427, %v356, 0
  %v450 = vsel %vm427, %v357, 0
  %v453 = vsel %vm427, %v358, 0
  %v456 = vsel %vm427, %v359, 0
  %v459 = vsel %vm427, %v360, 0
  %v462 = vsel %vm427, %v361, 0
  %v465 = vsel %vm427, %v362, 0
  %v468 = vsel %vm427, %v363, 0
  %v471 = vsel %vm427, %v364, 0
  %v474 = vsel %vm427, %v365, 0
  %v477 = vsel %vm427, %v366, 0
  %v480 = vsel %vm427, %v367, 0
  %v483 = vsel %vm427, %v368, 0
  %v486 = vsel %vm427, %v369, 0
  %v489 = vsel %vm427, %v370, 0
  %v492 = vsel %vm427, %v371, 0
  %v495 = vsel %vm427, %v372, 0
  %v498 = vsel %vm427, %v373, 0
  %v501 = vsel %vm427, %v374, 0
  %v504 = vsel %vm427, %v375, 0
  %v507 = vsel %vm427, %v376, 0
  %v510 = vsel %vm427, %v377, 0
  %v513 = vsel %vm427, %v378, 0
  %v516 = vsel %vm427, %v379, 0
  %v519 = vsel %vm427, %v380, 0
  %v522 = vsel %vm427, %v381, 0
  %v525 = vsel %vm427, %v382, 0
  %v528 = vsel %vm427, %v383, 0
  %v531 = vsel %vm427, %v384, 0
  %v534 = vsel %vm427, %v385, 0
  %v537 = vsel %vm427, %v386, 0
  %v540 = vsel %vm427, %v387, 0
  %v543 = vsel %vm427, %v388, 0
  %v546 = vsel %vm427, %v389, 0
  %v549 = vsel %vm427, %v390, 0
  %v552 = vsel %vm427, %v391, 0
  %v555 = vsel %vm427, %v392, 0
  %v558 = vsel %vm427, %v393, 0
  %v561 = vsel %vm427, %v394, 0
  %v564 = vsel %vm427, %v395, 0
  %v567 = vsel %vm427, %v396, 0
  %v570 = vsel %vm427, %v397, 0
  %v573 = vsel %vm427, %v398, 0
  %v576 = vsel %vm427, %v399, 0
  %v579 = vsel %vm427, %v400, 0
  %v582 = vsel %vm427, %v401, 0
  %v585 = vsel %vm427, %v402, 0
  %587 = vmatprep.subr.bf16.mxu0 0
  %588 = vmatpush1.bf16.msra.mxu0 0
  %589 = vmatprep.subr.bf16.mxu0 0
  %590 = vmatpush1.bf16.msra.mxu0 0
  %591 = vmatprep.subr.bf16.mxu0 0
  %592 = vmatpush1.bf16.msra.mxu0 0
  %593 = vmatprep.subr.bf16.mxu0 0
  %594 = vmatpush1.bf16.msra.mxu0 0
  %595 = vmatprep.subr.bf16.mxu0 0
  %596 = vmatpush1.bf16.msra.mxu0 %v422
  %597 = vmatprep.subr.bf16.mxu0 0
  %598 = vmatpush1.bf16.msra.mxu0 %v421
  %599 = vmatprep.subr.bf16.mxu0 0
  %600 = vmatpush1.bf16.msra.mxu0 %v420
  %601 = vmatprep.subr.bf16.mxu0 0
  %602 = vmatpush1.bf16.msra.mxu0 %v419
  %603 = vmatprep.subr.bf16.mxu0 0
  %604 = vmatpush2.bf16.msra.mxu0 0
  %605 = vmatprep.subr.bf16.mxu0 0
  %606 = vmatpush2.bf16.msra.mxu0 0
  %607 = vmatprep.subr.bf16.mxu0 0
  %608 = vmatpush2.bf16.msra.mxu0 0
  %609 = vmatprep.subr.bf16.mxu0 0
  %610 = vmatpush2.bf16.msra.mxu0 0
  %611 = vmatprep.subr.bf16.mxu0 0
  %612 = vmatpush2.bf16.msra.mxu0 0
  %613 = vmatprep.subr.bf16.mxu0 0
  %614 = vmatpush2.bf16.msra.mxu0 0
  %615 = vmatprep.subr.bf16.mxu0 0
  %616 = vmatpush2.bf16.msra.mxu0 0
  %617 = vmatprep.subr.bf16.mxu0 0
  %618 = vmatpush2.bf16.msra.mxu0 0
  %619 = vmatprep.mubr.bf16.mxu0 0
  %620 = vmatmul.mubr.bf16.gmra.mxu0 %v429
  %v621 = vpop.f32.mrf.mxu0
  %v622 = vadd.f32 0.0, %v621
  %v623 = vpop.f32.mrf.mxu0
  %v624 = vpop.f32.mrf.mxu0
  %v625 = vadd.f32 0.0, %v624
  %v626 = vpop.f32.mrf.mxu0
  %627 = vmatprep.mubr.bf16.mxu0 0
  %628 = vmatmul.mubr.bf16.gmra.mxu0 %v432
  %v629 = vpop.f32.mrf.mxu0
  %v630 = vadd.f32 0.0, %v629
  %v631 = vpop.f32.mrf.mxu0
  %v632 = vpop.f32.mrf.mxu0
  %v633 = vadd.f32 0.0, %v632
  %v634 = vpop.f32.mrf.mxu0
  %635 = vmatprep.mubr.bf16.mxu0 0
  %636 = vmatmul.mubr.bf16.gmra.mxu0 %v435
  %v637 = vpop.f32.mrf.mxu0
  %v638 = vadd.f32 0.0, %v637
  %v639 = vpop.f32.mrf.mxu0
  %v640 = vpop.f32.mrf.mxu0
  %v641 = vadd.f32 0.0, %v640
  %v642 = vpop.f32.mrf.mxu0
  %643 = vmatprep.mubr.bf16.mxu0 0
  %644 = vmatmul.mubr.bf16.gmra.mxu0 %v438
  %v645 = vpop.f32.mrf.mxu0
  %v646 = vadd.f32 0.0, %v645
  %v647 = vpop.f32.mrf.mxu0
  %v648 = vpop.f32.mrf.mxu0
  %v649 = vadd.f32 0.0, %v648
  %v650 = vpop.f32.mrf.mxu0
  %651 = vmatprep.mubr.bf16.mxu0 0
  %652 = vmatmul.mubr.bf16.gmra.mxu0 %v441
  %v653 = vpop.f32.mrf.mxu0
  %v654 = vadd.f32 0.0, %v653
  %v655 = vpop.f32.mrf.mxu0
  %v656 = vpop.f32.mrf.mxu0
  %v657 = vadd.f32 0.0, %v656
  %v658 = vpop.f32.mrf.mxu0
  %659 = vmatprep.mubr.bf16.mxu0 0
  %660 = vmatmul.mubr.bf16.gmra.mxu0 %v444
  %v661 = vpop.f32.mrf.mxu0
  %v662 = vadd.f32 0.0, %v661
  %v663 = vpop.f32.mrf.mxu0
  %v664 = vpop.f32.mrf.mxu0
  %v665 = vadd.f32 0.0, %v664
  %v666 = vpop.f32.mrf.mxu0
  %667 = vmatprep.mubr.bf16.mxu0 0
  %668 = vmatmul.mubr.bf16.gmra.mxu0 %v447
  %v669 = vpop.f32.mrf.mxu0
  %v670 = vadd.f32 0.0, %v669
  %v671 = vpop.f32.mrf.mxu0
  %v672 = vpop.f32.mrf.mxu0
  %v673 = vadd.f32 0.0, %v672
  %v674 = vpop.f32.mrf.mxu0
  %675 = vmatprep.mubr.bf16.mxu0 0
  %676 = vmatmul.mubr.bf16.gmra.mxu0 %v450
  %v677 = vpop.f32.mrf.mxu0
  %v678 = vadd.f32 0.0, %v677
  %v679 = vpop.f32.mrf.mxu0
  %v680 = vpop.f32.mrf.mxu0
  %v681 = vadd.f32 0.0, %v680
  %v682 = vpop.f32.mrf.mxu0
  %683 = vmatprep.mubr.bf16.mxu0 0
  %684 = vmatmul.mubr.bf16.gmra.mxu0 %v453
  %v685 = vpop.f32.mrf.mxu0
  %v686 = vadd.f32 0.0, %v685
  %v687 = vpop.f32.mrf.mxu0
  %v688 = vpop.f32.mrf.mxu0
  %v689 = vadd.f32 0.0, %v688
  %v690 = vpop.f32.mrf.mxu0
  %691 = vmatprep.mubr.bf16.mxu0 0
  %692 = vmatmul.mubr.bf16.gmra.mxu0 %v456
  %v693 = vpop.f32.mrf.mxu0
  %v694 = vadd.f32 0.0, %v693
  %v695 = vpop.f32.mrf.mxu0
  %v696 = vpop.f32.mrf.mxu0
  %v697 = vadd.f32 0.0, %v696
  %v698 = vpop.f32.mrf.mxu0
  %699 = vmatprep.mubr.bf16.mxu0 0
  %700 = vmatmul.mubr.bf16.gmra.mxu0 %v459
  %v701 = vpop.f32.mrf.mxu0
  %v702 = vadd.f32 0.0, %v701
  %v703 = vpop.f32.mrf.mxu0
  %v704 = vpop.f32.mrf.mxu0
  %v705 = vadd.f32 0.0, %v704
  %v706 = vpop.f32.mrf.mxu0
  %707 = vmatprep.mubr.bf16.mxu0 0
  %708 = vmatmul.mubr.bf16.gmra.mxu0 %v462
  %v709 = vpop.f32.mrf.mxu0
  %v710 = vadd.f32 0.0, %v709
  %v711 = vpop.f32.mrf.mxu0
  %v712 = vpop.f32.mrf.mxu0
  %v713 = vadd.f32 0.0, %v712
  %v714 = vpop.f32.mrf.mxu0
  %715 = vmatprep.mubr.bf16.mxu0 0
  %716 = vmatmul.mubr.bf16.gmra.mxu0 %v465
  %v717 = vpop.f32.mrf.mxu0
  %v718 = vadd.f32 0.0, %v717
  %v719 = vpop.f32.mrf.mxu0
  %v720 = vpop.f32.mrf.mxu0
  %v721 = vadd.f32 0.0, %v720
  %v722 = vpop.f32.mrf.mxu0
  %723 = vmatprep.mubr.bf16.mxu0 0
  %724 = vmatmul.mubr.bf16.gmra.mxu0 %v468
  %v725 = vpop.f32.mrf.mxu0
  %v726 = vadd.f32 0.0, %v725
  %v727 = vpop.f32.mrf.mxu0
  %v728 = vpop.f32.mrf.mxu0
  %v729 = vadd.f32 0.0, %v728
  %v730 = vpop.f32.mrf.mxu0
  %731 = vmatprep.mubr.bf16.mxu0 0
  %732 = vmatmul.mubr.bf16.gmra.mxu0 %v471
  %v733 = vpop.f32.mrf.mxu0
  %v734 = vadd.f32 0.0, %v733
  %v735 = vpop.f32.mrf.mxu0
  %v736 = vpop.f32.mrf.mxu0
  %v737 = vadd.f32 0.0, %v736
  %v738 = vpop.f32.mrf.mxu0
  %739 = vmatprep.mubr.bf16.mxu0 0
  %740 = vmatmul.mubr.bf16.gmra.mxu0 %v474
  %v741 = vpop.f32.mrf.mxu0
  %v742 = vadd.f32 0.0, %v741
  %v743 = vpop.f32.mrf.mxu0
  %v744 = vpop.f32.mrf.mxu0
  %v745 = vadd.f32 0.0, %v744
  %v746 = vpop.f32.mrf.mxu0
  %747 = vmatprep.mubr.bf16.mxu0 0
  %748 = vmatmul.mubr.bf16.gmra.mxu0 %v477
  %v749 = vpop.f32.mrf.mxu0
  %v750 = vadd.f32 0.0, %v749
  %v751 = vpop.f32.mrf.mxu0
  %v752 = vpop.f32.mrf.mxu0
  %v753 = vadd.f32 0.0, %v752
  %v754 = vpop.f32.mrf.mxu0
  %755 = vmatprep.mubr.bf16.mxu0 0
  %756 = vmatmul.mubr.bf16.gmra.mxu0 %v480
  %v757 = vpop.f32.mrf.mxu0
  %v758 = vadd.f32 0.0, %v757
  %v759 = vpop.f32.mrf.mxu0
  %v760 = vpop.f32.mrf.mxu0
  %v761 = vadd.f32 0.0, %v760
  %v762 = vpop.f32.mrf.mxu0
  %763 = vmatprep.mubr.bf16.mxu0 0
  %764 = vmatmul.mubr.bf16.gmra.mxu0 %v483
  %v765 = vpop.f32.mrf.mxu0
  %v766 = vadd.f32 0.0, %v765
  %v767 = vpop.f32.mrf.mxu0
  %v768 = vpop.f32.mrf.mxu0
  %v769 = vadd.f32 0.0, %v768
  %v770 = vpop.f32.mrf.mxu0
  %771 = vmatprep.mubr.bf16.mxu0 0
  %772 = vmatmul.mubr.bf16.gmra.mxu0 %v486
  %v773 = vpop.f32.mrf.mxu0
  %v774 = vadd.f32 0.0, %v773
  %v775 = vpop.f32.mrf.mxu0
  %v776 = vpop.f32.mrf.mxu0
  %v777 = vadd.f32 0.0, %v776
  %v778 = vpop.f32.mrf.mxu0
  %779 = vmatprep.mubr.bf16.mxu0 0
  %780 = vmatmul.mubr.bf16.gmra.mxu0 %v489
  %v781 = vpop.f32.mrf.mxu0
  %v782 = vadd.f32 0.0, %v781
  %v783 = vpop.f32.mrf.mxu0
  %v784 = vpop.f32.mrf.mxu0
  %v785 = vadd.f32 0.0, %v784
  %v786 = vpop.f32.mrf.mxu0
  %787 = vmatprep.mubr.bf16.mxu0 0
  %788 = vmatmul.mubr.bf16.gmra.mxu0 %v492
  %v789 = vpop.f32.mrf.mxu0
  %v790 = vadd.f32 0.0, %v789
  %v791 = vpop.f32.mrf.mxu0
  %v792 = vpop.f32.mrf.mxu0
  %v793 = vadd.f32 0.0, %v792
  %v794 = vpop.f32.mrf.mxu0
  %795 = vmatprep.mubr.bf16.mxu0 0
  %796 = vmatmul.mubr.bf16.gmra.mxu0 %v495
  %v797 = vpop.f32.mrf.mxu0
  %v798 = vadd.f32 0.0, %v797
  %v799 = vpop.f32.mrf.mxu0
  %v800 = vpop.f32.mrf.mxu0
  %v801 = vadd.f32 0.0, %v800
  %v802 = vpop.f32.mrf.mxu0
  %803 = vmatprep.mubr.bf16.mxu0 0
  %804 = vmatmul.mubr.bf16.gmra.mxu0 %v498
  %v805 = vpop.f32.mrf.mxu0
  %v806 = vadd.f32 0.0, %v805
  %v807 = vpop.f32.mrf.mxu0
  %v808 = vpop.f32.mrf.mxu0
  %v809 = vadd.f32 0.0, %v808
  %v810 = vpop.f32.mrf.mxu0
  %811 = vmatprep.mubr.bf16.mxu0 0
  %812 = vmatmul.mubr.bf16.gmra.mxu0 %v501
  %v813 = vpop.f32.mrf.mxu0
  %v814 = vadd.f32 0.0, %v813
  %v815 = vpop.f32.mrf.mxu0
  %v816 = vpop.f32.mrf.mxu0
  %v817 = vadd.f32 0.0, %v816
  %v818 = vpop.f32.mrf.mxu0
  %819 = vmatprep.mubr.bf16.mxu0 0
  %820 = vmatmul.mubr.bf16.gmra.mxu0 %v504
  %v821 = vpop.f32.mrf.mxu0
  %v822 = vadd.f32 0.0, %v821
  %v823 = vpop.f32.mrf.mxu0
  %v824 = vpop.f32.mrf.mxu0
  %v825 = vadd.f32 0.0, %v824
  %v826 = vpop.f32.mrf.mxu0
  %827 = vmatprep.mubr.bf16.mxu0 0
  %828 = vmatmul.mubr.bf16.gmra.mxu0 %v507
  %v829 = vpop.f32.mrf.mxu0
  %v830 = vadd.f32 0.0, %v829
  %v831 = vpop.f32.mrf.mxu0
  %v832 = vpop.f32.mrf.mxu0
  %v833 = vadd.f32 0.0, %v832
  %v834 = vpop.f32.mrf.mxu0
  %835 = vmatprep.mubr.bf16.mxu0 0
  %836 = vmatmul.mubr.bf16.gmra.mxu0 %v510
  %v837 = vpop.f32.mrf.mxu0
  %v838 = vadd.f32 0.0, %v837
  %v839 = vpop.f32.mrf.mxu0
  %v840 = vpop.f32.mrf.mxu0
  %v841 = vadd.f32 0.0, %v840
  %v842 = vpop.f32.mrf.mxu0
  %843 = vmatprep.mubr.bf16.mxu0 0
  %844 = vmatmul.mubr.bf16.gmra.mxu0 %v513
  %v845 = vpop.f32.mrf.mxu0
  %v846 = vadd.f32 0.0, %v845
  %v847 = vpop.f32.mrf.mxu0
  %v848 = vpop.f32.mrf.mxu0
  %v849 = vadd.f32 0.0, %v848
  %v850 = vpop.f32.mrf.mxu0
  %851 = vmatprep.mubr.bf16.mxu0 0
  %852 = vmatmul.mubr.bf16.gmra.mxu0 %v516
  %v853 = vpop.f32.mrf.mxu0
  %v854 = vadd.f32 0.0, %v853
  %v855 = vpop.f32.mrf.mxu0
  %v856 = vpop.f32.mrf.mxu0
  %v857 = vadd.f32 0.0, %v856
  %v858 = vpop.f32.mrf.mxu0
  %859 = vmatprep.mubr.bf16.mxu0 0
  %860 = vmatmul.mubr.bf16.gmra.mxu0 %v519
  %v861 = vpop.f32.mrf.mxu0
  %v862 = vadd.f32 0.0, %v861
  %v863 = vpop.f32.mrf.mxu0
  %v864 = vpop.f32.mrf.mxu0
  %v865 = vadd.f32 0.0, %v864
  %v866 = vpop.f32.mrf.mxu0
  %867 = vmatprep.mubr.bf16.mxu0 0
  %868 = vmatmul.mubr.bf16.gmra.mxu0 %v522
  %v869 = vpop.f32.mrf.mxu0
  %v870 = vadd.f32 0.0, %v869
  %v871 = vpop.f32.mrf.mxu0
  %v872 = vpop.f32.mrf.mxu0
  %v873 = vadd.f32 0.0, %v872
  %v874 = vpop.f32.mrf.mxu0
  %875 = vmatprep.mubr.bf16.mxu0 0
  %876 = vmatmul.mubr.bf16.gmra.mxu0 %v525
  %v877 = vpop.f32.mrf.mxu0
  %v878 = vadd.f32 0.0, %v877
  %v879 = vpop.f32.mrf.mxu0
  %v880 = vpop.f32.mrf.mxu0
  %v881 = vadd.f32 0.0, %v880
  %v882 = vpop.f32.mrf.mxu0
  %883 = vmatprep.mubr.bf16.mxu0 0
  %884 = vmatmul.mubr.bf16.gmra.mxu0 %v528
  %v885 = vpop.f32.mrf.mxu0
  %v886 = vadd.f32 0.0, %v885
  %v887 = vpop.f32.mrf.mxu0
  %v888 = vpop.f32.mrf.mxu0
  %v889 = vadd.f32 0.0, %v888
  %v890 = vpop.f32.mrf.mxu0
  %891 = vmatprep.mubr.bf16.mxu0 0
  %892 = vmatmul.mubr.bf16.gmra.mxu0 %v531
  %v893 = vpop.f32.mrf.mxu0
  %v894 = vadd.f32 0.0, %v893
  %v895 = vpop.f32.mrf.mxu0
  %v896 = vpop.f32.mrf.mxu0
  %v897 = vadd.f32 0.0, %v896
  %v898 = vpop.f32.mrf.mxu0
  %899 = vmatprep.mubr.bf16.mxu0 0
  %900 = vmatmul.mubr.bf16.gmra.mxu0 %v534
  %v901 = vpop.f32.mrf.mxu0
  %v902 = vadd.f32 0.0, %v901
  %v903 = vpop.f32.mrf.mxu0
  %v904 = vpop.f32.mrf.mxu0
  %v905 = vadd.f32 0.0, %v904
  %v906 = vpop.f32.mrf.mxu0
  %907 = vmatprep.mubr.bf16.mxu0 0
  %908 = vmatmul.mubr.bf16.gmra.mxu0 %v537
  %v909 = vpop.f32.mrf.mxu0
  %v910 = vadd.f32 0.0, %v909
  %v911 = vpop.f32.mrf.mxu0
  %v912 = vpop.f32.mrf.mxu0
  %v913 = vadd.f32 0.0, %v912
  %v914 = vpop.f32.mrf.mxu0
  %915 = vmatprep.mubr.bf16.mxu0 0
  %916 = vmatmul.mubr.bf16.gmra.mxu0 %v540
  %v917 = vpop.f32.mrf.mxu0
  %v918 = vadd.f32 0.0, %v917
  %v919 = vpop.f32.mrf.mxu0
  %v920 = vpop.f32.mrf.mxu0
  %v921 = vadd.f32 0.0, %v920
  %v922 = vpop.f32.mrf.mxu0
  %923 = vmatprep.mubr.bf16.mxu0 0
  %924 = vmatmul.mubr.bf16.gmra.mxu0 %v543
  %v925 = vpop.f32.mrf.mxu0
  %v926 = vadd.f32 0.0, %v925
  %v927 = vpop.f32.mrf.mxu0
  %v928 = vpop.f32.mrf.mxu0
  %v929 = vadd.f32 0.0, %v928
  %v930 = vpop.f32.mrf.mxu0
  %931 = vmatprep.mubr.bf16.mxu0 0
  %932 = vmatmul.mubr.bf16.gmra.mxu0 %v546
  %v933 = vpop.f32.mrf.mxu0
  %v934 = vadd.f32 0.0, %v933
  %v935 = vpop.f32.mrf.mxu0
  %v936 = vpop.f32.mrf.mxu0
  %v937 = vadd.f32 0.0, %v936
  %v938 = vpop.f32.mrf.mxu0
  %939 = vmatprep.mubr.bf16.mxu0 0
  %940 = vmatmul.mubr.bf16.gmra.mxu0 %v549
  %v941 = vpop.f32.mrf.mxu0
  %v942 = vadd.f32 0.0, %v941
  %v943 = vpop.f32.mrf.mxu0
  %v944 = vpop.f32.mrf.mxu0
  %v945 = vadd.f32 0.0, %v944
  %v946 = vpop.f32.mrf.mxu0
  %947 = vmatprep.mubr.bf16.mxu0 0
  %948 = vmatmul.mubr.bf16.gmra.mxu0 %v552
  %v949 = vpop.f32.mrf.mxu0
  %v950 = vadd.f32 0.0, %v949
  %v951 = vpop.f32.mrf.mxu0
  %v952 = vpop.f32.mrf.mxu0
  %v953 = vadd.f32 0.0, %v952
  %v954 = vpop.f32.mrf.mxu0
  %955 = vmatprep.mubr.bf16.mxu0 0
  %956 = vmatmul.mubr.bf16.gmra.mxu0 %v555
  %v957 = vpop.f32.mrf.mxu0
  %v958 = vadd.f32 0.0, %v957
  %v959 = vpop.f32.mrf.mxu0
  %v960 = vpop.f32.mrf.mxu0
  %v961 = vadd.f32 0.0, %v960
  %v962 = vpop.f32.mrf.mxu0
  %963 = vmatprep.mubr.bf16.mxu0 0
  %964 = vmatmul.mubr.bf16.gmra.mxu0 %v558
  %v965 = vpop.f32.mrf.mxu0
  %v966 = vadd.f32 0.0, %v965
  %v967 = vpop.f32.mrf.mxu0
  %v968 = vpop.f32.mrf.mxu0
  %v969 = vadd.f32 0.0, %v968
  %v970 = vpop.f32.mrf.mxu0
  %971 = vmatprep.mubr.bf16.mxu0 0
  %972 = vmatmul.mubr.bf16.gmra.mxu0 %v561
  %v973 = vpop.f32.mrf.mxu0
  %v974 = vadd.f32 0.0, %v973
  %v975 = vpop.f32.mrf.mxu0
  %v976 = vpop.f32.mrf.mxu0
  %v977 = vadd.f32 0.0, %v976
  %v978 = vpop.f32.mrf.mxu0
  %979 = vmatprep.mubr.bf16.mxu0 0
  %980 = vmatmul.mubr.bf16.gmra.mxu0 %v564
  %v981 = vpop.f32.mrf.mxu0
  %v982 = vadd.f32 0.0, %v981
  %v983 = vpop.f32.mrf.mxu0
  %v984 = vpop.f32.mrf.mxu0
  %v985 = vadd.f32 0.0, %v984
  %v986 = vpop.f32.mrf.mxu0
  %987 = vmatprep.mubr.bf16.mxu0 0
  %988 = vmatmul.mubr.bf16.gmra.mxu0 %v567
  %v989 = vpop.f32.mrf.mxu0
  %v990 = vadd.f32 0.0, %v989
  %v991 = vpop.f32.mrf.mxu0
  %v992 = vpop.f32.mrf.mxu0
  %v993 = vadd.f32 0.0, %v992
  %v994 = vpop.f32.mrf.mxu0
  %995 = vmatprep.mubr.bf16.mxu0 0
  %996 = vmatmul.mubr.bf16.gmra.mxu0 %v570
  %v997 = vpop.f32.mrf.mxu0
  %v998 = vadd.f32 0.0, %v997
  %v999 = vpop.f32.mrf.mxu0
  %v1000 = vpop.f32.mrf.mxu0
  %v1001 = vadd.f32 0.0, %v1000
  %v1002 = vpop.f32.mrf.mxu0
  %1003 = vmatprep.mubr.bf16.mxu0 0
  %1004 = vmatmul.mubr.bf16.gmra.mxu0 %v573
  %v1005 = vpop.f32.mrf.mxu0
  %v1006 = vadd.f32 0.0, %v1005
  %v1007 = vpop.f32.mrf.mxu0
  %v1008 = vpop.f32.mrf.mxu0
  %v1009 = vadd.f32 0.0, %v1008
  %v1010 = vpop.f32.mrf.mxu0
  %1011 = vmatprep.mubr.bf16.mxu0 0
  %1012 = vmatmul.mubr.bf16.gmra.mxu0 %v576
  %v1013 = vpop.f32.mrf.mxu0
  %v1014 = vadd.f32 0.0, %v1013
  %v1015 = vpop.f32.mrf.mxu0
  %v1016 = vpop.f32.mrf.mxu0
  %v1017 = vadd.f32 0.0, %v1016
  %v1018 = vpop.f32.mrf.mxu0
  %1019 = vmatprep.mubr.bf16.mxu0 0
  %1020 = vmatmul.mubr.bf16.gmra.mxu0 %v579
  %v1021 = vpop.f32.mrf.mxu0
  %v1022 = vadd.f32 0.0, %v1021
  %v1023 = vpop.f32.mrf.mxu0
  %v1024 = vpop.f32.mrf.mxu0
  %v1025 = vadd.f32 0.0, %v1024
  %v1026 = vpop.f32.mrf.mxu0
  %1027 = vmatprep.mubr.bf16.mxu0 0
  %1028 = vmatmul.mubr.bf16.gmra.mxu0 %v582
  %v1029 = vpop.f32.mrf.mxu0
  %v1030 = vadd.f32 0.0, %v1029
  %v1031 = vpop.f32.mrf.mxu0
  %v1032 = vpop.f32.mrf.mxu0
  %v1033 = vadd.f32 0.0, %v1032
  %v1034 = vpop.f32.mrf.mxu0
  %1035 = vmatprep.mubr.bf16.mxu0 0
  %1036 = vmatmul.mubr.bf16.gmra.mxu0 %v585
  %v1037 = vpop.f32.mrf.mxu0
  %v1038 = vadd.f32 0.0, %v1037
  %v1039 = vpop.f32.mrf.mxu0
  %v1040 = vpop.f32.mrf.mxu0
  %v1041 = vadd.f32 0.0, %v1040
  %v1042 = vpop.f32.mrf.mxu0
  %1043 = vdwg.mxu0
  %v1044 = vadd.f32 %v622, %v625
  %v1045 = vadd.f32 %v1044, %v630
  %v1046 = vadd.f32 %v1045, %v633
  %v1047 = vadd.f32 %v1046, %v638
  %v1048 = vadd.f32 %v1047, %v641
  %v1049 = vadd.f32 %v1048, %v646
  %v1050 = vadd.f32 %v1049, %v649
  %v1051 = vadd.f32 %v1050, %v654
  %v1052 = vadd.f32 %v1051, %v657
  %v1053 = vadd.f32 %v1052, %v662
  %v1054 = vadd.f32 %v1053, %v665
  %v1055 = vadd.f32 %v1054, %v670
  %v1056 = vadd.f32 %v1055, %v673
  %v1057 = vadd.f32 %v1056, %v678
  %v1058 = vadd.f32 %v1057, %v681
  %v1059 = vadd.f32 %v1058, %v686
  %v1060 = vadd.f32 %v1059, %v689
  %v1061 = vadd.f32 %v1060, %v694
  %v1062 = vadd.f32 %v1061, %v697
  %v1063 = vadd.f32 %v1062, %v702
  %v1064 = vadd.f32 %v1063, %v705
  %v1065 = vadd.f32 %v1064, %v710
  %v1066 = vadd.f32 %v1065, %v713
  %v1067 = vadd.f32 %v1066, %v718
  %v1068 = vadd.f32 %v1067, %v721
  %v1069 = vadd.f32 %v1068, %v726
  %v1070 = vadd.f32 %v1069, %v729
  %v1071 = vadd.f32 %v1070, %v734
  %v1072 = vadd.f32 %v1071, %v737
  %v1073 = vadd.f32 %v1072, %v742
  %v1074 = vadd.f32 %v1073, %v745
  %v1075 = vadd.f32 %v1074, %v750
  %v1076 = vadd.f32 %v1075, %v753
  %v1077 = vadd.f32 %v1076, %v758
  %v1078 = vadd.f32 %v1077, %v761
  %v1079 = vadd.f32 %v1078, %v766
  %v1080 = vadd.f32 %v1079, %v769
  %v1081 = vadd.f32 %v1080, %v774
  %v1082 = vadd.f32 %v1081, %v777
  %v1083 = vadd.f32 %v1082, %v782
  %v1084 = vadd.f32 %v1083, %v785
  %v1085 = vadd.f32 %v1084, %v790
  %v1086 = vadd.f32 %v1085, %v793
  %v1087 = vadd.f32 %v1086, %v798
  %v1088 = vadd.f32 %v1087, %v801
  %v1089 = vadd.f32 %v1088, %v806
  %v1090 = vadd.f32 %v1089, %v809
  %v1091 = vadd.f32 %v1090, %v814
  %v1092 = vadd.f32 %v1091, %v817
  %v1093 = vadd.f32 %v1092, %v822
  %v1094 = vadd.f32 %v1093, %v825
  %v1095 = vadd.f32 %v1094, %v830
  %v1096 = vadd.f32 %v1095, %v833
  %v1097 = vadd.f32 %v1096, %v838
  %v1098 = vadd.f32 %v1097, %v841
  %v1099 = vadd.f32 %v1098, %v846
  %v1100 = vadd.f32 %v1099, %v849
  %v1101 = vadd.f32 %v1100, %v854
  %v1102 = vadd.f32 %v1101, %v857
  %v1103 = vadd.f32 %v1102, %v862
  %v1104 = vadd.f32 %v1103, %v865
  %v1105 = vadd.f32 %v1104, %v870
  %v1106 = vadd.f32 %v1105, %v873
  %v1107 = vadd.f32 %v1106, %v878
  %v1108 = vadd.f32 %v1107, %v881
  %v1109 = vadd.f32 %v1108, %v886
  %v1110 = vadd.f32 %v1109, %v889
  %v1111 = vadd.f32 %v1110, %v894
  %v1112 = vadd.f32 %v1111, %v897
  %v1113 = vadd.f32 %v1112, %v902
  %v1114 = vadd.f32 %v1113, %v905
  %v1115 = vadd.f32 %v1114, %v910
  %v1116 = vadd.f32 %v1115, %v913
  %v1117 = vadd.f32 %v1116, %v918
  %v1118 = vadd.f32 %v1117, %v921
  %v1119 = vadd.f32 %v1118, %v926
  %v1120 = vadd.f32 %v1119, %v929
  %v1121 = vadd.f32 %v1120, %v934
  %v1122 = vadd.f32 %v1121, %v937
  %v1123 = vadd.f32 %v1122, %v942
  %v1124 = vadd.f32 %v1123, %v945
  %v1125 = vadd.f32 %v1124, %v950
  %v1126 = vadd.f32 %v1125, %v953
  %v1127 = vadd.f32 %v1126, %v958
  %v1128 = vadd.f32 %v1127, %v961
  %v1129 = vadd.f32 %v1128, %v966
  %v1130 = vadd.f32 %v1129, %v969
  %v1131 = vadd.f32 %v1130, %v974
  %v1132 = vadd.f32 %v1131, %v977
  %v1133 = vadd.f32 %v1132, %v982
  %v1134 = vadd.f32 %v1133, %v985
  %v1135 = vadd.f32 %v1134, %v990
  %v1136 = vadd.f32 %v1135, %v993
  %v1137 = vadd.f32 %v1136, %v998
  %v1138 = vadd.f32 %v1137, %v1001
  %v1139 = vadd.f32 %v1138, %v1006
  %v1140 = vadd.f32 %v1139, %v1009
  %v1141 = vadd.f32 %v1140, %v1014
  %v1142 = vadd.f32 %v1141, %v1017
  %v1143 = vadd.f32 %v1142, %v1022
  %v1144 = vadd.f32 %v1143, %v1025
  %v1145 = vadd.f32 %v1144, %v1030
  %v1146 = vadd.f32 %v1145, %v1033
  %v1147 = vadd.f32 %v1146, %v1038
  %v1148 = vadd.f32 %v1147, %v1041
  %v1149 = vrot.slane %v1148, 4
  %v1150 = vadd.f32 %v1148, %v1149
  %v1151 = vrot.slane %v1150, 2
  %v1152 = vadd.f32 %v1150, %v1151
  %v1153 = vrot.slane %v1152, 1
  %v1154 = vadd.f32 %v1152, %v1153
  %v1155 = vmul.f32 %v622, %v622
  %v1156 = vmul.f32 %v625, %v625
  %v1157 = vmul.f32 %v630, %v630
  %v1158 = vmul.f32 %v633, %v633
  %v1159 = vmul.f32 %v638, %v638
  %v1160 = vmul.f32 %v641, %v641
  %v1161 = vmul.f32 %v646, %v646
  %v1162 = vmul.f32 %v649, %v649
  %v1163 = vmul.f32 %v654, %v654
  %v1164 = vmul.f32 %v657, %v657
  %v1165 = vmul.f32 %v662, %v662
  %v1166 = vmul.f32 %v665, %v665
  %v1167 = vmul.f32 %v670, %v670
  %v1168 = vmul.f32 %v673, %v673
  %v1169 = vmul.f32 %v678, %v678
  %v1170 = vmul.f32 %v681, %v681
  %v1171 = vmul.f32 %v686, %v686
  %v1172 = vmul.f32 %v689, %v689
  %v1173 = vmul.f32 %v694, %v694
  %v1174 = vmul.f32 %v697, %v697
  %v1175 = vmul.f32 %v702, %v702
  %v1176 = vmul.f32 %v705, %v705
  %v1177 = vmul.f32 %v710, %v710
  %v1178 = vmul.f32 %v713, %v713
  %v1179 = vmul.f32 %v718, %v718
  %v1180 = vmul.f32 %v721, %v721
  %v1181 = vmul.f32 %v726, %v726
  %v1182 = vmul.f32 %v729, %v729
  %v1183 = vmul.f32 %v734, %v734
  %v1184 = vmul.f32 %v737, %v737
  %v1185 = vmul.f32 %v742, %v742
  %v1186 = vmul.f32 %v745, %v745
  %v1187 = vmul.f32 %v750, %v750
  %v1188 = vmul.f32 %v753, %v753
  %v1189 = vmul.f32 %v758, %v758
  %v1190 = vmul.f32 %v761, %v761
  %v1191 = vmul.f32 %v766, %v766
  %v1192 = vmul.f32 %v769, %v769
  %v1193 = vmul.f32 %v774, %v774
  %v1194 = vmul.f32 %v777, %v777
  %v1195 = vmul.f32 %v782, %v782
  %v1196 = vmul.f32 %v785, %v785
  %v1197 = vmul.f32 %v790, %v790
  %v1198 = vmul.f32 %v793, %v793
  %v1199 = vmul.f32 %v798, %v798
  %v1200 = vmul.f32 %v801, %v801
  %v1201 = vmul.f32 %v806, %v806
  %v1202 = vmul.f32 %v809, %v809
  %v1203 = vmul.f32 %v814, %v814
  %v1204 = vmul.f32 %v817, %v817
  %v1205 = vmul.f32 %v822, %v822
  %v1206 = vmul.f32 %v825, %v825
  %v1207 = vmul.f32 %v830, %v830
  %v1208 = vmul.f32 %v833, %v833
  %v1209 = vmul.f32 %v838, %v838
  %v1210 = vmul.f32 %v841, %v841
  %v1211 = vmul.f32 %v846, %v846
  %v1212 = vmul.f32 %v849, %v849
  %v1213 = vmul.f32 %v854, %v854
  %v1214 = vmul.f32 %v857, %v857
  %v1215 = vmul.f32 %v862, %v862
  %v1216 = vmul.f32 %v865, %v865
  %v1217 = vmul.f32 %v870, %v870
  %v1218 = vmul.f32 %v873, %v873
  %v1219 = vmul.f32 %v878, %v878
  %v1220 = vmul.f32 %v881, %v881
  %v1221 = vmul.f32 %v886, %v886
  %v1222 = vmul.f32 %v889, %v889
  %v1223 = vmul.f32 %v894, %v894
  %v1224 = vmul.f32 %v897, %v897
  %v1225 = vmul.f32 %v902, %v902
  %v1226 = vmul.f32 %v905, %v905
  %v1227 = vmul.f32 %v910, %v910
  %v1228 = vmul.f32 %v913, %v913
  %v1229 = vmul.f32 %v918, %v918
  %v1230 = vmul.f32 %v921, %v921
  %v1231 = vmul.f32 %v926, %v926
  %v1232 = vmul.f32 %v929, %v929
  %v1233 = vmul.f32 %v934, %v934
  %v1234 = vmul.f32 %v937, %v937
  %v1235 = vmul.f32 %v942, %v942
  %v1236 = vmul.f32 %v945, %v945
  %v1237 = vmul.f32 %v950, %v950
  %v1238 = vmul.f32 %v953, %v953
  %v1239 = vmul.f32 %v958, %v958
  %v1240 = vmul.f32 %v961, %v961
  %v1241 = vmul.f32 %v966, %v966
  %v1242 = vmul.f32 %v969, %v969
  %v1243 = vmul.f32 %v974, %v974
  %v1244 = vmul.f32 %v977, %v977
  %v1245 = vmul.f32 %v982, %v982
  %v1246 = vmul.f32 %v985, %v985
  %v1247 = vmul.f32 %v990, %v990
  %v1248 = vmul.f32 %v993, %v993
  %v1249 = vmul.f32 %v998, %v998
  %v1250 = vmul.f32 %v1001, %v1001
  %v1251 = vmul.f32 %v1006, %v1006
  %v1252 = vmul.f32 %v1009, %v1009
  %v1253 = vmul.f32 %v1014, %v1014
  %v1254 = vmul.f32 %v1017, %v1017
  %v1255 = vmul.f32 %v1022, %v1022
  %v1256 = vmul.f32 %v1025, %v1025
  %v1257 = vmul.f32 %v1030, %v1030
  %v1258 = vmul.f32 %v1033, %v1033
  %v1259 = vmul.f32 %v1038, %v1038
  %v1260 = vmul.f32 %v1041, %v1041
  %v1261 = vadd.f32 %v1155, %v1156
  %v1262 = vadd.f32 %v1261, %v1157
  %v1263 = vadd.f32 %v1262, %v1158
  %v1264 = vadd.f32 %v1263, %v1159
  %v1265 = vadd.f32 %v1264, %v1160
  %v1266 = vadd.f32 %v1265, %v1161
  %v1267 = vadd.f32 %v1266, %v1162
  %v1268 = vadd.f32 %v1267, %v1163
  %v1269 = vadd.f32 %v1268, %v1164
  %v1270 = vadd.f32 %v1269, %v1165
  %v1271 = vadd.f32 %v1270, %v1166
  %v1272 = vadd.f32 %v1271, %v1167
  %v1273 = vadd.f32 %v1272, %v1168
  %v1274 = vadd.f32 %v1273, %v1169
  %v1275 = vadd.f32 %v1274, %v1170
  %v1276 = vadd.f32 %v1275, %v1171
  %v1277 = vadd.f32 %v1276, %v1172
  %v1278 = vadd.f32 %v1277, %v1173
  %v1279 = vadd.f32 %v1278, %v1174
  %v1280 = vadd.f32 %v1279, %v1175
  %v1281 = vadd.f32 %v1280, %v1176
  %v1282 = vadd.f32 %v1281, %v1177
  %v1283 = vadd.f32 %v1282, %v1178
  %v1284 = vadd.f32 %v1283, %v1179
  %v1285 = vadd.f32 %v1284, %v1180
  %v1286 = vadd.f32 %v1285, %v1181
  %v1287 = vadd.f32 %v1286, %v1182
  %v1288 = vadd.f32 %v1287, %v1183
  %v1289 = vadd.f32 %v1288, %v1184
  %v1290 = vadd.f32 %v1289, %v1185
  %v1291 = vadd.f32 %v1290, %v1186
  %v1292 = vadd.f32 %v1291, %v1187
  %v1293 = vadd.f32 %v1292, %v1188
  %v1294 = vadd.f32 %v1293, %v1189
  %v1295 = vadd.f32 %v1294, %v1190
  %v1296 = vadd.f32 %v1295, %v1191
  %v1297 = vadd.f32 %v1296, %v1192
  %v1298 = vadd.f32 %v1297, %v1193
  %v1299 = vadd.f32 %v1298, %v1194
  %v1300 = vadd.f32 %v1299, %v1195
  %v1301 = vadd.f32 %v1300, %v1196
  %v1302 = vadd.f32 %v1301, %v1197
  %v1303 = vadd.f32 %v1302, %v1198
  %v1304 = vadd.f32 %v1303, %v1199
  %v1305 = vadd.f32 %v1304, %v1200
  %v1306 = vadd.f32 %v1305, %v1201
  %v1307 = vadd.f32 %v1306, %v1202
  %v1308 = vadd.f32 %v1307, %v1203
  %v1309 = vadd.f32 %v1308, %v1204
  %v1310 = vadd.f32 %v1309, %v1205
  %v1311 = vadd.f32 %v1310, %v1206
  %v1312 = vadd.f32 %v1311, %v1207
  %v1313 = vadd.f32 %v1312, %v1208
  %v1314 = vadd.f32 %v1313, %v1209
  %v1315 = vadd.f32 %v1314, %v1210
  %v1316 = vadd.f32 %v1315, %v1211
  %v1317 = vadd.f32 %v1316, %v1212
  %v1318 = vadd.f32 %v1317, %v1213
  %v1319 = vadd.f32 %v1318, %v1214
  %v1320 = vadd.f32 %v1319, %v1215
  %v1321 = vadd.f32 %v1320, %v1216
  %v1322 = vadd.f32 %v1321, %v1217
  %v1323 = vadd.f32 %v1322, %v1218
  %v1324 = vadd.f32 %v1323, %v1219
  %v1325 = vadd.f32 %v1324, %v1220
  %v1326 = vadd.f32 %v1325, %v1221
  %v1327 = vadd.f32 %v1326, %v1222
  %v1328 = vadd.f32 %v1327, %v1223
  %v1329 = vadd.f32 %v1328, %v1224
  %v1330 = vadd.f32 %v1329, %v1225
  %v1331 = vadd.f32 %v1330, %v1226
  %v1332 = vadd.f32 %v1331, %v1227
  %v1333 = vadd.f32 %v1332, %v1228
  %v1334 = vadd.f32 %v1333, %v1229
  %v1335 = vadd.f32 %v1334, %v1230
  %v1336 = vadd.f32 %v1335, %v1231
  %v1337 = vadd.f32 %v1336, %v1232
  %v1338 = vadd.f32 %v1337, %v1233
  %v1339 = vadd.f32 %v1338, %v1234
  %v1340 = vadd.f32 %v1339, %v1235
  %v1341 = vadd.f32 %v1340, %v1236
  %v1342 = vadd.f32 %v1341, %v1237
  %v1343 = vadd.f32 %v1342, %v1238
  %v1344 = vadd.f32 %v1343, %v1239
  %v1345 = vadd.f32 %v1344, %v1240
  %v1346 = vadd.f32 %v1345, %v1241
  %v1347 = vadd.f32 %v1346, %v1242
  %v1348 = vadd.f32 %v1347, %v1243
  %v1349 = vadd.f32 %v1348, %v1244
  %v1350 = vadd.f32 %v1349, %v1245
  %v1351 = vadd.f32 %v1350, %v1246
  %v1352 = vadd.f32 %v1351, %v1247
  %v1353 = vadd.f32 %v1352, %v1248
  %v1354 = vadd.f32 %v1353, %v1249
  %v1355 = vadd.f32 %v1354, %v1250
  %v1356 = vadd.f32 %v1355, %v1251
  %v1357 = vadd.f32 %v1356, %v1252
  %v1358 = vadd.f32 %v1357, %v1253
  %v1359 = vadd.f32 %v1358, %v1254
  %v1360 = vadd.f32 %v1359, %v1255
  %v1361 = vadd.f32 %v1360, %v1256
  %v1362 = vadd.f32 %v1361, %v1257
  %v1363 = vadd.f32 %v1362, %v1258
  %v1364 = vadd.f32 %v1363, %v1259
  %v1365 = vadd.f32 %v1364, %v1260
  %v1366 = vrot.slane %v1365, 4
  %v1367 = vadd.f32 %v1365, %v1366
  %v1368 = vrot.slane %v1367, 2
  %v1369 = vadd.f32 %v1367, %v1368
  %v1370 = vrot.slane %v1369, 1
  %v1371 = vadd.f32 %v1369, %v1370
  %v1372 = vmul.f32 %v1154, 0.004132231
  %v1373 = vmul.f32 %v1371, 0.004132231
  %v1374 = vmul.f32 %v1372, %v1372
  %v1375 = vsub.f32 %v1373, %v1374
  %v1376 = vadd.f32 %v1375, 1e-05
  %v1377 = vrsqrt.pop %v1376
  %v1378 = vld [vmem:[%s2] sm:$0x1]
  %v1379 = vmul.f32 %v1377, %v1378
  %v1380 = vld [vmem:[%s3] sm:$0x1]
  %v1381 = vmul.f32 %v1372, %v1379
  %v1382 = vsub.f32 %v1380, %v1381
  %v1383 = vlaneseq
  %v1384 = vshrl.u32 %v1383, 7
  %v1385 = vsub.s32 0, %v1384
  %v1386 = vrot.slane %v1379, %v1385
  %v1387 = vmul.f32 %v622, %v1386
  %v1388 = vmul.f32 %v625, %v1386
  %v1389 = vmul.f32 %v630, %v1386
  %v1390 = vmul.f32 %v633, %v1386
  %v1391 = vmul.f32 %v638, %v1386
  %v1392 = vmul.f32 %v641, %v1386
  %v1393 = vmul.f32 %v646, %v1386
  %v1394 = vmul.f32 %v649, %v1386
  %v1395 = vmul.f32 %v654, %v1386
  %v1396 = vmul.f32 %v657, %v1386
  %v1397 = vmul.f32 %v662, %v1386
  %v1398 = vmul.f32 %v665, %v1386
  %v1399 = vmul.f32 %v670, %v1386
  %v1400 = vmul.f32 %v673, %v1386
  %v1401 = vmul.f32 %v678, %v1386
  %v1402 = vmul.f32 %v681, %v1386
  %v1403 = vmul.f32 %v686, %v1386
  %v1404 = vmul.f32 %v689, %v1386
  %v1405 = vmul.f32 %v694, %v1386
  %v1406 = vmul.f32 %v697, %v1386
  %v1407 = vmul.f32 %v702, %v1386
  %v1408 = vmul.f32 %v705, %v1386
  %v1409 = vmul.f32 %v710, %v1386
  %v1410 = vmul.f32 %v713, %v1386
  %v1411 = vmul.f32 %v718, %v1386
  %v1412 = vmul.f32 %v721, %v1386
  %v1413 = vmul.f32 %v726, %v1386
  %v1414 = vmul.f32 %v729, %v1386
  %v1415 = vmul.f32 %v734, %v1386
  %v1416 = vmul.f32 %v737, %v1386
  %v1417 = vmul.f32 %v742, %v1386
  %v1418 = vmul.f32 %v745, %v1386
  %v1419 = vmul.f32 %v750, %v1386
  %v1420 = vmul.f32 %v753, %v1386
  %v1421 = vmul.f32 %v758, %v1386
  %v1422 = vmul.f32 %v761, %v1386
  %v1423 = vmul.f32 %v766, %v1386
  %v1424 = vmul.f32 %v769, %v1386
  %v1425 = vmul.f32 %v774, %v1386
  %v1426 = vmul.f32 %v777, %v1386
  %v1427 = vmul.f32 %v782, %v1386
  %v1428 = vmul.f32 %v785, %v1386
  %v1429 = vmul.f32 %v790, %v1386
  %v1430 = vmul.f32 %v793, %v1386
  %v1431 = vmul.f32 %v798, %v1386
  %v1432 = vmul.f32 %v801, %v1386
  %v1433 = vmul.f32 %v806, %v1386
  %v1434 = vmul.f32 %v809, %v1386
  %v1435 = vmul.f32 %v814, %v1386
  %v1436 = vmul.f32 %v817, %v1386
  %v1437 = vmul.f32 %v822, %v1386
  %v1438 = vmul.f32 %v825, %v1386
  %v1439 = vmul.f32 %v830, %v1386
  %v1440 = vmul.f32 %v833, %v1386
  %v1441 = vmul.f32 %v838, %v1386
  %v1442 = vmul.f32 %v841, %v1386
  %v1443 = vmul.f32 %v846, %v1386
  %v1444 = vmul.f32 %v849, %v1386
  %v1445 = vmul.f32 %v854, %v1386
  %v1446 = vmul.f32 %v857, %v1386
  %v1447 = vmul.f32 %v862, %v1386
  %v1448 = vmul.f32 %v865, %v1386
  %v1449 = vmul.f32 %v870, %v1386
  %v1450 = vmul.f32 %v873, %v1386
  %v1451 = vmul.f32 %v878, %v1386
  %v1452 = vmul.f32 %v881, %v1386
  %v1453 = vmul.f32 %v886, %v1386
  %v1454 = vmul.f32 %v889, %v1386
  %v1455 = vmul.f32 %v894, %v1386
  %v1456 = vmul.f32 %v897, %v1386
  %v1457 = vmul.f32 %v902, %v1386
  %v1458 = vmul.f32 %v905, %v1386
  %v1459 = vmul.f32 %v910, %v1386
  %v1460 = vmul.f32 %v913, %v1386
  %v1461 = vmul.f32 %v918, %v1386
  %v1462 = vmul.f32 %v921, %v1386
  %v1463 = vmul.f32 %v926, %v1386
  %v1464 = vmul.f32 %v929, %v1386
  %v1465 = vmul.f32 %v934, %v1386
  %v1466 = vmul.f32 %v937, %v1386
  %v1467 = vmul.f32 %v942, %v1386
  %v1468 = vmul.f32 %v945, %v1386
  %v1469 = vmul.f32 %v950, %v1386
  %v1470 = vmul.f32 %v953, %v1386
  %v1471 = vmul.f32 %v958, %v1386
  %v1472 = vmul.f32 %v961, %v1386
  %v1473 = vmul.f32 %v966, %v1386
  %v1474 = vmul.f32 %v969, %v1386
  %v1475 = vmul.f32 %v974, %v1386
  %v1476 = vmul.f32 %v977, %v1386
  %v1477 = vmul.f32 %v982, %v1386
  %v1478 = vmul.f32 %v985, %v1386
  %v1479 = vmul.f32 %v990, %v1386
  %v1480 = vmul.f32 %v993, %v1386
  %v1481 = vmul.f32 %v998, %v1386
  %v1482 = vmul.f32 %v1001, %v1386
  %v1483 = vmul.f32 %v1006, %v1386
  %v1484 = vmul.f32 %v1009, %v1386
  %v1485 = vmul.f32 %v1014, %v1386
  %v1486 = vmul.f32 %v1017, %v1386
  %v1488 = vlaneseq
  %v1489 = vshrl.u32 %v1488, 7
  %v1490 = vsub.s32 0, %v1489
  %v1491 = vrot.slane %v1382, %v1490
  %v1493 = vadd.f32 %v1387, %v1491
  %v1494 = vadd.f32 %v1388, %v1491
  %v1495 = vadd.f32 %v1389, %v1491
  %v1496 = vadd.f32 %v1390, %v1491
  %v1497 = vadd.f32 %v1391, %v1491
  %v1498 = vadd.f32 %v1392, %v1491
  %v1499 = vadd.f32 %v1393, %v1491
  %v1500 = vadd.f32 %v1394, %v1491
  %v1501 = vadd.f32 %v1395, %v1491
  %v1502 = vadd.f32 %v1396, %v1491
  %v1503 = vadd.f32 %v1397, %v1491
  %v1504 = vadd.f32 %v1398, %v1491
  %v1505 = vadd.f32 %v1399, %v1491
  %v1506 = vadd.f32 %v1400, %v1491
  %v1507 = vadd.f32 %v1401, %v1491
  %v1508 = vadd.f32 %v1402, %v1491
  %v1509 = vadd.f32 %v1403, %v1491
  %v1510 = vadd.f32 %v1404, %v1491
  %v1511 = vadd.f32 %v1405, %v1491
  %v1512 = vadd.f32 %v1406, %v1491
  %v1513 = vadd.f32 %v1407, %v1491
  %v1514 = vadd.f32 %v1408, %v1491
  %v1515 = vadd.f32 %v1409, %v1491
  %v1516 = vadd.f32 %v1410, %v1491
  %v1517 = vadd.f32 %v1411, %v1491
  %v1518 = vadd.f32 %v1412, %v1491
  %v1519 = vadd.f32 %v1413, %v1491
  %v1520 = vadd.f32 %v1414, %v1491
  %v1521 = vadd.f32 %v1415, %v1491
  %v1522 = vadd.f32 %v1416, %v1491
  %v1523 = vadd.f32 %v1417, %v1491
  %v1524 = vadd.f32 %v1418, %v1491
  %v1525 = vadd.f32 %v1419, %v1491
  %v1526 = vadd.f32 %v1420, %v1491
  %v1527 = vadd.f32 %v1421, %v1491
  %v1528 = vadd.f32 %v1422, %v1491
  %v1529 = vadd.f32 %v1423, %v1491
  %v1530 = vadd.f32 %v1424, %v1491
  %v1531 = vadd.f32 %v1425, %v1491
  %v1532 = vadd.f32 %v1426, %v1491
  %v1533 = vadd.f32 %v1427, %v1491
  %v1534 = vadd.f32 %v1428, %v1491
  %v1535 = vadd.f32 %v1429, %v1491
  %v1536 = vadd.f32 %v1430, %v1491
  %v1537 = vadd.f32 %v1431, %v1491
  %v1538 = vadd.f32 %v1432, %v1491
  %v1539 = vadd.f32 %v1433, %v1491
  %v1540 = vadd.f32 %v1434, %v1491
  %v1541 = vadd.f32 %v1435, %v1491
  %v1542 = vadd.f32 %v1436, %v1491
  %v1543 = vadd.f32 %v1437, %v1491
  %v1544 = vadd.f32 %v1438, %v1491
  %v1545 = vadd.f32 %v1439, %v1491
  %v1546 = vadd.f32 %v1440, %v1491
  %v1547 = vadd.f32 %v1441, %v1491
  %v1548 = vadd.f32 %v1442, %v1491
  %v1549 = vadd.f32 %v1443, %v1491
  %v1550 = vadd.f32 %v1444, %v1491
  %v1551 = vadd.f32 %v1445, %v1491
  %v1552 = vadd.f32 %v1446, %v1491
  %v1553 = vadd.f32 %v1447, %v1491
  %v1554 = vadd.f32 %v1448, %v1491
  %v1555 = vadd.f32 %v1449, %v1491
  %v1556 = vadd.f32 %v1450, %v1491
  %v1557 = vadd.f32 %v1451, %v1491
  %v1558 = vadd.f32 %v1452, %v1491
  %v1559 = vadd.f32 %v1453, %v1491
  %v1560 = vadd.f32 %v1454, %v1491
  %v1561 = vadd.f32 %v1455, %v1491
  %v1562 = vadd.f32 %v1456, %v1491
  %v1563 = vadd.f32 %v1457, %v1491
  %v1564 = vadd.f32 %v1458, %v1491
  %v1565 = vadd.f32 %v1459, %v1491
  %v1566 = vadd.f32 %v1460, %v1491
  %v1567 = vadd.f32 %v1461, %v1491
  %v1568 = vadd.f32 %v1462, %v1491
  %v1569 = vadd.f32 %v1463, %v1491
  %v1570 = vadd.f32 %v1464, %v1491
  %v1571 = vadd.f32 %v1465, %v1491
  %v1572 = vadd.f32 %v1466, %v1491
  %v1573 = vadd.f32 %v1467, %v1491
  %v1574 = vadd.f32 %v1468, %v1491
  %v1575 = vadd.f32 %v1469, %v1491
  %v1576 = vadd.f32 %v1470, %v1491
  %v1577 = vadd.f32 %v1471, %v1491
  %v1578 = vadd.f32 %v1472, %v1491
  %v1579 = vadd.f32 %v1473, %v1491
  %v1580 = vadd.f32 %v1474, %v1491
  %v1581 = vadd.f32 %v1475, %v1491
  %v1582 = vadd.f32 %v1476, %v1491
  %v1583 = vadd.f32 %v1477, %v1491
  %v1584 = vadd.f32 %v1478, %v1491
  %v1585 = vadd.f32 %v1479, %v1491
  %v1586 = vadd.f32 %v1480, %v1491
  %v1587 = vadd.f32 %v1481, %v1491
  %v1588 = vadd.f32 %v1482, %v1491
  %v1589 = vadd.f32 %v1483, %v1491
  %v1590 = vadd.f32 %v1484, %v1491
  %v1591 = vadd.f32 %v1485, %v1491
  %v1592 = vadd.f32 %v1486, %v1491
  %v1593 = vmin.f32 %v1493, 20.0
  %v1594 = vmin.f32 %v1494, 20.0
  %v1595 = vmin.f32 %v1495, 20.0
  %v1596 = vmin.f32 %v1496, 20.0
  %v1597 = vmin.f32 %v1497, 20.0
  %v1598 = vmin.f32 %v1498, 20.0
  %v1599 = vmin.f32 %v1499, 20.0
  %v1600 = vmin.f32 %v1500, 20.0
  %v1601 = vmin.f32 %v1501, 20.0
  %v1602 = vmin.f32 %v1502, 20.0
  %v1603 = vmin.f32 %v1503, 20.0
  %v1604 = vmin.f32 %v1504, 20.0
  %v1605 = vmin.f32 %v1505, 20.0
  %v1606 = vmin.f32 %v1506, 20.0
  %v1607 = vmin.f32 %v1507, 20.0
  %v1608 = vmin.f32 %v1508, 20.0
  %v1609 = vmin.f32 %v1509, 20.0
  %v1610 = vmin.f32 %v1510, 20.0
  %v1611 = vmin.f32 %v1511, 20.0
  %v1612 = vmin.f32 %v1512, 20.0
  %v1613 = vmin.f32 %v1513, 20.0
  %v1614 = vmin.f32 %v1514, 20.0
  %v1615 = vmin.f32 %v1515, 20.0
  %v1616 = vmin.f32 %v1516, 20.0
  %v1617 = vmin.f32 %v1517, 20.0
  %v1618 = vmin.f32 %v1518, 20.0
  %v1619 = vmin.f32 %v1519, 20.0
  %v1620 = vmin.f32 %v1520, 20.0
  %v1621 = vmin.f32 %v1521, 20.0
  %v1622 = vmin.f32 %v1522, 20.0
  %v1623 = vmin.f32 %v1523, 20.0
  %v1624 = vmin.f32 %v1524, 20.0
  %v1625 = vmin.f32 %v1525, 20.0
  %v1626 = vmin.f32 %v1526, 20.0
  %v1627 = vmin.f32 %v1527, 20.0
  %v1628 = vmin.f32 %v1528, 20.0
  %v1629 = vmin.f32 %v1529, 20.0
  %v1630 = vmin.f32 %v1530, 20.0
  %v1631 = vmin.f32 %v1531, 20.0
  %v1632 = vmin.f32 %v1532, 20.0
  %v1633 = vmin.f32 %v1533, 20.0
  %v1634 = vmin.f32 %v1534, 20.0
  %v1635 = vmin.f32 %v1535, 20.0
  %v1636 = vmin.f32 %v1536, 20.0
  %v1637 = vmin.f32 %v1537, 20.0
  %v1638 = vmin.f32 %v1538, 20.0
  %v1639 = vmin.f32 %v1539, 20.0
  %v1640 = vmin.f32 %v1540, 20.0
  %v1641 = vmin.f32 %v1541, 20.0
  %v1642 = vmin.f32 %v1542, 20.0
  %v1643 = vmin.f32 %v1543, 20.0
  %v1644 = vmin.f32 %v1544, 20.0
  %v1645 = vmin.f32 %v1545, 20.0
  %v1646 = vmin.f32 %v1546, 20.0
  %v1647 = vmin.f32 %v1547, 20.0
  %v1648 = vmin.f32 %v1548, 20.0
  %v1649 = vmin.f32 %v1549, 20.0
  %v1650 = vmin.f32 %v1550, 20.0
  %v1651 = vmin.f32 %v1551, 20.0
  %v1652 = vmin.f32 %v1552, 20.0
  %v1653 = vmin.f32 %v1553, 20.0
  %v1654 = vmin.f32 %v1554, 20.0
  %v1655 = vmin.f32 %v1555, 20.0
  %v1656 = vmin.f32 %v1556, 20.0
  %v1657 = vmin.f32 %v1557, 20.0
  %v1658 = vmin.f32 %v1558, 20.0
  %v1659 = vmin.f32 %v1559, 20.0
  %v1660 = vmin.f32 %v1560, 20.0
  %v1661 = vmin.f32 %v1561, 20.0
  %v1662 = vmin.f32 %v1562, 20.0
  %v1663 = vmin.f32 %v1563, 20.0
  %v1664 = vmin.f32 %v1564, 20.0
  %v1665 = vmin.f32 %v1565, 20.0
  %v1666 = vmin.f32 %v1566, 20.0
  %v1667 = vmin.f32 %v1567, 20.0
  %v1668 = vmin.f32 %v1568, 20.0
  %v1669 = vmin.f32 %v1569, 20.0
  %v1670 = vmin.f32 %v1570, 20.0
  %v1671 = vmin.f32 %v1571, 20.0
  %v1672 = vmin.f32 %v1572, 20.0
  %v1673 = vmin.f32 %v1573, 20.0
  %v1674 = vmin.f32 %v1574, 20.0
  %v1675 = vmin.f32 %v1575, 20.0
  %v1676 = vmin.f32 %v1576, 20.0
  %v1677 = vmin.f32 %v1577, 20.0
  %v1678 = vmin.f32 %v1578, 20.0
  %v1679 = vmin.f32 %v1579, 20.0
  %v1680 = vmin.f32 %v1580, 20.0
  %v1681 = vmin.f32 %v1581, 20.0
  %v1682 = vmin.f32 %v1582, 20.0
  %v1683 = vmin.f32 %v1583, 20.0
  %v1684 = vmin.f32 %v1584, 20.0
  %v1685 = vmin.f32 %v1585, 20.0
  %v1686 = vmin.f32 %v1586, 20.0
  %v1687 = vmin.f32 %v1587, 20.0
  %v1688 = vmin.f32 %v1588, 20.0
  %v1689 = vmin.f32 %v1589, 20.0
  %v1690 = vmin.f32 %v1590, 20.0
  %v1691 = vmin.f32 %v1591, 20.0
  %v1692 = vmin.f32 %v1592, 20.0
  %v1693 = vmul.f32 %v1593, 1.442695
  %v1694 = vpow.pop %v1693
  %v1695 = vmul.f32 %v1594, 1.442695
  %v1696 = vpow.pop %v1695
  %v1697 = vmul.f32 %v1595, 1.442695
  %v1698 = vpow.pop %v1697
  %v1699 = vmul.f32 %v1596, 1.442695
  %v1700 = vpow.pop %v1699
  %v1701 = vmul.f32 %v1597, 1.442695
  %v1702 = vpow.pop %v1701
  %v1703 = vmul.f32 %v1598, 1.442695
  %v1704 = vpow.pop %v1703
  %v1705 = vmul.f32 %v1599, 1.442695
  %v1706 = vpow.pop %v1705
  %v1707 = vmul.f32 %v1600, 1.442695
  %v1708 = vpow.pop %v1707
  %v1709 = vmul.f32 %v1601, 1.442695
  %v1710 = vpow.pop %v1709
  %v1711 = vmul.f32 %v1602, 1.442695
  %v1712 = vpow.pop %v1711
  %v1713 = vmul.f32 %v1603, 1.442695
  %v1714 = vpow.pop %v1713
  %v1715 = vmul.f32 %v1604, 1.442695
  %v1716 = vpow.pop %v1715
  %v1717 = vmul.f32 %v1605, 1.442695
  %v1718 = vpow.pop %v1717
  %v1719 = vmul.f32 %v1606, 1.442695
  %v1720 = vpow.pop %v1719
  %v1721 = vmul.f32 %v1607, 1.442695
  %v1722 = vpow.pop %v1721
  %v1723 = vmul.f32 %v1608, 1.442695
  %v1724 = vpow.pop %v1723
  %v1725 = vmul.f32 %v1609, 1.442695
  %v1726 = vpow.pop %v1725
  %v1727 = vmul.f32 %v1610, 1.442695
  %v1728 = vpow.pop %v1727
  %v1729 = vmul.f32 %v1611, 1.442695
  %v1730 = vpow.pop %v1729
  %v1731 = vmul.f32 %v1612, 1.442695
  %v1732 = vpow.pop %v1731
  %v1733 = vmul.f32 %v1613, 1.442695
  %v1734 = vpow.pop %v1733
  %v1735 = vmul.f32 %v1614, 1.442695
  %v1736 = vpow.pop %v1735
  %v1737 = vmul.f32 %v1615, 1.442695
  %v1738 = vpow.pop %v1737
  %v1739 = vmul.f32 %v1616, 1.442695
  %v1740 = vpow.pop %v1739
  %v1741 = vmul.f32 %v1617, 1.442695
  %v1742 = vpow.pop %v1741
  %v1743 = vmul.f32 %v1618, 1.442695
  %v1744 = vpow.pop %v1743
  %v1745 = vmul.f32 %v1619, 1.442695
  %v1746 = vpow.pop %v1745
  %v1747 = vmul.f32 %v1620, 1.442695
  %v1748 = vpow.pop %v1747
  %v1749 = vmul.f32 %v1621, 1.442695
  %v1750 = vpow.pop %v1749
  %v1751 = vmul.f32 %v1622, 1.442695
  %v1752 = vpow.pop %v1751
  %v1753 = vmul.f32 %v1623, 1.442695
  %v1754 = vpow.pop %v1753
  %v1755 = vmul.f32 %v1624, 1.442695
  %v1756 = vpow.pop %v1755
  %v1757 = vmul.f32 %v1625, 1.442695
  %v1758 = vpow.pop %v1757
  %v1759 = vmul.f32 %v1626, 1.442695
  %v1760 = vpow.pop %v1759
  %v1761 = vmul.f32 %v1627, 1.442695
  %v1762 = vpow.pop %v1761
  %v1763 = vmul.f32 %v1628, 1.442695
  %v1764 = vpow.pop %v1763
  %v1765 = vmul.f32 %v1629, 1.442695
  %v1766 = vpow.pop %v1765
  %v1767 = vmul.f32 %v1630, 1.442695
  %v1768 = vpow.pop %v1767
  %v1769 = vmul.f32 %v1631, 1.442695
  %v1770 = vpow.pop %v1769
  %v1771 = vmul.f32 %v1632, 1.442695
  %v1772 = vpow.pop %v1771
  %v1773 = vmul.f32 %v1633, 1.442695
  %v1774 = vpow.pop %v1773
  %v1775 = vmul.f32 %v1634, 1.442695
  %v1776 = vpow.pop %v1775
  %v1777 = vmul.f32 %v1635, 1.442695
  %v1778 = vpow.pop %v1777
  %v1779 = vmul.f32 %v1636, 1.442695
  %v1780 = vpow.pop %v1779
  %v1781 = vmul.f32 %v1637, 1.442695
  %v1782 = vpow.pop %v1781
  %v1783 = vmul.f32 %v1638, 1.442695
  %v1784 = vpow.pop %v1783
  %v1785 = vmul.f32 %v1639, 1.442695
  %v1786 = vpow.pop %v1785
  %v1787 = vmul.f32 %v1640, 1.442695
  %v1788 = vpow.pop %v1787
  %v1789 = vmul.f32 %v1641, 1.442695
  %v1790 = vpow.pop %v1789
  %v1791 = vmul.f32 %v1642, 1.442695
  %v1792 = vpow.pop %v1791
  %v1793 = vmul.f32 %v1643, 1.442695
  %v1794 = vpow.pop %v1793
  %v1795 = vmul.f32 %v1644, 1.442695
  %v1796 = vpow.pop %v1795
  %v1797 = vmul.f32 %v1645, 1.442695
  %v1798 = vpow.pop %v1797
  %v1799 = vmul.f32 %v1646, 1.442695
  %v1800 = vpow.pop %v1799
  %v1801 = vmul.f32 %v1647, 1.442695
  %v1802 = vpow.pop %v1801
  %v1803 = vmul.f32 %v1648, 1.442695
  %v1804 = vpow.pop %v1803
  %v1805 = vmul.f32 %v1649, 1.442695
  %v1806 = vpow.pop %v1805
  %v1807 = vmul.f32 %v1650, 1.442695
  %v1808 = vpow.pop %v1807
  %v1809 = vmul.f32 %v1651, 1.442695
  %v1810 = vpow.pop %v1809
  %v1811 = vmul.f32 %v1652, 1.442695
  %v1812 = vpow.pop %v1811
  %v1813 = vmul.f32 %v1653, 1.442695
  %v1814 = vpow.pop %v1813
  %v1815 = vmul.f32 %v1654, 1.442695
  %v1816 = vpow.pop %v1815
  %v1817 = vmul.f32 %v1655, 1.442695
  %v1818 = vpow.pop %v1817
  %v1819 = vmul.f32 %v1656, 1.442695
  %v1820 = vpow.pop %v1819
  %v1821 = vmul.f32 %v1657, 1.442695
  %v1822 = vpow.pop %v1821
  %v1823 = vmul.f32 %v1658, 1.442695
  %v1824 = vpow.pop %v1823
  %v1825 = vmul.f32 %v1659, 1.442695
  %v1826 = vpow.pop %v1825
  %v1827 = vmul.f32 %v1660, 1.442695
  %v1828 = vpow.pop %v1827
  %v1829 = vmul.f32 %v1661, 1.442695
  %v1830 = vpow.pop %v1829
  %v1831 = vmul.f32 %v1662, 1.442695
  %v1832 = vpow.pop %v1831
  %v1833 = vmul.f32 %v1663, 1.442695
  %v1834 = vpow.pop %v1833
  %v1835 = vmul.f32 %v1664, 1.442695
  %v1836 = vpow.pop %v1835
  %v1837 = vmul.f32 %v1665, 1.442695
  %v1838 = vpow.pop %v1837
  %v1839 = vmul.f32 %v1666, 1.442695
  %v1840 = vpow.pop %v1839
  %v1841 = vmul.f32 %v1667, 1.442695
  %v1842 = vpow.pop %v1841
  %v1843 = vmul.f32 %v1668, 1.442695
  %v1844 = vpow.pop %v1843
  %v1845 = vmul.f32 %v1669, 1.442695
  %v1846 = vpow.pop %v1845
  %v1847 = vmul.f32 %v1670, 1.442695
  %v1848 = vpow.pop %v1847
  %v1849 = vmul.f32 %v1671, 1.442695
  %v1850 = vpow.pop %v1849
  %v1851 = vmul.f32 %v1672, 1.442695
  %v1852 = vpow.pop %v1851
  %v1853 = vmul.f32 %v1673, 1.442695
  %v1854 = vpow.pop %v1853
  %v1855 = vmul.f32 %v1674, 1.442695
  %v1856 = vpow.pop %v1855
  %v1857 = vmul.f32 %v1675, 1.442695
  %v1858 = vpow.pop %v1857
  %v1859 = vmul.f32 %v1676, 1.442695
  %v1860 = vpow.pop %v1859
  %v1861 = vmul.f32 %v1677, 1.442695
  %v1862 = vpow.pop %v1861
  %v1863 = vmul.f32 %v1678, 1.442695
  %v1864 = vpow.pop %v1863
  %v1865 = vmul.f32 %v1679, 1.442695
  %v1866 = vpow.pop %v1865
  %v1867 = vmul.f32 %v1680, 1.442695
  %v1868 = vpow.pop %v1867
  %v1869 = vmul.f32 %v1681, 1.442695
  %v1870 = vpow.pop %v1869
  %v1871 = vmul.f32 %v1682, 1.442695
  %v1872 = vpow.pop %v1871
  %v1873 = vmul.f32 %v1683, 1.442695
  %v1874 = vpow.pop %v1873
  %v1875 = vmul.f32 %v1684, 1.442695
  %v1876 = vpow.pop %v1875
  %v1877 = vmul.f32 %v1685, 1.442695
  %v1878 = vpow.pop %v1877
  %v1879 = vmul.f32 %v1686, 1.442695
  %v1880 = vpow.pop %v1879
  %v1881 = vmul.f32 %v1687, 1.442695
  %v1882 = vpow.pop %v1881
  %v1883 = vmul.f32 %v1688, 1.442695
  %v1884 = vpow.pop %v1883
  %v1885 = vmul.f32 %v1689, 1.442695
  %v1886 = vpow.pop %v1885
  %v1887 = vmul.f32 %v1690, 1.442695
  %v1888 = vpow.pop %v1887
  %v1889 = vmul.f32 %v1691, 1.442695
  %v1890 = vpow.pop %v1889
  %v1891 = vmul.f32 %v1692, 1.442695
  %v1892 = vpow.pop %v1891
  %v1893 = vadd.f32 %v1694, 2.0
  %v1894 = vadd.f32 %v1696, 2.0
  %v1895 = vadd.f32 %v1698, 2.0
  %v1896 = vadd.f32 %v1700, 2.0
  %v1897 = vadd.f32 %v1702, 2.0
  %v1898 = vadd.f32 %v1704, 2.0
  %v1899 = vadd.f32 %v1706, 2.0
  %v1900 = vadd.f32 %v1708, 2.0
  %v1901 = vadd.f32 %v1710, 2.0
  %v1902 = vadd.f32 %v1712, 2.0
  %v1903 = vadd.f32 %v1714, 2.0
  %v1904 = vadd.f32 %v1716, 2.0
  %v1905 = vadd.f32 %v1718, 2.0
  %v1906 = vadd.f32 %v1720, 2.0
  %v1907 = vadd.f32 %v1722, 2.0
  %v1908 = vadd.f32 %v1724, 2.0
  %v1909 = vadd.f32 %v1726, 2.0
  %v1910 = vadd.f32 %v1728, 2.0
  %v1911 = vadd.f32 %v1730, 2.0
  %v1912 = vadd.f32 %v1732, 2.0
  %v1913 = vadd.f32 %v1734, 2.0
  %v1914 = vadd.f32 %v1736, 2.0
  %v1915 = vadd.f32 %v1738, 2.0
  %v1916 = vadd.f32 %v1740, 2.0
  %v1917 = vadd.f32 %v1742, 2.0
  %v1918 = vadd.f32 %v1744, 2.0
  %v1919 = vadd.f32 %v1746, 2.0
  %v1920 = vadd.f32 %v1748, 2.0
  %v1921 = vadd.f32 %v1750, 2.0
  %v1922 = vadd.f32 %v1752, 2.0
  %v1923 = vadd.f32 %v1754, 2.0
  %v1924 = vadd.f32 %v1756, 2.0
  %v1925 = vadd.f32 %v1758, 2.0
  %v1926 = vadd.f32 %v1760, 2.0
  %v1927 = vadd.f32 %v1762, 2.0
  %v1928 = vadd.f32 %v1764, 2.0
  %v1929 = vadd.f32 %v1766, 2.0
  %v1930 = vadd.f32 %v1768, 2.0
  %v1931 = vadd.f32 %v1770, 2.0
  %v1932 = vadd.f32 %v1772, 2.0
  %v1933 = vadd.f32 %v1774, 2.0
  %v1934 = vadd.f32 %v1776, 2.0
  %v1935 = vadd.f32 %v1778, 2.0
  %v1936 = vadd.f32 %v1780, 2.0
  %v1937 = vadd.f32 %v1782, 2.0
  %v1938 = vadd.f32 %v1784, 2.0
  %v1939 = vadd.f32 %v1786, 2.0
  %v1940 = vadd.f32 %v1788, 2.0
  %v1941 = vadd.f32 %v1790, 2.0
  %v1942 = vadd.f32 %v1792, 2.0
  %v1943 = vadd.f32 %v1794, 2.0
  %v1944 = vadd.f32 %v1796, 2.0
  %v1945 = vadd.f32 %v1798, 2.0
  %v1946 = vadd.f32 %v1800, 2.0
  %v1947 = vadd.f32 %v1802, 2.0
  %v1948 = vadd.f32 %v1804, 2.0
  %v1949 = vadd.f32 %v1806, 2.0
  %v1950 = vadd.f32 %v1808, 2.0
  %v1951 = vadd.f32 %v1810, 2.0
  %v1952 = vadd.f32 %v1812, 2.0
  %v1953 = vadd.f32 %v1814, 2.0
  %v1954 = vadd.f32 %v1816, 2.0
  %v1955 = vadd.f32 %v1818, 2.0
  %v1956 = vadd.f32 %v1820, 2.0
  %v1957 = vadd.f32 %v1822, 2.0
  %v1958 = vadd.f32 %v1824, 2.0
  %v1959 = vadd.f32 %v1826, 2.0
  %v1960 = vadd.f32 %v1828, 2.0
  %v1961 = vadd.f32 %v1830, 2.0
  %v1962 = vadd.f32 %v1832, 2.0
  %v1963 = vadd.f32 %v1834, 2.0
  %v1964 = vadd.f32 %v1836, 2.0
  %v1965 = vadd.f32 %v1838, 2.0
  %v1966 = vadd.f32 %v1840, 2.0
  %v1967 = vadd.f32 %v1842, 2.0
  %v1968 = vadd.f32 %v1844, 2.0
  %v1969 = vadd.f32 %v1846, 2.0
  %v1970 = vadd.f32 %v1848, 2.0
  %v1971 = vadd.f32 %v1850, 2.0
  %v1972 = vadd.f32 %v1852, 2.0
  %v1973 = vadd.f32 %v1854, 2.0
  %v1974 = vadd.f32 %v1856, 2.0
  %v1975 = vadd.f32 %v1858, 2.0
  %v1976 = vadd.f32 %v1860, 2.0
  %v1977 = vadd.f32 %v1862, 2.0
  %v1978 = vadd.f32 %v1864, 2.0
  %v1979 = vadd.f32 %v1866, 2.0
  %v1980 = vadd.f32 %v1868, 2.0
  %v1981 = vadd.f32 %v1870, 2.0
  %v1982 = vadd.f32 %v1872, 2.0
  %v1983 = vadd.f32 %v1874, 2.0
  %v1984 = vadd.f32 %v1876, 2.0
  %v1985 = vadd.f32 %v1878, 2.0
  %v1986 = vadd.f32 %v1880, 2.0
  %v1987 = vadd.f32 %v1882, 2.0
  %v1988 = vadd.f32 %v1884, 2.0
  %v1989 = vadd.f32 %v1886, 2.0
  %v1990 = vadd.f32 %v1888, 2.0
  %v1991 = vadd.f32 %v1890, 2.0
  %v1992 = vadd.f32 %v1892, 2.0
  %v1993 = vmul.f32 %v1694, %v1893
  %v1994 = vmul.f32 %v1696, %v1894
  %v1995 = vmul.f32 %v1698, %v1895
  %v1996 = vmul.f32 %v1700, %v1896
  %v1997 = vmul.f32 %v1702, %v1897
  %v1998 = vmul.f32 %v1704, %v1898
  %v1999 = vmul.f32 %v1706, %v1899
  %v2000 = vmul.f32 %v1708, %v1900
  %v2001 = vmul.f32 %v1710, %v1901
  %v2002 = vmul.f32 %v1712, %v1902
  %v2003 = vmul.f32 %v1714, %v1903
  %v2004 = vmul.f32 %v1716, %v1904
  %v2005 = vmul.f32 %v1718, %v1905
  %v2006 = vmul.f32 %v1720, %v1906
  %v2007 = vmul.f32 %v1722, %v1907
  %v2008 = vmul.f32 %v1724, %v1908
  %v2009 = vmul.f32 %v1726, %v1909
  %v2010 = vmul.f32 %v1728, %v1910
  %v2011 = vmul.f32 %v1730, %v1911
  %v2012 = vmul.f32 %v1732, %v1912
  %v2013 = vmul.f32 %v1734, %v1913
  %v2014 = vmul.f32 %v1736, %v1914
  %v2015 = vmul.f32 %v1738, %v1915
  %v2016 = vmul.f32 %v1740, %v1916
  %v2017 = vmul.f32 %v1742, %v1917
  %v2018 = vmul.f32 %v1744, %v1918
  %v2019 = vmul.f32 %v1746, %v1919
  %v2020 = vmul.f32 %v1748, %v1920
  %v2021 = vmul.f32 %v1750, %v1921
  %v2022 = vmul.f32 %v1752, %v1922
  %v2023 = vmul.f32 %v1754, %v1923
  %v2024 = vmul.f32 %v1756, %v1924
  %v2025 = vmul.f32 %v1758, %v1925
  %v2026 = vmul.f32 %v1760, %v1926
  %v2027 = vmul.f32 %v1762, %v1927
  %v2028 = vmul.f32 %v1764, %v1928
  %v2029 = vmul.f32 %v1766, %v1929
  %v2030 = vmul.f32 %v1768, %v1930
  %v2031 = vmul.f32 %v1770, %v1931
  %v2032 = vmul.f32 %v1772, %v1932
  %v2033 = vmul.f32 %v1774, %v1933
  %v2034 = vmul.f32 %v1776, %v1934
  %v2035 = vmul.f32 %v1778, %v1935
  %v2036 = vmul.f32 %v1780, %v1936
  %v2037 = vmul.f32 %v1782, %v1937
  %v2038 = vmul.f32 %v1784, %v1938
  %v2039 = vmul.f32 %v1786, %v1939
  %v2040 = vmul.f32 %v1788, %v1940
  %v2041 = vmul.f32 %v1790, %v1941
  %v2042 = vmul.f32 %v1792, %v1942
  %v2043 = vmul.f32 %v1794, %v1943
  %v2044 = vmul.f32 %v1796, %v1944
  %v2045 = vmul.f32 %v1798, %v1945
  %v2046 = vmul.f32 %v1800, %v1946
  %v2047 = vmul.f32 %v1802, %v1947
  %v2048 = vmul.f32 %v1804, %v1948
  %v2049 = vmul.f32 %v1806, %v1949
  %v2050 = vmul.f32 %v1808, %v1950
  %v2051 = vmul.f32 %v1810, %v1951
  %v2052 = vmul.f32 %v1812, %v1952
  %v2053 = vmul.f32 %v1814, %v1953
  %v2054 = vmul.f32 %v1816, %v1954
  %v2055 = vmul.f32 %v1818, %v1955
  %v2056 = vmul.f32 %v1820, %v1956
  %v2057 = vmul.f32 %v1822, %v1957
  %v2058 = vmul.f32 %v1824, %v1958
  %v2059 = vmul.f32 %v1826, %v1959
  %v2060 = vmul.f32 %v1828, %v1960
  %v2061 = vmul.f32 %v1830, %v1961
  %v2062 = vmul.f32 %v1832, %v1962
  %v2063 = vmul.f32 %v1834, %v1963
  %v2064 = vmul.f32 %v1836, %v1964
  %v2065 = vmul.f32 %v1838, %v1965
  %v2066 = vmul.f32 %v1840, %v1966
  %v2067 = vmul.f32 %v1842, %v1967
  %v2068 = vmul.f32 %v1844, %v1968
  %v2069 = vmul.f32 %v1846, %v1969
  %v2070 = vmul.f32 %v1848, %v1970
  %v2071 = vmul.f32 %v1850, %v1971
  %v2072 = vmul.f32 %v1852, %v1972
  %v2073 = vmul.f32 %v1854, %v1973
  %v2074 = vmul.f32 %v1856, %v1974
  %v2075 = vmul.f32 %v1858, %v1975
  %v2076 = vmul.f32 %v1860, %v1976
  %v2077 = vmul.f32 %v1862, %v1977
  %v2078 = vmul.f32 %v1864, %v1978
  %v2079 = vmul.f32 %v1866, %v1979
  %v2080 = vmul.f32 %v1868, %v1980
  %v2081 = vmul.f32 %v1870, %v1981
  %v2082 = vmul.f32 %v1872, %v1982
  %v2083 = vmul.f32 %v1874, %v1983
  %v2084 = vmul.f32 %v1876, %v1984
  %v2085 = vmul.f32 %v1878, %v1985
  %v2086 = vmul.f32 %v1880, %v1986
  %v2087 = vmul.f32 %v1882, %v1987
  %v2088 = vmul.f32 %v1884, %v1988
  %v2089 = vmul.f32 %v1886, %v1989
  %v2090 = vmul.f32 %v1888, %v1990
  %v2091 = vmul.f32 %v1890, %v1991
  %v2092 = vmul.f32 %v1892, %v1992
  %vm2093 = vcmp.gt.f32.partialorder %v1493, 20.0
  %vm2094 = vcmp.gt.f32.partialorder %v1494, 20.0
  %vm2095 = vcmp.gt.f32.partialorder %v1495, 20.0
  %vm2096 = vcmp.gt.f32.partialorder %v1496, 20.0
  %vm2097 = vcmp.gt.f32.partialorder %v1497, 20.0
  %vm2098 = vcmp.gt.f32.partialorder %v1498, 20.0
  %vm2099 = vcmp.gt.f32.partialorder %v1499, 20.0
  %vm2100 = vcmp.gt.f32.partialorder %v1500, 20.0
  %vm2101 = vcmp.gt.f32.partialorder %v1501, 20.0
  %vm2102 = vcmp.gt.f32.partialorder %v1502, 20.0
  %vm2103 = vcmp.gt.f32.partialorder %v1503, 20.0
  %vm2104 = vcmp.gt.f32.partialorder %v1504, 20.0
  %vm2105 = vcmp.gt.f32.partialorder %v1505, 20.0
  %vm2106 = vcmp.gt.f32.partialorder %v1506, 20.0
  %vm2107 = vcmp.gt.f32.partialorder %v1507, 20.0
  %vm2108 = vcmp.gt.f32.partialorder %v1508, 20.0
  %vm2109 = vcmp.gt.f32.partialorder %v1509, 20.0
  %vm2110 = vcmp.gt.f32.partialorder %v1510, 20.0
  %vm2111 = vcmp.gt.f32.partialorder %v1511, 20.0
  %vm2112 = vcmp.gt.f32.partialorder %v1512, 20.0
  %vm2113 = vcmp.gt.f32.partialorder %v1513, 20.0
  %vm2114 = vcmp.gt.f32.partialorder %v1514, 20.0
  %vm2115 = vcmp.gt.f32.partialorder %v1515, 20.0
  %vm2116 = vcmp.gt.f32.partialorder %v1516, 20.0
  %vm2117 = vcmp.gt.f32.partialorder %v1517, 20.0
  %vm2118 = vcmp.gt.f32.partialorder %v1518, 20.0
  %vm2119 = vcmp.gt.f32.partialorder %v1519, 20.0
  %vm2120 = vcmp.gt.f32.partialorder %v1520, 20.0
  %vm2121 = vcmp.gt.f32.partialorder %v1521, 20.0
  %vm2122 = vcmp.gt.f32.partialorder %v1522, 20.0
  %vm2123 = vcmp.gt.f32.partialorder %v1523, 20.0
  %vm2124 = vcmp.gt.f32.partialorder %v1524, 20.0
  %vm2125 = vcmp.gt.f32.partialorder %v1525, 20.0
  %vm2126 = vcmp.gt.f32.partialorder %v1526, 20.0
  %vm2127 = vcmp.gt.f32.partialorder %v1527, 20.0
  %vm2128 = vcmp.gt.f32.partialorder %v1528, 20.0
  %vm2129 = vcmp.gt.f32.partialorder %v1529, 20.0
  %vm2130 = vcmp.gt.f32.partialorder %v1530, 20.0
  %vm2131 = vcmp.gt.f32.partialorder %v1531, 20.0
  %vm2132 = vcmp.gt.f32.partialorder %v1532, 20.0
  %vm2133 = vcmp.gt.f32.partialorder %v1533, 20.0
  %vm2134 = vcmp.gt.f32.partialorder %v1534, 20.0
  %vm2135 = vcmp.gt.f32.partialorder %v1535, 20.0
  %vm2136 = vcmp.gt.f32.partialorder %v1536, 20.0
  %vm2137 = vcmp.gt.f32.partialorder %v1537, 20.0
  %vm2138 = vcmp.gt.f32.partialorder %v1538, 20.0
  %vm2139 = vcmp.gt.f32.partialorder %v1539, 20.0
  %vm2140 = vcmp.gt.f32.partialorder %v1540, 20.0
  %vm2141 = vcmp.gt.f32.partialorder %v1541, 20.0
  %vm2142 = vcmp.gt.f32.partialorder %v1542, 20.0
  %vm2143 = vcmp.gt.f32.partialorder %v1543, 20.0
  %vm2144 = vcmp.gt.f32.partialorder %v1544, 20.0
  %vm2145 = vcmp.gt.f32.partialorder %v1545, 20.0
  %vm2146 = vcmp.gt.f32.partialorder %v1546, 20.0
  %vm2147 = vcmp.gt.f32.partialorder %v1547, 20.0
  %vm2148 = vcmp.gt.f32.partialorder %v1548, 20.0
  %vm2149 = vcmp.gt.f32.partialorder %v1549, 20.0
  %vm2150 = vcmp.gt.f32.partialorder %v1550, 20.0
  %vm2151 = vcmp.gt.f32.partialorder %v1551, 20.0
  %vm2152 = vcmp.gt.f32.partialorder %v1552, 20.0
  %vm2153 = vcmp.gt.f32.partialorder %v1553, 20.0
  %vm2154 = vcmp.gt.f32.partialorder %v1554, 20.0
  %vm2155 = vcmp.gt.f32.partialorder %v1555, 20.0
  %vm2156 = vcmp.gt.f32.partialorder %v1556, 20.0
  %vm2157 = vcmp.gt.f32.partialorder %v1557, 20.0
  %vm2158 = vcmp.gt.f32.partialorder %v1558, 20.0
  %vm2159 = vcmp.gt.f32.partialorder %v1559, 20.0
  %vm2160 = vcmp.gt.f32.partialorder %v1560, 20.0
  %vm2161 = vcmp.gt.f32.partialorder %v1561, 20.0
  %vm2162 = vcmp.gt.f32.partialorder %v1562, 20.0
  %vm2163 = vcmp.gt.f32.partialorder %v1563, 20.0
  %vm2164 = vcmp.gt.f32.partialorder %v1564, 20.0
  %vm2165 = vcmp.gt.f32.partialorder %v1565, 20.0
  %vm2166 = vcmp.gt.f32.partialorder %v1566, 20.0
  %vm2167 = vcmp.gt.f32.partialorder %v1567, 20.0
  %vm2168 = vcmp.gt.f32.partialorder %v1568, 20.0
  %vm2169 = vcmp.gt.f32.partialorder %v1569, 20.0
  %vm2170 = vcmp.gt.f32.partialorder %v1570, 20.0
  %vm2171 = vcmp.gt.f32.partialorder %v1571, 20.0
  %vm2172 = vcmp.gt.f32.partialorder %v1572, 20.0
  %vm2173 = vcmp.gt.f32.partialorder %v1573, 20.0
  %vm2174 = vcmp.gt.f32.partialorder %v1574, 20.0
  %vm2175 = vcmp.gt.f32.partialorder %v1575, 20.0
  %vm2176 = vcmp.gt.f32.partialorder %v1576, 20.0
  %vm2177 = vcmp.gt.f32.partialorder %v1577, 20.0
  %vm2178 = vcmp.gt.f32.partialorder %v1578, 20.0
  %vm2179 = vcmp.gt.f32.partialorder %v1579, 20.0
  %vm2180 = vcmp.gt.f32.partialorder %v1580, 20.0
  %vm2181 = vcmp.gt.f32.partialorder %v1581, 20.0
  %vm2182 = vcmp.gt.f32.partialorder %v1582, 20.0
  %vm2183 = vcmp.gt.f32.partialorder %v1583, 20.0
  %vm2184 = vcmp.gt.f32.partialorder %v1584, 20.0
  %vm2185 = vcmp.gt.f32.partialorder %v1585, 20.0
  %vm2186 = vcmp.gt.f32.partialorder %v1586, 20.0
  %vm2187 = vcmp.gt.f32.partialorder %v1587, 20.0
  %vm2188 = vcmp.gt.f32.partialorder %v1588, 20.0
  %vm2189 = vcmp.gt.f32.partialorder %v1589, 20.0
  %vm2190 = vcmp.gt.f32.partialorder %v1590, 20.0
  %vm2191 = vcmp.gt.f32.partialorder %v1591, 20.0
  %vm2192 = vcmp.gt.f32.partialorder %v1592, 20.0
  %v2193 = vmul.f32 %v1493, %v1993
  %v2194 = vmul.f32 %v1494, %v1994
  %v2195 = vmul.f32 %v1495, %v1995
  %v2196 = vmul.f32 %v1496, %v1996
  %v2197 = vmul.f32 %v1497, %v1997
  %v2198 = vmul.f32 %v1498, %v1998
  %v2199 = vmul.f32 %v1499, %v1999
  %v2200 = vmul.f32 %v1500, %v2000
  %v2201 = vmul.f32 %v1501, %v2001
  %v2202 = vmul.f32 %v1502, %v2002
  %v2203 = vmul.f32 %v1503, %v2003
  %v2204 = vmul.f32 %v1504, %v2004
  %v2205 = vmul.f32 %v1505, %v2005
  %v2206 = vmul.f32 %v1506, %v2006
  %v2207 = vmul.f32 %v1507, %v2007
  %v2208 = vmul.f32 %v1508, %v2008
  %v2209 = vmul.f32 %v1509, %v2009
  %v2210 = vmul.f32 %v1510, %v2010
  %v2211 = vmul.f32 %v1511, %v2011
  %v2212 = vmul.f32 %v1512, %v2012
  %v2213 = vmul.f32 %v1513, %v2013
  %v2214 = vmul.f32 %v1514, %v2014
  %v2215 = vmul.f32 %v1515, %v2015
  %v2216 = vmul.f32 %v1516, %v2016
  %v2217 = vmul.f32 %v1517, %v2017
  %v2218 = vmul.f32 %v1518, %v2018
  %v2219 = vmul.f32 %v1519, %v2019
  %v2220 = vmul.f32 %v1520, %v2020
  %v2221 = vmul.f32 %v1521, %v2021
  %v2222 = vmul.f32 %v1522, %v2022
  %v2223 = vmul.f32 %v1523, %v2023
  %v2224 = vmul.f32 %v1524, %v2024
  %v2225 = vmul.f32 %v1525, %v2025
  %v2226 = vmul.f32 %v1526, %v2026
  %v2227 = vmul.f32 %v1527, %v2027
  %v2228 = vmul.f32 %v1528, %v2028
  %v2229 = vmul.f32 %v1529, %v2029
  %v2230 = vmul.f32 %v1530, %v2030
  %v2231 = vmul.f32 %v1531, %v2031
  %v2232 = vmul.f32 %v1532, %v2032
  %v2233 = vmul.f32 %v1533, %v2033
  %v2234 = vmul.f32 %v1534, %v2034
  %v2235 = vmul.f32 %v1535, %v2035
  %v2236 = vmul.f32 %v1536, %v2036
  %v2237 = vmul.f32 %v1537, %v2037
  %v2238 = vmul.f32 %v1538, %v2038
  %v2239 = vmul.f32 %v1539, %v2039
  %v2240 = vmul.f32 %v1540, %v2040
  %v2241 = vmul.f32 %v1541, %v2041
  %v2242 = vmul.f32 %v1542, %v2042
  %v2243 = vmul.f32 %v1543, %v2043
  %v2244 = vmul.f32 %v1544, %v2044
  %v2245 = vmul.f32 %v1545, %v2045
  %v2246 = vmul.f32 %v1546, %v2046
  %v2247 = vmul.f32 %v1547, %v2047
  %v2248 = vmul.f32 %v1548, %v2048
  %v2249 = vmul.f32 %v1549, %v2049
  %v2250 = vmul.f32 %v1550, %v2050
  %v2251 = vmul.f32 %v1551, %v2051
  %v2252 = vmul.f32 %v1552, %v2052
  %v2253 = vmul.f32 %v1553, %v2053
  %v2254 = vmul.f32 %v1554, %v2054
  %v2255 = vmul.f32 %v1555, %v2055
  %v2256 = vmul.f32 %v1556, %v2056
  %v2257 = vmul.f32 %v1557, %v2057
  %v2258 = vmul.f32 %v1558, %v2058
  %v2259 = vmul.f32 %v1559, %v2059
  %v2260 = vmul.f32 %v1560, %v2060
  %v2261 = vmul.f32 %v1561, %v2061
  %v2262 = vmul.f32 %v1562, %v2062
  %v2263 = vmul.f32 %v1563, %v2063
  %v2264 = vmul.f32 %v1564, %v2064
  %v2265 = vmul.f32 %v1565, %v2065
  %v2266 = vmul.f32 %v1566, %v2066
  %v2267 = vmul.f32 %v1567, %v2067
  %v2268 = vmul.f32 %v1568, %v2068
  %v2269 = vmul.f32 %v1569, %v2069
  %v2270 = vmul.f32 %v1570, %v2070
  %v2271 = vmul.f32 %v1571, %v2071
  %v2272 = vmul.f32 %v1572, %v2072
  %v2273 = vmul.f32 %v1573, %v2073
  %v2274 = vmul.f32 %v1574, %v2074
  %v2275 = vmul.f32 %v1575, %v2075
  %v2276 = vmul.f32 %v1576, %v2076
  %v2277 = vmul.f32 %v1577, %v2077
  %v2278 = vmul.f32 %v1578, %v2078
  %v2279 = vmul.f32 %v1579, %v2079
  %v2280 = vmul.f32 %v1580, %v2080
  %v2281 = vmul.f32 %v1581, %v2081
  %v2282 = vmul.f32 %v1582, %v2082
  %v2283 = vmul.f32 %v1583, %v2083
  %v2284 = vmul.f32 %v1584, %v2084
  %v2285 = vmul.f32 %v1585, %v2085
  %v2286 = vmul.f32 %v1586, %v2086
  %v2287 = vmul.f32 %v1587, %v2087
  %v2288 = vmul.f32 %v1588, %v2088
  %v2289 = vmul.f32 %v1589, %v2089
  %v2290 = vmul.f32 %v1590, %v2090
  %v2291 = vmul.f32 %v1591, %v2091
  %v2292 = vmul.f32 %v1592, %v2092
  %v2293 = vadd.f32 %v1993, 2.0
  %v2294 = vadd.f32 %v1994, 2.0
  %v2295 = vadd.f32 %v1995, 2.0
  %v2296 = vadd.f32 %v1996, 2.0
  %v2297 = vadd.f32 %v1997, 2.0
  %v2298 = vadd.f32 %v1998, 2.0
  %v2299 = vadd.f32 %v1999, 2.0
  %v2300 = vadd.f32 %v2000, 2.0
  %v2301 = vadd.f32 %v2001, 2.0
  %v2302 = vadd.f32 %v2002, 2.0
  %v2303 = vadd.f32 %v2003, 2.0
  %v2304 = vadd.f32 %v2004, 2.0
  %v2305 = vadd.f32 %v2005, 2.0
  %v2306 = vadd.f32 %v2006, 2.0
  %v2307 = vadd.f32 %v2007, 2.0
  %v2308 = vadd.f32 %v2008, 2.0
  %v2309 = vadd.f32 %v2009, 2.0
  %v2310 = vadd.f32 %v2010, 2.0
  %v2311 = vadd.f32 %v2011, 2.0
  %v2312 = vadd.f32 %v2012, 2.0
  %v2313 = vadd.f32 %v2013, 2.0
  %v2314 = vadd.f32 %v2014, 2.0
  %v2315 = vadd.f32 %v2015, 2.0
  %v2316 = vadd.f32 %v2016, 2.0
  %v2317 = vadd.f32 %v2017, 2.0
  %v2318 = vadd.f32 %v2018, 2.0
  %v2319 = vadd.f32 %v2019, 2.0
  %v2320 = vadd.f32 %v2020, 2.0
  %v2321 = vadd.f32 %v2021, 2.0
  %v2322 = vadd.f32 %v2022, 2.0
  %v2323 = vadd.f32 %v2023, 2.0
  %v2324 = vadd.f32 %v2024, 2.0
  %v2325 = vadd.f32 %v2025, 2.0
  %v2326 = vadd.f32 %v2026, 2.0
  %v2327 = vadd.f32 %v2027, 2.0
  %v2328 = vadd.f32 %v2028, 2.0
  %v2329 = vadd.f32 %v2029, 2.0
  %v2330 = vadd.f32 %v2030, 2.0
  %v2331 = vadd.f32 %v2031, 2.0
  %v2332 = vadd.f32 %v2032, 2.0
  %v2333 = vadd.f32 %v2033, 2.0
  %v2334 = vadd.f32 %v2034, 2.0
  %v2335 = vadd.f32 %v2035, 2.0
  %v2336 = vadd.f32 %v2036, 2.0
  %v2337 = vadd.f32 %v2037, 2.0
  %v2338 = vadd.f32 %v2038, 2.0
  %v2339 = vadd.f32 %v2039, 2.0
  %v2340 = vadd.f32 %v2040, 2.0
  %v2341 = vadd.f32 %v2041, 2.0
  %v2342 = vadd.f32 %v2042, 2.0
  %v2343 = vadd.f32 %v2043, 2.0
  %v2344 = vadd.f32 %v2044, 2.0
  %v2345 = vadd.f32 %v2045, 2.0
  %v2346 = vadd.f32 %v2046, 2.0
  %v2347 = vadd.f32 %v2047, 2.0
  %v2348 = vadd.f32 %v2048, 2.0
  %v2349 = vadd.f32 %v2049, 2.0
  %v2350 = vadd.f32 %v2050, 2.0
  %v2351 = vadd.f32 %v2051, 2.0
  %v2352 = vadd.f32 %v2052, 2.0
  %v2353 = vadd.f32 %v2053, 2.0
  %v2354 = vadd.f32 %v2054, 2.0
  %v2355 = vadd.f32 %v2055, 2.0
  %v2356 = vadd.f32 %v2056, 2.0
  %v2357 = vadd.f32 %v2057, 2.0
  %v2358 = vadd.f32 %v2058, 2.0
  %v2359 = vadd.f32 %v2059, 2.0
  %v2360 = vadd.f32 %v2060, 2.0
  %v2361 = vadd.f32 %v2061, 2.0
  %v2362 = vadd.f32 %v2062, 2.0
  %v2363 = vadd.f32 %v2063, 2.0
  %v2364 = vadd.f32 %v2064, 2.0
  %v2365 = vadd.f32 %v2065, 2.0
  %v2366 = vadd.f32 %v2066, 2.0
  %v2367 = vadd.f32 %v2067, 2.0
  %v2368 = vadd.f32 %v2068, 2.0
  %v2369 = vadd.f32 %v2069, 2.0
  %v2370 = vadd.f32 %v2070, 2.0
  %v2371 = vadd.f32 %v2071, 2.0
  %v2372 = vadd.f32 %v2072, 2.0
  %v2373 = vadd.f32 %v2073, 2.0
  %v2374 = vadd.f32 %v2074, 2.0
  %v2375 = vadd.f32 %v2075, 2.0
  %v2376 = vadd.f32 %v2076, 2.0
  %v2377 = vadd.f32 %v2077, 2.0
  %v2378 = vadd.f32 %v2078, 2.0
  %v2379 = vadd.f32 %v2079, 2.0
  %v2380 = vadd.f32 %v2080, 2.0
  %v2381 = vadd.f32 %v2081, 2.0
  %v2382 = vadd.f32 %v2082, 2.0
  %v2383 = vadd.f32 %v2083, 2.0
  %v2384 = vadd.f32 %v2084, 2.0
  %v2385 = vadd.f32 %v2085, 2.0
  %v2386 = vadd.f32 %v2086, 2.0
  %v2387 = vadd.f32 %v2087, 2.0
  %v2388 = vadd.f32 %v2088, 2.0
  %v2389 = vadd.f32 %v2089, 2.0
  %v2390 = vadd.f32 %v2090, 2.0
  %v2391 = vadd.f32 %v2091, 2.0
  %v2392 = vadd.f32 %v2092, 2.0
  %v2393 = vrcp.pop %v2293
  %v2394 = vrcp.pop %v2294
  %v2395 = vrcp.pop %v2295
  %v2396 = vrcp.pop %v2296
  %v2397 = vrcp.pop %v2297
  %v2398 = vrcp.pop %v2298
  %v2399 = vrcp.pop %v2299
  %v2400 = vrcp.pop %v2300
  %v2401 = vrcp.pop %v2301
  %v2402 = vrcp.pop %v2302
  %v2403 = vrcp.pop %v2303
  %v2404 = vrcp.pop %v2304
  %v2405 = vrcp.pop %v2305
  %v2406 = vrcp.pop %v2306
  %v2407 = vrcp.pop %v2307
  %v2408 = vrcp.pop %v2308
  %v2409 = vrcp.pop %v2309
  %v2410 = vrcp.pop %v2310
  %v2411 = vrcp.pop %v2311
  %v2412 = vrcp.pop %v2312
  %v2413 = vrcp.pop %v2313
  %v2414 = vrcp.pop %v2314
  %v2415 = vrcp.pop %v2315
  %v2416 = vrcp.pop %v2316
  %v2417 = vrcp.pop %v2317
  %v2418 = vrcp.pop %v2318
  %v2419 = vrcp.pop %v2319
  %v2420 = vrcp.pop %v2320
  %v2421 = vrcp.pop %v2321
  %v2422 = vrcp.pop %v2322
  %v2423 = vrcp.pop %v2323
  %v2424 = vrcp.pop %v2324
  %v2425 = vrcp.pop %v2325
  %v2426 = vrcp.pop %v2326
  %v2427 = vrcp.pop %v2327
  %v2428 = vrcp.pop %v2328
  %v2429 = vrcp.pop %v2329
  %v2430 = vrcp.pop %v2330
  %v2431 = vrcp.pop %v2331
  %v2432 = vrcp.pop %v2332
  %v2433 = vrcp.pop %v2333
  %v2434 = vrcp.pop %v2334
  %v2435 = vrcp.pop %v2335
  %v2436 = vrcp.pop %v2336
  %v2437 = vrcp.pop %v2337
  %v2438 = vrcp.pop %v2338
  %v2439 = vrcp.pop %v2339
  %v2440 = vrcp.pop %v2340
  %v2441 = vrcp.pop %v2341
  %v2442 = vrcp.pop %v2342
  %v2443 = vrcp.pop %v2343
  %v2444 = vrcp.pop %v2344
  %v2445 = vrcp.pop %v2345
  %v2446 = vrcp.pop %v2346
  %v2447 = vrcp.pop %v2347
  %v2448 = vrcp.pop %v2348
  %v2449 = vrcp.pop %v2349
  %v2450 = vrcp.pop %v2350
  %v2451 = vrcp.pop %v2351
  %v2452 = vrcp.pop %v2352
  %v2453 = vrcp.pop %v2353
  %v2454 = vrcp.pop %v2354
  %v2455 = vrcp.pop %v2355
  %v2456 = vrcp.pop %v2356
  %v2457 = vrcp.pop %v2357
  %v2458 = vrcp.pop %v2358
  %v2459 = vrcp.pop %v2359
  %v2460 = vrcp.pop %v2360
  %v2461 = vrcp.pop %v2361
  %v2462 = vrcp.pop %v2362
  %v2463 = vrcp.pop %v2363
  %v2464 = vrcp.pop %v2364
  %v2465 = vrcp.pop %v2365
  %v2466 = vrcp.pop %v2366
  %v2467 = vrcp.pop %v2367
  %v2468 = vrcp.pop %v2368
  %v2469 = vrcp.pop %v2369
  %v2470 = vrcp.pop %v2370
  %v2471 = vrcp.pop %v2371
  %v2472 = vrcp.pop %v2372
  %v2473 = vrcp.pop %v2373
  %v2474 = vrcp.pop %v2374
  %v2475 = vrcp.pop %v2375
  %v2476 = vrcp.pop %v2376
  %v2477 = vrcp.pop %v2377
  %v2478 = vrcp.pop %v2378
  %v2479 = vrcp.pop %v2379
  %v2480 = vrcp.pop %v2380
  %v2481 = vrcp.pop %v2381
  %v2482 = vrcp.pop %v2382
  %v2483 = vrcp.pop %v2383
  %v2484 = vrcp.pop %v2384
  %v2485 = vrcp.pop %v2385
  %v2486 = vrcp.pop %v2386
  %v2487 = vrcp.pop %v2387
  %v2488 = vrcp.pop %v2388
  %v2489 = vrcp.pop %v2389
  %v2490 = vrcp.pop %v2390
  %v2491 = vrcp.pop %v2391
  %v2492 = vrcp.pop %v2392
  %v2493 = vmul.f32 %v2193, %v2393
  %v2494 = vmul.f32 %v2194, %v2394
  %v2495 = vmul.f32 %v2195, %v2395
  %v2496 = vmul.f32 %v2196, %v2396
  %v2497 = vmul.f32 %v2197, %v2397
  %v2498 = vmul.f32 %v2198, %v2398
  %v2499 = vmul.f32 %v2199, %v2399
  %v2500 = vmul.f32 %v2200, %v2400
  %v2501 = vmul.f32 %v2201, %v2401
  %v2502 = vmul.f32 %v2202, %v2402
  %v2503 = vmul.f32 %v2203, %v2403
  %v2504 = vmul.f32 %v2204, %v2404
  %v2505 = vmul.f32 %v2205, %v2405
  %v2506 = vmul.f32 %v2206, %v2406
  %v2507 = vmul.f32 %v2207, %v2407
  %v2508 = vmul.f32 %v2208, %v2408
  %v2509 = vmul.f32 %v2209, %v2409
  %v2510 = vmul.f32 %v2210, %v2410
  %v2511 = vmul.f32 %v2211, %v2411
  %v2512 = vmul.f32 %v2212, %v2412
  %v2513 = vmul.f32 %v2213, %v2413
  %v2514 = vmul.f32 %v2214, %v2414
  %v2515 = vmul.f32 %v2215, %v2415
  %v2516 = vmul.f32 %v2216, %v2416
  %v2517 = vmul.f32 %v2217, %v2417
  %v2518 = vmul.f32 %v2218, %v2418
  %v2519 = vmul.f32 %v2219, %v2419
  %v2520 = vmul.f32 %v2220, %v2420
  %v2521 = vmul.f32 %v2221, %v2421
  %v2522 = vmul.f32 %v2222, %v2422
  %v2523 = vmul.f32 %v2223, %v2423
  %v2524 = vmul.f32 %v2224, %v2424
  %v2525 = vmul.f32 %v2225, %v2425
  %v2526 = vmul.f32 %v2226, %v2426
  %v2527 = vmul.f32 %v2227, %v2427
  %v2528 = vmul.f32 %v2228, %v2428
  %v2529 = vmul.f32 %v2229, %v2429
  %v2530 = vmul.f32 %v2230, %v2430
  %v2531 = vmul.f32 %v2231, %v2431
  %v2532 = vmul.f32 %v2232, %v2432
  %v2533 = vmul.f32 %v2233, %v2433
  %v2534 = vmul.f32 %v2234, %v2434
  %v2535 = vmul.f32 %v2235, %v2435
  %v2536 = vmul.f32 %v2236, %v2436
  %v2537 = vmul.f32 %v2237, %v2437
  %v2538 = vmul.f32 %v2238, %v2438
  %v2539 = vmul.f32 %v2239, %v2439
  %v2540 = vmul.f32 %v2240, %v2440
  %v2541 = vmul.f32 %v2241, %v2441
  %v2542 = vmul.f32 %v2242, %v2442
  %v2543 = vmul.f32 %v2243, %v2443
  %v2544 = vmul.f32 %v2244, %v2444
  %v2545 = vmul.f32 %v2245, %v2445
  %v2546 = vmul.f32 %v2246, %v2446
  %v2547 = vmul.f32 %v2247, %v2447
  %v2548 = vmul.f32 %v2248, %v2448
  %v2549 = vmul.f32 %v2249, %v2449
  %v2550 = vmul.f32 %v2250, %v2450
  %v2551 = vmul.f32 %v2251, %v2451
  %v2552 = vmul.f32 %v2252, %v2452
  %v2553 = vmul.f32 %v2253, %v2453
  %v2554 = vmul.f32 %v2254, %v2454
  %v2555 = vmul.f32 %v2255, %v2455
  %v2556 = vmul.f32 %v2256, %v2456
  %v2557 = vmul.f32 %v2257, %v2457
  %v2558 = vmul.f32 %v2258, %v2458
  %v2559 = vmul.f32 %v2259, %v2459
  %v2560 = vmul.f32 %v2260, %v2460
  %v2561 = vmul.f32 %v2261, %v2461
  %v2562 = vmul.f32 %v2262, %v2462
  %v2563 = vmul.f32 %v2263, %v2463
  %v2564 = vmul.f32 %v2264, %v2464
  %v2565 = vmul.f32 %v2265, %v2465
  %v2566 = vmul.f32 %v2266, %v2466
  %v2567 = vmul.f32 %v2267, %v2467
  %v2568 = vmul.f32 %v2268, %v2468
  %v2569 = vmul.f32 %v2269, %v2469
  %v2570 = vmul.f32 %v2270, %v2470
  %v2571 = vmul.f32 %v2271, %v2471
  %v2572 = vmul.f32 %v2272, %v2472
  %v2573 = vmul.f32 %v2273, %v2473
  %v2574 = vmul.f32 %v2274, %v2474
  %v2575 = vmul.f32 %v2275, %v2475
  %v2576 = vmul.f32 %v2276, %v2476
  %v2577 = vmul.f32 %v2277, %v2477
  %v2578 = vmul.f32 %v2278, %v2478
  %v2579 = vmul.f32 %v2279, %v2479
  %v2580 = vmul.f32 %v2280, %v2480
  %v2581 = vmul.f32 %v2281, %v2481
  %v2582 = vmul.f32 %v2282, %v2482
  %v2583 = vmul.f32 %v2283, %v2483
  %v2584 = vmul.f32 %v2284, %v2484
  %v2585 = vmul.f32 %v2285, %v2485
  %v2586 = vmul.f32 %v2286, %v2486
  %v2587 = vmul.f32 %v2287, %v2487
  %v2588 = vmul.f32 %v2288, %v2488
  %v2589 = vmul.f32 %v2289, %v2489
  %v2590 = vmul.f32 %v2290, %v2490
  %v2591 = vmul.f32 %v2291, %v2491
  %v2592 = vmul.f32 %v2292, %v2492
  %v2593 = vsel %vm2093, %v1493, %v2493
  %v2594 = vsel %vm2094, %v1494, %v2494
  %v2595 = vsel %vm2095, %v1495, %v2495
  %v2596 = vsel %vm2096, %v1496, %v2496
  %v2597 = vsel %vm2097, %v1497, %v2497
  %v2598 = vsel %vm2098, %v1498, %v2498
  %v2599 = vsel %vm2099, %v1499, %v2499
  %v2600 = vsel %vm2100, %v1500, %v2500
  %v2601 = vsel %vm2101, %v1501, %v2501
  %v2602 = vsel %vm2102, %v1502, %v2502
  %v2603 = vsel %vm2103, %v1503, %v2503
  %v2604 = vsel %vm2104, %v1504, %v2504
  %v2605 = vsel %vm2105, %v1505, %v2505
  %v2606 = vsel %vm2106, %v1506, %v2506
  %v2607 = vsel %vm2107, %v1507, %v2507
  %v2608 = vsel %vm2108, %v1508, %v2508
  %v2609 = vsel %vm2109, %v1509, %v2509
  %v2610 = vsel %vm2110, %v1510, %v2510
  %v2611 = vsel %vm2111, %v1511, %v2511
  %v2612 = vsel %vm2112, %v1512, %v2512
  %v2613 = vsel %vm2113, %v1513, %v2513
  %v2614 = vsel %vm2114, %v1514, %v2514
  %v2615 = vsel %vm2115, %v1515, %v2515
  %v2616 = vsel %vm2116, %v1516, %v2516
  %v2617 = vsel %vm2117, %v1517, %v2517
  %v2618 = vsel %vm2118, %v1518, %v2518
  %v2619 = vsel %vm2119, %v1519, %v2519
  %v2620 = vsel %vm2120, %v1520, %v2520
  %v2621 = vsel %vm2121, %v1521, %v2521
  %v2622 = vsel %vm2122, %v1522, %v2522
  %v2623 = vsel %vm2123, %v1523, %v2523
  %v2624 = vsel %vm2124, %v1524, %v2524
  %v2625 = vsel %vm2125, %v1525, %v2525
  %v2626 = vsel %vm2126, %v1526, %v2526
  %v2627 = vsel %vm2127, %v1527, %v2527
  %v2628 = vsel %vm2128, %v1528, %v2528
  %v2629 = vsel %vm2129, %v1529, %v2529
  %v2630 = vsel %vm2130, %v1530, %v2530
  %v2631 = vsel %vm2131, %v1531, %v2531
  %v2632 = vsel %vm2132, %v1532, %v2532
  %v2633 = vsel %vm2133, %v1533, %v2533
  %v2634 = vsel %vm2134, %v1534, %v2534
  %v2635 = vsel %vm2135, %v1535, %v2535
  %v2636 = vsel %vm2136, %v1536, %v2536
  %v2637 = vsel %vm2137, %v1537, %v2537
  %v2638 = vsel %vm2138, %v1538, %v2538
  %v2639 = vsel %vm2139, %v1539, %v2539
  %v2640 = vsel %vm2140, %v1540, %v2540
  %v2641 = vsel %vm2141, %v1541, %v2541
  %v2642 = vsel %vm2142, %v1542, %v2542
  %v2643 = vsel %vm2143, %v1543, %v2543
  %v2644 = vsel %vm2144, %v1544, %v2544
  %v2645 = vsel %vm2145, %v1545, %v2545
  %v2646 = vsel %vm2146, %v1546, %v2546
  %v2647 = vsel %vm2147, %v1547, %v2547
  %v2648 = vsel %vm2148, %v1548, %v2548
  %v2649 = vsel %vm2149, %v1549, %v2549
  %v2650 = vsel %vm2150, %v1550, %v2550
  %v2651 = vsel %vm2151, %v1551, %v2551
  %v2652 = vsel %vm2152, %v1552, %v2552
  %v2653 = vsel %vm2153, %v1553, %v2553
  %v2654 = vsel %vm2154, %v1554, %v2554
  %v2655 = vsel %vm2155, %v1555, %v2555
  %v2656 = vsel %vm2156, %v1556, %v2556
  %v2657 = vsel %vm2157, %v1557, %v2557
  %v2658 = vsel %vm2158, %v1558, %v2558
  %v2659 = vsel %vm2159, %v1559, %v2559
  %v2660 = vsel %vm2160, %v1560, %v2560
  %v2661 = vsel %vm2161, %v1561, %v2561
  %v2662 = vsel %vm2162, %v1562, %v2562
  %v2663 = vsel %vm2163, %v1563, %v2563
  %v2664 = vsel %vm2164, %v1564, %v2564
  %v2665 = vsel %vm2165, %v1565, %v2565
  %v2666 = vsel %vm2166, %v1566, %v2566
  %v2667 = vsel %vm2167, %v1567, %v2567
  %v2668 = vsel %vm2168, %v1568, %v2568
  %v2669 = vsel %vm2169, %v1569, %v2569
  %v2670 = vsel %vm2170, %v1570, %v2570
  %v2671 = vsel %vm2171, %v1571, %v2571
  %v2672 = vsel %vm2172, %v1572, %v2572
  %v2673 = vsel %vm2173, %v1573, %v2573
  %v2674 = vsel %vm2174, %v1574, %v2574
  %v2675 = vsel %vm2175, %v1575, %v2575
  %v2676 = vsel %vm2176, %v1576, %v2576
  %v2677 = vsel %vm2177, %v1577, %v2577
  %v2678 = vsel %vm2178, %v1578, %v2578
  %v2679 = vsel %vm2179, %v1579, %v2579
  %v2680 = vsel %vm2180, %v1580, %v2580
  %v2681 = vsel %vm2181, %v1581, %v2581
  %v2682 = vsel %vm2182, %v1582, %v2582
  %v2683 = vsel %vm2183, %v1583, %v2583
  %v2684 = vsel %vm2184, %v1584, %v2584
  %v2685 = vsel %vm2185, %v1585, %v2585
  %v2686 = vsel %vm2186, %v1586, %v2586
  %v2687 = vsel %vm2187, %v1587, %v2587
  %v2688 = vsel %vm2188, %v1588, %v2588
  %v2689 = vsel %vm2189, %v1589, %v2589
  %v2690 = vsel %vm2190, %v1590, %v2590
  %v2691 = vsel %vm2191, %v1591, %v2591
  %v2692 = vsel %vm2192, %v1592, %v2592
  %v2693 = vmax.f32 %v2593, %v2618
  %v2694 = vmax.f32 %v2594, %v2619
  %v2695 = vmax.f32 %v2595, %v2620
  %v2696 = vmax.f32 %v2596, %v2621
  %v2697 = vmax.f32 %v2597, %v2622
  %v2698 = vmax.f32 %v2598, %v2623
  %v2699 = vmax.f32 %v2599, %v2624
  %v2700 = vmax.f32 %v2600, %v2625
  %v2701 = vmax.f32 %v2601, %v2626
  %v2702 = vmax.f32 %v2602, %v2627
  %v2703 = vmax.f32 %v2603, %v2628
  %v2704 = vmax.f32 %v2604, %v2629
  %v2705 = vmax.f32 %v2605, %v2630
  %v2706 = vmax.f32 %v2606, %v2631
  %v2707 = vmax.f32 %v2607, %v2632
  %v2708 = vmax.f32 %v2608, %v2633
  %v2709 = vmax.f32 %v2609, %v2634
  %v2710 = vmax.f32 %v2610, %v2635
  %v2711 = vmax.f32 %v2611, %v2636
  %v2712 = vmax.f32 %v2612, %v2637
  %v2713 = vmax.f32 %v2613, %v2638
  %v2714 = vmax.f32 %v2614, %v2639
  %v2715 = vmax.f32 %v2615, %v2640
  %v2716 = vmax.f32 %v2616, %v2641
  %v2717 = vmax.f32 %v2617, %v2642
  %v2718 = vmax.f32 %v2643, %v2668
  %v2719 = vmax.f32 %v2644, %v2669
  %v2720 = vmax.f32 %v2645, %v2670
  %v2721 = vmax.f32 %v2646, %v2671
  %v2722 = vmax.f32 %v2647, %v2672
  %v2723 = vmax.f32 %v2648, %v2673
  %v2724 = vmax.f32 %v2649, %v2674
  %v2725 = vmax.f32 %v2650, %v2675
  %v2726 = vmax.f32 %v2651, %v2676
  %v2727 = vmax.f32 %v2652, %v2677
  %v2728 = vmax.f32 %v2653, %v2678
  %v2729 = vmax.f32 %v2654, %v2679
  %v2730 = vmax.f32 %v2655, %v2680
  %v2731 = vmax.f32 %v2656, %v2681
  %v2732 = vmax.f32 %v2657, %v2682
  %v2733 = vmax.f32 %v2658, %v2683
  %v2734 = vmax.f32 %v2659, %v2684
  %v2735 = vmax.f32 %v2660, %v2685
  %v2736 = vmax.f32 %v2661, %v2686
  %v2737 = vmax.f32 %v2662, %v2687
  %v2738 = vmax.f32 %v2663, %v2688
  %v2739 = vmax.f32 %v2664, %v2689
  %v2740 = vmax.f32 %v2665, %v2690
  %v2741 = vmax.f32 %v2666, %v2691
  %v2742 = vmax.f32 %v2667, %v2692
  %v2743 = vmax.f32 %v2693, %v2718
  %v2744 = vmax.f32 %v2694, %v2719
  %v2745 = vmax.f32 %v2695, %v2720
  %v2746 = vmax.f32 %v2696, %v2721
  %v2747 = vmax.f32 %v2697, %v2722
  %v2748 = vmax.f32 %v2698, %v2723
  %v2749 = vmax.f32 %v2699, %v2724
  %v2750 = vmax.f32 %v2700, %v2725
  %v2751 = vmax.f32 %v2701, %v2726
  %v2752 = vmax.f32 %v2702, %v2727
  %v2753 = vmax.f32 %v2703, %v2728
  %v2754 = vmax.f32 %v2704, %v2729
  %v2755 = vmax.f32 %v2705, %v2730
  %v2756 = vmax.f32 %v2706, %v2731
  %v2757 = vmax.f32 %v2707, %v2732
  %v2758 = vmax.f32 %v2708, %v2733
  %v2759 = vmax.f32 %v2709, %v2734
  %v2760 = vmax.f32 %v2710, %v2735
  %v2761 = vmax.f32 %v2711, %v2736
  %v2762 = vmax.f32 %v2712, %v2737
  %v2763 = vmax.f32 %v2713, %v2738
  %v2764 = vmax.f32 %v2714, %v2739
  %v2765 = vmax.f32 %v2715, %v2740
  %v2766 = vmax.f32 %v2716, %v2741
  %v2767 = vmax.f32 %v2717, %v2742
  %v2768 = vpack.c.bf16 %v2743, %v2743
  %v2769 = vpack.c.bf16 %v2744, %v2744
  %v2770 = vpack.c.bf16 %v2745, %v2745
  %v2771 = vpack.c.bf16 %v2746, %v2746
  %v2772 = vpack.c.bf16 %v2747, %v2747
  %v2773 = vpack.c.bf16 %v2748, %v2748
  %v2774 = vpack.c.bf16 %v2749, %v2749
  %v2775 = vpack.c.bf16 %v2750, %v2750
  %v2776 = vpack.c.bf16 %v2751, %v2751
  %v2777 = vpack.c.bf16 %v2752, %v2752
  %v2778 = vpack.c.bf16 %v2753, %v2753
  %v2779 = vpack.c.bf16 %v2754, %v2754
  %v2780 = vpack.c.bf16 %v2755, %v2755
  %v2781 = vpack.c.bf16 %v2756, %v2756
  %v2782 = vpack.c.bf16 %v2757, %v2757
  %v2783 = vpack.c.bf16 %v2758, %v2758
  %v2784 = vpack.c.bf16 %v2759, %v2759
  %v2785 = vpack.c.bf16 %v2760, %v2760
  %v2786 = vpack.c.bf16 %v2761, %v2761
  %v2787 = vpack.c.bf16 %v2762, %v2762
  %v2788 = vpack.c.bf16 %v2763, %v2763
  %v2789 = vpack.c.bf16 %v2764, %v2764
  %v2790 = vpack.c.bf16 %v2765, %v2765
  %v2791 = vpack.c.bf16 %v2766, %v2766
  %v2792 = vpack.c.bf16 %v2767, %v2767
  %v2793 = vld [vmem:[%s4] sm:$0xf]
  %v2794 = vld [vmem:[%s4 + $0x4] sm:$0xf]
  %v2795 = vld [vmem:[%s4 + $0x8] sm:$0xf]
  %v2796 = vld [vmem:[%s4 + $0xc] sm:$0xf]
  %v2797 = vld [vmem:[%s4 + $0x10] sm:$0xf]
  %v2798 = vld [vmem:[%s4 + $0x14] sm:$0xf]
  %v2799 = vld [vmem:[%s4 + $0x18] sm:$0xf]
  %v2800 = vld [vmem:[%s4 + $0x1c] sm:$0xf]
  %v2801 = vld [vmem:[%s4 + $0x20] sm:$0xf]
  %v2802 = vld [vmem:[%s4 + $0x24] sm:$0xf]
  %v2803 = vld [vmem:[%s4 + $0x28] sm:$0xf]
  %v2804 = vld [vmem:[%s4 + $0x2c] sm:$0xf]
  %v2805 = vld [vmem:[%s4 + $0x30] sm:$0xf]
  %v2806 = vld [vmem:[%s4 + $0x34] sm:$0xf]
  %v2807 = vld [vmem:[%s4 + $0x38] sm:$0xf]
  %v2808 = vld [vmem:[%s4 + $0x3c] sm:$0xf]
  %v2809 = vld [vmem:[%s4 + $0x40] sm:$0xf]
  %v2810 = vld [vmem:[%s4 + $0x44] sm:$0xf]
  %v2811 = vld [vmem:[%s4 + $0x48] sm:$0xf]
  %v2812 = vld [vmem:[%s4 + $0x4c] sm:$0xf]
  %v2813 = vld [vmem:[%s4 + $0x50] sm:$0xf]
  %v2814 = vld [vmem:[%s4 + $0x54] sm:$0xf]
  %v2815 = vld [vmem:[%s4 + $0x58] sm:$0xf]
  %v2816 = vld [vmem:[%s4 + $0x5c] sm:$0xf]
  %v2817 = vld [vmem:[%s4 + $0x60] sm:$0xf]
  %v2818 = vld [vmem:[%s4 + $0x64] sm:$0xf]
  %v2819 = vld [vmem:[%s4 + $0x68] sm:$0xf]
  %v2820 = vld [vmem:[%s4 + $0x6c] sm:$0xf]
  %v2821 = vld [vmem:[%s4 + $0x70] sm:$0xf]
  %v2822 = vld [vmem:[%s4 + $0x74] sm:$0xf]
  %v2823 = vld [vmem:[%s4 + $0x78] sm:$0xf]
  %v2824 = vld [vmem:[%s4 + $0x7c] sm:$0xf]
  %v2825 = vld [vmem:[%s4 + $0x80] sm:$0xf]
  %v2826 = vld [vmem:[%s4 + $0x84] sm:$0xf]
  %v2827 = vld [vmem:[%s4 + $0x88] sm:$0xf]
  %v2828 = vld [vmem:[%s4 + $0x8c] sm:$0xf]
  %v2829 = vld [vmem:[%s4 + $0x90] sm:$0xf]
  %v2830 = vld [vmem:[%s4 + $0x94] sm:$0xf]
  %v2831 = vld [vmem:[%s4 + $0x98] sm:$0xf]
  %v2832 = vld [vmem:[%s4 + $0x9c] sm:$0xf]
  %v2833 = vld [vmem:[%s4 + $0xa0] sm:$0xf]
  %v2834 = vld [vmem:[%s4 + $0xa4] sm:$0xf]
  %v2835 = vld [vmem:[%s4 + $0xa8] sm:$0xf]
  %v2836 = vld [vmem:[%s4 + $0xac] sm:$0xf]
  %v2837 = vld [vmem:[%s4 + $0xb0] sm:$0xf]
  %v2838 = vld [vmem:[%s4 + $0xb4] sm:$0xf]
  %v2839 = vld [vmem:[%s4 + $0xb8] sm:$0xf]
  %v2840 = vld [vmem:[%s4 + $0xbc] sm:$0xf]
  %v2841 = vld [vmem:[%s4 + $0xc0] sm:$0xf]
  %v2842 = vld [vmem:[%s4 + $0xc4] sm:$0xf]
  %v2843 = vld [vmem:[%s4 + $0xc8] sm:$0xf]
  %v2844 = vld [vmem:[%s4 + $0xcc] sm:$0xf]
  %v2845 = vld [vmem:[%s4 + $0xd0] sm:$0xf]
  %v2846 = vld [vmem:[%s4 + $0xd4] sm:$0xf]
  %v2847 = vld [vmem:[%s4 + $0xd8] sm:$0xf]
  %v2848 = vld [vmem:[%s4 + $0xdc] sm:$0xf]
  %v2849 = vld [vmem:[%s4 + $0xe0] sm:$0xf]
  %v2850 = vld [vmem:[%s4 + $0xe4] sm:$0xf]
  %v2851 = vld [vmem:[%s4 + $0xe8] sm:$0xf]
  %v2852 = vld [vmem:[%s4 + $0xec] sm:$0xf]
  %v2853 = vld [vmem:[%s4 + $0xf0] sm:$0xf]
  %v2854 = vld [vmem:[%s4 + $0xf4] sm:$0xf]
  %v2855 = vld [vmem:[%s4 + $0xf8] sm:$0xf]
  %v2856 = vld [vmem:[%s4 + $0xfc] sm:$0xf]
  %v2857 = vld [vmem:[%s4 + $0x100] sm:$0xf]
  %v2858 = vld [vmem:[%s4 + $0x104] sm:$0xf]
  %v2859 = vld [vmem:[%s4 + $0x108] sm:$0xf]
  %v2860 = vld [vmem:[%s4 + $0x10c] sm:$0xf]
  %v2861 = vld [vmem:[%s4 + $0x110] sm:$0xf]
  %v2862 = vld [vmem:[%s4 + $0x114] sm:$0xf]
  %v2863 = vld [vmem:[%s4 + $0x118] sm:$0xf]
  %v2864 = vld [vmem:[%s4 + $0x11c] sm:$0xf]
  %v2865 = vld [vmem:[%s4 + $0x120] sm:$0xf]
  %v2866 = vld [vmem:[%s4 + $0x124] sm:$0xf]
  %v2867 = vld [vmem:[%s4 + $0x128] sm:$0xf]
  %v2868 = vld [vmem:[%s4 + $0x12c] sm:$0xf]
  %v2869 = vld [vmem:[%s4 + $0x130] sm:$0xf]
  %v2870 = vld [vmem:[%s4 + $0x134] sm:$0xf]
  %v2871 = vld [vmem:[%s4 + $0x138] sm:$0xf]
  %v2872 = vld [vmem:[%s4 + $0x13c] sm:$0xf]
  %v2873 = vld [vmem:[%s4 + $0x140] sm:$0xf]
  %v2874 = vld [vmem:[%s4 + $0x144] sm:$0xf]
  %v2875 = vld [vmem:[%s4 + $0x148] sm:$0xf]
  %v2876 = vld [vmem:[%s4 + $0x14c] sm:$0xf]
  %v2877 = vld [vmem:[%s4 + $0x150] sm:$0xf]
  %v2878 = vld [vmem:[%s4 + $0x154] sm:$0xf]
  %v2879 = vld [vmem:[%s4 + $0x158] sm:$0xf]
  %v2880 = vld [vmem:[%s4 + $0x15c] sm:$0xf]
  %v2881 = vld [vmem:[%s4 + $0x160] sm:$0xf]
  %v2882 = vld [vmem:[%s4 + $0x164] sm:$0xf]
  %v2883 = vld [vmem:[%s4 + $0x168] sm:$0xf]
  %v2884 = vld [vmem:[%s4 + $0x16c] sm:$0xf]
  %v2885 = vld [vmem:[%s4 + $0x170] sm:$0xf]
  %v2886 = vld [vmem:[%s4 + $0x174] sm:$0xf]
  %v2887 = vld [vmem:[%s4 + $0x178] sm:$0xf]
  %v2888 = vld [vmem:[%s4 + $0x17c] sm:$0xf]
  %v2889 = vld [vmem:[%s4 + $0x180] sm:$0xf]
  %v2890 = vld [vmem:[%s4 + $0x184] sm:$0xf]
  %v2891 = vld [vmem:[%s4 + $0x188] sm:$0xf]
  %v2892 = vld [vmem:[%s4 + $0x18c] sm:$0xf]
  %v2893 = vld [vmem:[%s4 + $0x190] sm:$0xf]
  %v2894 = vld [vmem:[%s4 + $0x194] sm:$0xf]
  %v2895 = vld [vmem:[%s4 + $0x198] sm:$0xf]
  %v2896 = vld [vmem:[%s4 + $0x19c] sm:$0xf]
  %v2897 = vld [vmem:[%s4 + $0x1a0] sm:$0xf]
  %v2898 = vld [vmem:[%s4 + $0x1a4] sm:$0xf]
  %v2899 = vld [vmem:[%s4 + $0x1a8] sm:$0xf]
  %v2900 = vld [vmem:[%s4 + $0x1ac] sm:$0xf]
  %v2901 = vld [vmem:[%s4 + $0x1b0] sm:$0xf]
  %v2902 = vld [vmem:[%s4 + $0x1b4] sm:$0xf]
  %v2903 = vld [vmem:[%s4 + $0x1b8] sm:$0xf]
  %v2904 = vld [vmem:[%s4 + $0x1bc] sm:$0xf]
  %v2905 = vld [vmem:[%s4 + $0x1c0] sm:$0xf]
  %v2906 = vld [vmem:[%s4 + $0x1c4] sm:$0xf]
  %v2907 = vld [vmem:[%s4 + $0x1c8] sm:$0xf]
  %v2908 = vld [vmem:[%s4 + $0x1cc] sm:$0xf]
  %v2909 = vld [vmem:[%s4 + $0x1d0] sm:$0xf]
  %v2910 = vld [vmem:[%s4 + $0x1d4] sm:$0xf]
  %v2911 = vld [vmem:[%s4 + $0x1d8] sm:$0xf]
  %v2912 = vld [vmem:[%s4 + $0x1dc] sm:$0xf]
  %v2913 = vld [vmem:[%s4 + $0x1e0] sm:$0xf]
  %v2914 = vld [vmem:[%s4 + $0x1e4] sm:$0xf]
  %v2915 = vld [vmem:[%s4 + $0x1e8] sm:$0xf]
  %v2916 = vld [vmem:[%s4 + $0x1ec] sm:$0xf]
  %v2917 = vld [vmem:[%s4 + $0x1f0] sm:$0xf]
  %v2918 = vld [vmem:[%s4 + $0x1f4] sm:$0xf]
  %v2919 = vld [vmem:[%s4 + $0x1f8] sm:$0xf]
  %v2920 = vld [vmem:[%s4 + $0x1fc] sm:$0xf]
  %v2921 = vld [vmem:[%s4 + $0x200] sm:$0xf]
  %v2922 = vld [vmem:[%s4 + $0x204] sm:$0xf]
  %v2923 = vld [vmem:[%s4 + $0x208] sm:$0xf]
  %v2924 = vld [vmem:[%s4 + $0x20c] sm:$0xf]
  %v2925 = vld [vmem:[%s4 + $0x210] sm:$0xf]
  %v2926 = vld [vmem:[%s4 + $0x214] sm:$0xf]
  %v2927 = vld [vmem:[%s4 + $0x218] sm:$0xf]
  %v2928 = vld [vmem:[%s4 + $0x21c] sm:$0xf]
  %v2929 = vld [vmem:[%s4 + $0x220] sm:$0xf]
  %v2930 = vld [vmem:[%s4 + $0x224] sm:$0xf]
  %v2931 = vld [vmem:[%s4 + $0x228] sm:$0xf]
  %v2932 = vld [vmem:[%s4 + $0x22c] sm:$0xf]
  %v2933 = vld [vmem:[%s4 + $0x230] sm:$0xf]
  %v2934 = vld [vmem:[%s4 + $0x234] sm:$0xf]
  %v2935 = vld [vmem:[%s4 + $0x238] sm:$0xf]
  %v2936 = vld [vmem:[%s4 + $0x23c] sm:$0xf]
  %v2937 = vld [vmem:[%s4 + $0x240] sm:$0xf]
  %v2938 = vld [vmem:[%s4 + $0x244] sm:$0xf]
  %v2939 = vld [vmem:[%s4 + $0x248] sm:$0xf]
  %v2940 = vld [vmem:[%s4 + $0x24c] sm:$0xf]
  %v2941 = vld [vmem:[%s4 + $0x250] sm:$0xf]
  %v2942 = vld [vmem:[%s4 + $0x254] sm:$0xf]
  %v2943 = vld [vmem:[%s4 + $0x258] sm:$0xf]
  %v2944 = vld [vmem:[%s4 + $0x25c] sm:$0xf]
  %v2945 = vld [vmem:[%s4 + $0x260] sm:$0xf]
  %v2946 = vld [vmem:[%s4 + $0x264] sm:$0xf]
  %v2947 = vld [vmem:[%s4 + $0x268] sm:$0xf]
  %v2948 = vld [vmem:[%s4 + $0x26c] sm:$0xf]
  %v2949 = vld [vmem:[%s4 + $0x270] sm:$0xf]
  %v2950 = vld [vmem:[%s4 + $0x274] sm:$0xf]
  %v2951 = vld [vmem:[%s4 + $0x278] sm:$0xf]
  %v2952 = vld [vmem:[%s4 + $0x27c] sm:$0xf]
  %v2953 = vld [vmem:[%s4 + $0x280] sm:$0xf]
  %v2954 = vld [vmem:[%s4 + $0x284] sm:$0xf]
  %v2955 = vld [vmem:[%s4 + $0x288] sm:$0xf]
  %v2956 = vld [vmem:[%s4 + $0x28c] sm:$0xf]
  %v2957 = vld [vmem:[%s4 + $0x290] sm:$0xf]
  %v2958 = vld [vmem:[%s4 + $0x294] sm:$0xf]
  %v2959 = vld [vmem:[%s4 + $0x298] sm:$0xf]
  %v2960 = vld [vmem:[%s4 + $0x29c] sm:$0xf]
  %v2961 = vld [vmem:[%s4 + $0x2a0] sm:$0xf]
  %v2962 = vld [vmem:[%s4 + $0x2a4] sm:$0xf]
  %v2963 = vld [vmem:[%s4 + $0x2a8] sm:$0xf]
  %v2964 = vld [vmem:[%s4 + $0x2ac] sm:$0xf]
  %v2965 = vld [vmem:[%s4 + $0x2b0] sm:$0xf]
  %v2966 = vld [vmem:[%s4 + $0x2b4] sm:$0xf]
  %v2967 = vld [vmem:[%s4 + $0x2b8] sm:$0xf]
  %v2968 = vld [vmem:[%s4 + $0x2bc] sm:$0xf]
  %v2969 = vld [vmem:[%s4 + $0x2c0] sm:$0xf]
  %v2970 = vld [vmem:[%s4 + $0x2c4] sm:$0xf]
  %v2971 = vld [vmem:[%s4 + $0x2c8] sm:$0xf]
  %v2972 = vld [vmem:[%s4 + $0x2cc] sm:$0xf]
  %v2973 = vld [vmem:[%s4 + $0x2d0] sm:$0xf]
  %v2974 = vld [vmem:[%s4 + $0x2d4] sm:$0xf]
  %v2975 = vld [vmem:[%s4 + $0x2d8] sm:$0xf]
  %v2976 = vld [vmem:[%s4 + $0x2dc] sm:$0xf]
  %v2977 = vld [vmem:[%s4 + $0x2e0] sm:$0xf]
  %v2978 = vld [vmem:[%s4 + $0x2e4] sm:$0xf]
  %v2979 = vld [vmem:[%s4 + $0x2e8] sm:$0xf]
  %v2980 = vld [vmem:[%s4 + $0x2ec] sm:$0xf]
  %v2981 = vld [vmem:[%s4 + $0x2f0] sm:$0xf]
  %v2982 = vld [vmem:[%s4 + $0x2f4] sm:$0xf]
  %v2983 = vld [vmem:[%s4 + $0x2f8] sm:$0xf]
  %v2984 = vld [vmem:[%s4 + $0x2fc] sm:$0xf]
  %v2985 = vld [vmem:[%s4 + $0x300] sm:$0xf]
  %v2986 = vld [vmem:[%s4 + $0x304] sm:$0xf]
  %v2987 = vld [vmem:[%s4 + $0x308] sm:$0xf]
  %v2988 = vld [vmem:[%s4 + $0x30c] sm:$0xf]
  %v2989 = vld [vmem:[%s4 + $0x310] sm:$0xf]
  %v2990 = vld [vmem:[%s4 + $0x314] sm:$0xf]
  %v2991 = vld [vmem:[%s4 + $0x318] sm:$0xf]
  %v2992 = vld [vmem:[%s4 + $0x31c] sm:$0xf]
  %v2993 = vld [vmem:[%s4 + $0x320] sm:$0xf]
  %v2994 = vld [vmem:[%s4 + $0x324] sm:$0xf]
  %v2995 = vld [vmem:[%s4 + $0x328] sm:$0xf]
  %v2996 = vld [vmem:[%s4 + $0x32c] sm:$0xf]
  %v2997 = vld [vmem:[%s4 + $0x330] sm:$0xf]
  %v2998 = vld [vmem:[%s4 + $0x334] sm:$0xf]
  %v2999 = vld [vmem:[%s4 + $0x338] sm:$0xf]
  %v3000 = vld [vmem:[%s4 + $0x33c] sm:$0xf]
  %v3001 = vld [vmem:[%s4 + $0x340] sm:$0xf]
  %v3002 = vld [vmem:[%s4 + $0x344] sm:$0xf]
  %v3003 = vld [vmem:[%s4 + $0x348] sm:$0xf]
  %v3004 = vld [vmem:[%s4 + $0x34c] sm:$0xf]
  %v3005 = vld [vmem:[%s4 + $0x350] sm:$0xf]
  %v3006 = vld [vmem:[%s4 + $0x354] sm:$0xf]
  %v3007 = vld [vmem:[%s4 + $0x358] sm:$0xf]
  %v3008 = vld [vmem:[%s4 + $0x35c] sm:$0xf]
  %v3009 = vld [vmem:[%s4 + $0x360] sm:$0xf]
  %v3010 = vld [vmem:[%s4 + $0x364] sm:$0xf]
  %v3011 = vld [vmem:[%s4 + $0x368] sm:$0xf]
  %v3012 = vld [vmem:[%s4 + $0x36c] sm:$0xf]
  %v3013 = vld [vmem:[%s4 + $0x370] sm:$0xf]
  %v3014 = vld [vmem:[%s4 + $0x374] sm:$0xf]
  %v3015 = vld [vmem:[%s4 + $0x378] sm:$0xf]
  %v3016 = vld [vmem:[%s4 + $0x37c] sm:$0xf]
  %v3017 = vld [vmem:[%s4 + $0x380] sm:$0xf]
  %v3018 = vld [vmem:[%s4 + $0x384] sm:$0xf]
  %v3019 = vld [vmem:[%s4 + $0x388] sm:$0xf]
  %v3020 = vld [vmem:[%s4 + $0x38c] sm:$0xf]
  %v3021 = vld [vmem:[%s4 + $0x390] sm:$0xf]
  %v3022 = vld [vmem:[%s4 + $0x394] sm:$0xf]
  %v3023 = vld [vmem:[%s4 + $0x398] sm:$0xf]
  %v3024 = vld [vmem:[%s4 + $0x39c] sm:$0xf]
  %v3025 = vld [vmem:[%s4 + $0x3a0] sm:$0xf]
  %v3026 = vld [vmem:[%s4 + $0x3a4] sm:$0xf]
  %v3027 = vld [vmem:[%s4 + $0x3a8] sm:$0xf]
  %v3028 = vld [vmem:[%s4 + $0x3ac] sm:$0xf]
  %v3029 = vld [vmem:[%s4 + $0x3b0] sm:$0xf]
  %v3030 = vld [vmem:[%s4 + $0x3b4] sm:$0xf]
  %v3031 = vld [vmem:[%s4 + $0x3b8] sm:$0xf]
  %v3032 = vld [vmem:[%s4 + $0x3bc] sm:$0xf]
  %v3033 = vld [vmem:[%s4 + $0x3c0] sm:$0xf]
  %v3034 = vld [vmem:[%s4 + $0x3c4] sm:$0xf]
  %v3035 = vld [vmem:[%s4 + $0x3c8] sm:$0xf]
  %v3036 = vld [vmem:[%s4 + $0x3cc] sm:$0xf]
  %v3037 = vld [vmem:[%s4 + $0x3d0] sm:$0xf]
  %v3038 = vld [vmem:[%s4 + $0x3d4] sm:$0xf]
  %v3039 = vld [vmem:[%s4 + $0x3d8] sm:$0xf]
  %v3040 = vld [vmem:[%s4 + $0x3dc] sm:$0xf]
  %v3041 = vld [vmem:[%s4 + $0x3e0] sm:$0xf]
  %v3042 = vld [vmem:[%s4 + $0x3e4] sm:$0xf]
  %v3043 = vld [vmem:[%s4 + $0x3e8] sm:$0xf]
  %v3044 = vld [vmem:[%s4 + $0x3ec] sm:$0xf]
  %v3045 = vld [vmem:[%s4 + $0x3f0] sm:$0xf]
  %v3046 = vld [vmem:[%s4 + $0x3f4] sm:$0xf]
  %v3047 = vld [vmem:[%s4 + $0x3f8] sm:$0xf]
  %v3048 = vld [vmem:[%s4 + $0x3fc] sm:$0xf]
  %v3049 = vld [vmem:[%s4 + $0x400] sm:$0xf]
  %v3050 = vld [vmem:[%s4 + $0x404] sm:$0xf]
  %v3051 = vld [vmem:[%s4 + $0x408] sm:$0xf]
  %v3052 = vld [vmem:[%s4 + $0x40c] sm:$0xf]
  %v3053 = vld [vmem:[%s4 + $0x410] sm:$0xf]
  %v3054 = vld [vmem:[%s4 + $0x414] sm:$0xf]
  %v3055 = vld [vmem:[%s4 + $0x418] sm:$0xf]
  %v3056 = vld [vmem:[%s4 + $0x41c] sm:$0xf]
  %v3057 = vld [vmem:[%s4 + $0x420] sm:$0xf]
  %v3058 = vld [vmem:[%s4 + $0x424] sm:$0xf]
  %v3059 = vld [vmem:[%s4 + $0x428] sm:$0xf]
  %v3060 = vld [vmem:[%s4 + $0x42c] sm:$0xf]
  %v3061 = vld [vmem:[%s4 + $0x430] sm:$0xf]
  %v3062 = vld [vmem:[%s4 + $0x434] sm:$0xf]
  %v3063 = vld [vmem:[%s4 + $0x438] sm:$0xf]
  %v3064 = vld [vmem:[%s4 + $0x43c] sm:$0xf]
  %v3065 = vld [vmem:[%s4 + $0x440] sm:$0xf]
  %v3066 = vld [vmem:[%s4 + $0x444] sm:$0xf]
  %v3067 = vld [vmem:[%s4 + $0x448] sm:$0xf]
  %v3068 = vld [vmem:[%s4 + $0x44c] sm:$0xf]
  %v3069 = vld [vmem:[%s4 + $0x450] sm:$0xf]
  %v3070 = vld [vmem:[%s4 + $0x454] sm:$0xf]
  %v3071 = vld [vmem:[%s4 + $0x458] sm:$0xf]
  %v3072 = vld [vmem:[%s4 + $0x45c] sm:$0xf]
  %v3073 = vld [vmem:[%s4 + $0x460] sm:$0xf]
  %v3074 = vld [vmem:[%s4 + $0x464] sm:$0xf]
  %v3075 = vld [vmem:[%s4 + $0x468] sm:$0xf]
  %v3076 = vld [vmem:[%s4 + $0x46c] sm:$0xf]
  %v3077 = vld [vmem:[%s4 + $0x470] sm:$0xf]
  %v3078 = vld [vmem:[%s4 + $0x474] sm:$0xf]
  %v3079 = vld [vmem:[%s4 + $0x478] sm:$0xf]
  %v3080 = vld [vmem:[%s4 + $0x47c] sm:$0xf]
  %v3081 = vld [vmem:[%s4 + $0x480] sm:$0xf]
  %v3082 = vld [vmem:[%s4 + $0x484] sm:$0xf]
  %v3083 = vld [vmem:[%s4 + $0x488] sm:$0xf]
  %v3084 = vld [vmem:[%s4 + $0x48c] sm:$0xf]
  %v3085 = vld [vmem:[%s4 + $0x490] sm:$0xf]
  %v3086 = vld [vmem:[%s4 + $0x494] sm:$0xf]
  %v3087 = vld [vmem:[%s4 + $0x498] sm:$0xf]
  %v3088 = vld [vmem:[%s4 + $0x49c] sm:$0xf]
  %v3089 = vld [vmem:[%s4 + $0x4a0] sm:$0xf]
  %v3090 = vld [vmem:[%s4 + $0x4a4] sm:$0xf]
  %v3091 = vld [vmem:[%s4 + $0x4a8] sm:$0xf]
  %v3092 = vld [vmem:[%s4 + $0x4ac] sm:$0xf]
  %v3093 = vld [vmem:[%s4 + $0x4b0] sm:$0xf]
  %v3094 = vld [vmem:[%s4 + $0x4b4] sm:$0xf]
  %v3095 = vld [vmem:[%s4 + $0x4b8] sm:$0xf]
  %v3096 = vld [vmem:[%s4 + $0x4bc] sm:$0xf]
  %v3097 = vld [vmem:[%s4 + $0x4c0] sm:$0xf]
  %v3098 = vld [vmem:[%s4 + $0x4c4] sm:$0xf]
  %v3099 = vld [vmem:[%s4 + $0x4c8] sm:$0xf]
  %v3100 = vld [vmem:[%s4 + $0x4cc] sm:$0xf]
  %v3101 = vld [vmem:[%s4 + $0x4d0] sm:$0xf]
  %v3102 = vld [vmem:[%s4 + $0x4d4] sm:$0xf]
  %v3103 = vld [vmem:[%s4 + $0x4d8] sm:$0xf]
  %v3104 = vld [vmem:[%s4 + $0x4dc] sm:$0xf]
  %v3105 = vld [vmem:[%s4 + $0x4e0] sm:$0xf]
  %v3106 = vld [vmem:[%s4 + $0x4e4] sm:$0xf]
  %v3107 = vld [vmem:[%s4 + $0x4e8] sm:$0xf]
  %v3108 = vld [vmem:[%s4 + $0x4ec] sm:$0xf]
  %v3109 = vld [vmem:[%s4 + $0x4f0] sm:$0xf]
  %v3110 = vld [vmem:[%s4 + $0x4f4] sm:$0xf]
  %v3111 = vld [vmem:[%s4 + $0x4f8] sm:$0xf]
  %v3112 = vld [vmem:[%s4 + $0x4fc] sm:$0xf]
  %v3113 = vld [vmem:[%s4 + $0x500] sm:$0xf]
  %v3114 = vld [vmem:[%s4 + $0x504] sm:$0xf]
  %v3115 = vld [vmem:[%s4 + $0x508] sm:$0xf]
  %v3116 = vld [vmem:[%s4 + $0x50c] sm:$0xf]
  %v3117 = vld [vmem:[%s4 + $0x510] sm:$0xf]
  %v3118 = vld [vmem:[%s4 + $0x514] sm:$0xf]
  %v3119 = vld [vmem:[%s4 + $0x518] sm:$0xf]
  %v3120 = vld [vmem:[%s4 + $0x51c] sm:$0xf]
  %v3121 = vld [vmem:[%s4 + $0x520] sm:$0xf]
  %v3122 = vld [vmem:[%s4 + $0x524] sm:$0xf]
  %v3123 = vld [vmem:[%s4 + $0x528] sm:$0xf]
  %v3124 = vld [vmem:[%s4 + $0x52c] sm:$0xf]
  %v3125 = vld [vmem:[%s4 + $0x530] sm:$0xf]
  %v3126 = vld [vmem:[%s4 + $0x534] sm:$0xf]
  %v3127 = vld [vmem:[%s4 + $0x538] sm:$0xf]
  %v3128 = vld [vmem:[%s4 + $0x53c] sm:$0xf]
  %v3129 = vld [vmem:[%s4 + $0x540] sm:$0xf]
  %v3130 = vld [vmem:[%s4 + $0x544] sm:$0xf]
  %v3131 = vld [vmem:[%s4 + $0x548] sm:$0xf]
  %v3132 = vld [vmem:[%s4 + $0x54c] sm:$0xf]
  %v3133 = vld [vmem:[%s4 + $0x550] sm:$0xf]
  %v3134 = vld [vmem:[%s4 + $0x554] sm:$0xf]
  %v3135 = vld [vmem:[%s4 + $0x558] sm:$0xf]
  %v3136 = vld [vmem:[%s4 + $0x55c] sm:$0xf]
  %v3137 = vld [vmem:[%s4 + $0x560] sm:$0xf]
  %v3138 = vld [vmem:[%s4 + $0x564] sm:$0xf]
  %v3139 = vld [vmem:[%s4 + $0x568] sm:$0xf]
  %v3140 = vld [vmem:[%s4 + $0x56c] sm:$0xf]
  %v3141 = vld [vmem:[%s4 + $0x570] sm:$0xf]
  %v3142 = vld [vmem:[%s4 + $0x574] sm:$0xf]
  %v3143 = vld [vmem:[%s4 + $0x578] sm:$0xf]
  %v3144 = vld [vmem:[%s4 + $0x57c] sm:$0xf]
  %v3145 = vld [vmem:[%s4 + $0x580] sm:$0xf]
  %v3146 = vld [vmem:[%s4 + $0x584] sm:$0xf]
  %v3147 = vld [vmem:[%s4 + $0x588] sm:$0xf]
  %v3148 = vld [vmem:[%s4 + $0x58c] sm:$0xf]
  %v3149 = vld [vmem:[%s4 + $0x590] sm:$0xf]
  %v3150 = vld [vmem:[%s4 + $0x594] sm:$0xf]
  %v3151 = vld [vmem:[%s4 + $0x598] sm:$0xf]
  %v3152 = vld [vmem:[%s4 + $0x59c] sm:$0xf]
  %v3153 = vld [vmem:[%s4 + $0x5a0] sm:$0xf]
  %v3154 = vld [vmem:[%s4 + $0x5a4] sm:$0xf]
  %v3155 = vld [vmem:[%s4 + $0x5a8] sm:$0xf]
  %v3156 = vld [vmem:[%s4 + $0x5ac] sm:$0xf]
  %v3157 = vld [vmem:[%s4 + $0x5b0] sm:$0xf]
  %v3158 = vld [vmem:[%s4 + $0x5b4] sm:$0xf]
  %v3159 = vld [vmem:[%s4 + $0x5b8] sm:$0xf]
  %v3160 = vld [vmem:[%s4 + $0x5bc] sm:$0xf]
  %v3161 = vld [vmem:[%s4 + $0x5c0] sm:$0xf]
  %v3162 = vld [vmem:[%s4 + $0x5c4] sm:$0xf]
  %v3163 = vld [vmem:[%s4 + $0x5c8] sm:$0xf]
  %v3164 = vld [vmem:[%s4 + $0x5cc] sm:$0xf]
  %v3165 = vld [vmem:[%s4 + $0x5d0] sm:$0xf]
  %v3166 = vld [vmem:[%s4 + $0x5d4] sm:$0xf]
  %v3167 = vld [vmem:[%s4 + $0x5d8] sm:$0xf]
  %v3168 = vld [vmem:[%s4 + $0x5dc] sm:$0xf]
  %v3169 = vld [vmem:[%s4 + $0x5e0] sm:$0xf]
  %v3170 = vld [vmem:[%s4 + $0x5e4] sm:$0xf]
  %v3171 = vld [vmem:[%s4 + $0x5e8] sm:$0xf]
  %v3172 = vld [vmem:[%s4 + $0x5ec] sm:$0xf]
  %v3173 = vld [vmem:[%s4 + $0x5f0] sm:$0xf]
  %v3174 = vld [vmem:[%s4 + $0x5f4] sm:$0xf]
  %v3175 = vld [vmem:[%s4 + $0x5f8] sm:$0xf]
  %v3176 = vld [vmem:[%s4 + $0x5fc] sm:$0xf]
  %v3177 = vld [vmem:[%s4 + $0x600] sm:$0xf]
  %v3178 = vld [vmem:[%s4 + $0x604] sm:$0xf]
  %v3179 = vld [vmem:[%s4 + $0x608] sm:$0xf]
  %v3180 = vld [vmem:[%s4 + $0x60c] sm:$0xf]
  %v3181 = vld [vmem:[%s4 + $0x610] sm:$0xf]
  %v3182 = vld [vmem:[%s4 + $0x614] sm:$0xf]
  %v3183 = vld [vmem:[%s4 + $0x618] sm:$0xf]
  %v3184 = vld [vmem:[%s4 + $0x61c] sm:$0xf]
  %v3185 = vld [vmem:[%s4 + $0x620] sm:$0xf]
  %v3186 = vld [vmem:[%s4 + $0x624] sm:$0xf]
  %v3187 = vld [vmem:[%s4 + $0x628] sm:$0xf]
  %v3188 = vld [vmem:[%s4 + $0x62c] sm:$0xf]
  %v3189 = vld [vmem:[%s4 + $0x630] sm:$0xf]
  %v3190 = vld [vmem:[%s4 + $0x634] sm:$0xf]
  %v3191 = vld [vmem:[%s4 + $0x638] sm:$0xf]
  %v3192 = vld [vmem:[%s4 + $0x63c] sm:$0xf]
  %v3193 = vld [vmem:[%s5] sm:$0x1]
  %v3195 = vlaneseq
  %v3196 = vshrl.u32 %v3195, 7
  %v3197 = vsub.s32 0, %v3196
  %v3198 = vrot.slane %v3193, %v3197
  %v3600 = vunpack.c.l.b16 %v2793
  %v3601 = vunpack.c.l.b16 %v2794
  %v3602 = vunpack.c.l.b16 %v2795
  %v3603 = vunpack.c.l.b16 %v2796
  %v3604 = vunpack.c.l.b16 %v2797
  %v3605 = vunpack.c.l.b16 %v2798
  %v3606 = vunpack.c.l.b16 %v2799
  %v3607 = vunpack.c.l.b16 %v2800
  %v3608 = vunpack.c.l.b16 %v2801
  %v3609 = vunpack.c.l.b16 %v2802
  %v3610 = vunpack.c.l.b16 %v2803
  %v3611 = vunpack.c.l.b16 %v2804
  %v3612 = vunpack.c.l.b16 %v2805
  %v3613 = vunpack.c.l.b16 %v2806
  %v3614 = vunpack.c.l.b16 %v2807
  %v3615 = vunpack.c.l.b16 %v2808
  %v3616 = vunpack.c.l.b16 %v2809
  %v3617 = vunpack.c.l.b16 %v2810
  %v3618 = vunpack.c.l.b16 %v2811
  %v3619 = vunpack.c.l.b16 %v2812
  %v3620 = vunpack.c.l.b16 %v2813
  %v3621 = vunpack.c.l.b16 %v2814
  %v3622 = vunpack.c.l.b16 %v2815
  %v3623 = vunpack.c.l.b16 %v2816
  %v3624 = vunpack.c.l.b16 %v2817
  %v3625 = vunpack.c.l.b16 %v2818
  %v3626 = vunpack.c.l.b16 %v2819
  %v3627 = vunpack.c.l.b16 %v2820
  %v3628 = vunpack.c.l.b16 %v2821
  %v3629 = vunpack.c.l.b16 %v2822
  %v3630 = vunpack.c.l.b16 %v2823
  %v3631 = vunpack.c.l.b16 %v2824
  %v3632 = vunpack.c.l.b16 %v2825
  %v3633 = vunpack.c.l.b16 %v2826
  %v3634 = vunpack.c.l.b16 %v2827
  %v3635 = vunpack.c.l.b16 %v2828
  %v3636 = vunpack.c.l.b16 %v2829
  %v3637 = vunpack.c.l.b16 %v2830
  %v3638 = vunpack.c.l.b16 %v2831
  %v3639 = vunpack.c.l.b16 %v2832
  %v3640 = vunpack.c.l.b16 %v2833
  %v3641 = vunpack.c.l.b16 %v2834
  %v3642 = vunpack.c.l.b16 %v2835
  %v3643 = vunpack.c.l.b16 %v2836
  %v3644 = vunpack.c.l.b16 %v2837
  %v3645 = vunpack.c.l.b16 %v2838
  %v3646 = vunpack.c.l.b16 %v2839
  %v3647 = vunpack.c.l.b16 %v2840
  %v3648 = vunpack.c.l.b16 %v2841
  %v3649 = vunpack.c.l.b16 %v2842
  %v3650 = vunpack.c.l.b16 %v2843
  %v3651 = vunpack.c.l.b16 %v2844
  %v3652 = vunpack.c.l.b16 %v2845
  %v3653 = vunpack.c.l.b16 %v2846
  %v3654 = vunpack.c.l.b16 %v2847
  %v3655 = vunpack.c.l.b16 %v2848
  %v3656 = vunpack.c.l.b16 %v2849
  %v3657 = vunpack.c.l.b16 %v2850
  %v3658 = vunpack.c.l.b16 %v2851
  %v3659 = vunpack.c.l.b16 %v2852
  %v3660 = vunpack.c.l.b16 %v2853
  %v3661 = vunpack.c.l.b16 %v2854
  %v3662 = vunpack.c.l.b16 %v2855
  %v3663 = vunpack.c.l.b16 %v2856
  %v3664 = vunpack.c.l.b16 %v2857
  %v3665 = vunpack.c.l.b16 %v2858
  %v3666 = vunpack.c.l.b16 %v2859
  %v3667 = vunpack.c.l.b16 %v2860
  %v3668 = vunpack.c.l.b16 %v2861
  %v3669 = vunpack.c.l.b16 %v2862
  %v3670 = vunpack.c.l.b16 %v2863
  %v3671 = vunpack.c.l.b16 %v2864
  %v3672 = vunpack.c.l.b16 %v2865
  %v3673 = vunpack.c.l.b16 %v2866
  %v3674 = vunpack.c.l.b16 %v2867
  %v3675 = vunpack.c.l.b16 %v2868
  %v3676 = vunpack.c.l.b16 %v2869
  %v3677 = vunpack.c.l.b16 %v2870
  %v3678 = vunpack.c.l.b16 %v2871
  %v3679 = vunpack.c.l.b16 %v2872
  %v3680 = vunpack.c.l.b16 %v2873
  %v3681 = vunpack.c.l.b16 %v2874
  %v3682 = vunpack.c.l.b16 %v2875
  %v3683 = vunpack.c.l.b16 %v2876
  %v3684 = vunpack.c.l.b16 %v2877
  %v3685 = vunpack.c.l.b16 %v2878
  %v3686 = vunpack.c.l.b16 %v2879
  %v3687 = vunpack.c.l.b16 %v2880
  %v3688 = vunpack.c.l.b16 %v2881
  %v3689 = vunpack.c.l.b16 %v2882
  %v3690 = vunpack.c.l.b16 %v2883
  %v3691 = vunpack.c.l.b16 %v2884
  %v3692 = vunpack.c.l.b16 %v2885
  %v3693 = vunpack.c.l.b16 %v2886
  %v3694 = vunpack.c.l.b16 %v2887
  %v3695 = vunpack.c.l.b16 %v2888
  %v3696 = vunpack.c.l.b16 %v2889
  %v3697 = vunpack.c.l.b16 %v2890
  %v3698 = vunpack.c.l.b16 %v2891
  %v3699 = vunpack.c.l.b16 %v2892
  %v3700 = vunpack.c.l.b16 %v2893
  %v3701 = vunpack.c.l.b16 %v2894
  %v3702 = vunpack.c.l.b16 %v2895
  %v3703 = vunpack.c.l.b16 %v2896
  %v3704 = vunpack.c.l.b16 %v2897
  %v3705 = vunpack.c.l.b16 %v2898
  %v3706 = vunpack.c.l.b16 %v2899
  %v3707 = vunpack.c.l.b16 %v2900
  %v3708 = vunpack.c.l.b16 %v2901
  %v3709 = vunpack.c.l.b16 %v2902
  %v3710 = vunpack.c.l.b16 %v2903
  %v3711 = vunpack.c.l.b16 %v2904
  %v3712 = vunpack.c.l.b16 %v2905
  %v3713 = vunpack.c.l.b16 %v2906
  %v3714 = vunpack.c.l.b16 %v2907
  %v3715 = vunpack.c.l.b16 %v2908
  %v3716 = vunpack.c.l.b16 %v2909
  %v3717 = vunpack.c.l.b16 %v2910
  %v3718 = vunpack.c.l.b16 %v2911
  %v3719 = vunpack.c.l.b16 %v2912
  %v3720 = vunpack.c.l.b16 %v2913
  %v3721 = vunpack.c.l.b16 %v2914
  %v3722 = vunpack.c.l.b16 %v2915
  %v3723 = vunpack.c.l.b16 %v2916
  %v3724 = vunpack.c.l.b16 %v2917
  %v3725 = vunpack.c.l.b16 %v2918
  %v3726 = vunpack.c.l.b16 %v2919
  %v3727 = vunpack.c.l.b16 %v2920
  %v3728 = vunpack.c.l.b16 %v2921
  %v3729 = vunpack.c.l.b16 %v2922
  %v3730 = vunpack.c.l.b16 %v2923
  %v3731 = vunpack.c.l.b16 %v2924
  %v3732 = vunpack.c.l.b16 %v2925
  %v3733 = vunpack.c.l.b16 %v2926
  %v3734 = vunpack.c.l.b16 %v2927
  %v3735 = vunpack.c.l.b16 %v2928
  %v3736 = vunpack.c.l.b16 %v2929
  %v3737 = vunpack.c.l.b16 %v2930
  %v3738 = vunpack.c.l.b16 %v2931
  %v3739 = vunpack.c.l.b16 %v2932
  %v3740 = vunpack.c.l.b16 %v2933
  %v3741 = vunpack.c.l.b16 %v2934
  %v3742 = vunpack.c.l.b16 %v2935
  %v3743 = vunpack.c.l.b16 %v2936
  %v3744 = vunpack.c.l.b16 %v2937
  %v3745 = vunpack.c.l.b16 %v2938
  %v3746 = vunpack.c.l.b16 %v2939
  %v3747 = vunpack.c.l.b16 %v2940
  %v3748 = vunpack.c.l.b16 %v2941
  %v3749 = vunpack.c.l.b16 %v2942
  %v3750 = vunpack.c.l.b16 %v2943
  %v3751 = vunpack.c.l.b16 %v2944
  %v3752 = vunpack.c.l.b16 %v2945
  %v3753 = vunpack.c.l.b16 %v2946
  %v3754 = vunpack.c.l.b16 %v2947
  %v3755 = vunpack.c.l.b16 %v2948
  %v3756 = vunpack.c.l.b16 %v2949
  %v3757 = vunpack.c.l.b16 %v2950
  %v3758 = vunpack.c.l.b16 %v2951
  %v3759 = vunpack.c.l.b16 %v2952
  %v3760 = vunpack.c.l.b16 %v2953
  %v3761 = vunpack.c.l.b16 %v2954
  %v3762 = vunpack.c.l.b16 %v2955
  %v3763 = vunpack.c.l.b16 %v2956
  %v3764 = vunpack.c.l.b16 %v2957
  %v3765 = vunpack.c.l.b16 %v2958
  %v3766 = vunpack.c.l.b16 %v2959
  %v3767 = vunpack.c.l.b16 %v2960
  %v3768 = vunpack.c.l.b16 %v2961
  %v3769 = vunpack.c.l.b16 %v2962
  %v3770 = vunpack.c.l.b16 %v2963
  %v3771 = vunpack.c.l.b16 %v2964
  %v3772 = vunpack.c.l.b16 %v2965
  %v3773 = vunpack.c.l.b16 %v2966
  %v3774 = vunpack.c.l.b16 %v2967
  %v3775 = vunpack.c.l.b16 %v2968
  %v3776 = vunpack.c.l.b16 %v2969
  %v3777 = vunpack.c.l.b16 %v2970
  %v3778 = vunpack.c.l.b16 %v2971
  %v3779 = vunpack.c.l.b16 %v2972
  %v3780 = vunpack.c.l.b16 %v2973
  %v3781 = vunpack.c.l.b16 %v2974
  %v3782 = vunpack.c.l.b16 %v2975
  %v3783 = vunpack.c.l.b16 %v2976
  %v3784 = vunpack.c.l.b16 %v2977
  %v3785 = vunpack.c.l.b16 %v2978
  %v3786 = vunpack.c.l.b16 %v2979
  %v3787 = vunpack.c.l.b16 %v2980
  %v3788 = vunpack.c.l.b16 %v2981
  %v3789 = vunpack.c.l.b16 %v2982
  %v3790 = vunpack.c.l.b16 %v2983
  %v3791 = vunpack.c.l.b16 %v2984
  %v3792 = vunpack.c.l.b16 %v2985
  %v3793 = vunpack.c.l.b16 %v2986
  %v3794 = vunpack.c.l.b16 %v2987
  %v3795 = vunpack.c.l.b16 %v2988
  %v3796 = vunpack.c.l.b16 %v2989
  %v3797 = vunpack.c.l.b16 %v2990
  %v3798 = vunpack.c.l.b16 %v2991
  %v3799 = vunpack.c.l.b16 %v2992
  %v3800 = vunpack.c.l.b16 %v2993
  %v3801 = vunpack.c.l.b16 %v2994
  %v3802 = vunpack.c.l.b16 %v2995
  %v3803 = vunpack.c.l.b16 %v2996
  %v3804 = vunpack.c.l.b16 %v2997
  %v3805 = vunpack.c.l.b16 %v2998
  %v3806 = vunpack.c.l.b16 %v2999
  %v3807 = vunpack.c.l.b16 %v3000
  %v3808 = vunpack.c.l.b16 %v3001
  %v3809 = vunpack.c.l.b16 %v3002
  %v3810 = vunpack.c.l.b16 %v3003
  %v3811 = vunpack.c.l.b16 %v3004
  %v3812 = vunpack.c.l.b16 %v3005
  %v3813 = vunpack.c.l.b16 %v3006
  %v3814 = vunpack.c.l.b16 %v3007
  %v3815 = vunpack.c.l.b16 %v3008
  %v3816 = vunpack.c.l.b16 %v3009
  %v3817 = vunpack.c.l.b16 %v3010
  %v3818 = vunpack.c.l.b16 %v3011
  %v3819 = vunpack.c.l.b16 %v3012
  %v3820 = vunpack.c.l.b16 %v3013
  %v3821 = vunpack.c.l.b16 %v3014
  %v3822 = vunpack.c.l.b16 %v3015
  %v3823 = vunpack.c.l.b16 %v3016
  %v3824 = vunpack.c.l.b16 %v3017
  %v3825 = vunpack.c.l.b16 %v3018
  %v3826 = vunpack.c.l.b16 %v3019
  %v3827 = vunpack.c.l.b16 %v3020
  %v3828 = vunpack.c.l.b16 %v3021
  %v3829 = vunpack.c.l.b16 %v3022
  %v3830 = vunpack.c.l.b16 %v3023
  %v3831 = vunpack.c.l.b16 %v3024
  %v3832 = vunpack.c.l.b16 %v3025
  %v3833 = vunpack.c.l.b16 %v3026
  %v3834 = vunpack.c.l.b16 %v3027
  %v3835 = vunpack.c.l.b16 %v3028
  %v3836 = vunpack.c.l.b16 %v3029
  %v3837 = vunpack.c.l.b16 %v3030
  %v3838 = vunpack.c.l.b16 %v3031
  %v3839 = vunpack.c.l.b16 %v3032
  %v3840 = vunpack.c.l.b16 %v3033
  %v3841 = vunpack.c.l.b16 %v3034
  %v3842 = vunpack.c.l.b16 %v3035
  %v3843 = vunpack.c.l.b16 %v3036
  %v3844 = vunpack.c.l.b16 %v3037
  %v3845 = vunpack.c.l.b16 %v3038
  %v3846 = vunpack.c.l.b16 %v3039
  %v3847 = vunpack.c.l.b16 %v3040
  %v3848 = vunpack.c.l.b16 %v3041
  %v3849 = vunpack.c.l.b16 %v3042
  %v3850 = vunpack.c.l.b16 %v3043
  %v3851 = vunpack.c.l.b16 %v3044
  %v3852 = vunpack.c.l.b16 %v3045
  %v3853 = vunpack.c.l.b16 %v3046
  %v3854 = vunpack.c.l.b16 %v3047
  %v3855 = vunpack.c.l.b16 %v3048
  %v3856 = vunpack.c.l.b16 %v3049
  %v3857 = vunpack.c.l.b16 %v3050
  %v3858 = vunpack.c.l.b16 %v3051
  %v3859 = vunpack.c.l.b16 %v3052
  %v3860 = vunpack.c.l.b16 %v3053
  %v3861 = vunpack.c.l.b16 %v3054
  %v3862 = vunpack.c.l.b16 %v3055
  %v3863 = vunpack.c.l.b16 %v3056
  %v3864 = vunpack.c.l.b16 %v3057
  %v3865 = vunpack.c.l.b16 %v3058
  %v3866 = vunpack.c.l.b16 %v3059
  %v3867 = vunpack.c.l.b16 %v3060
  %v3868 = vunpack.c.l.b16 %v3061
  %v3869 = vunpack.c.l.b16 %v3062
  %v3870 = vunpack.c.l.b16 %v3063
  %v3871 = vunpack.c.l.b16 %v3064
  %v3872 = vunpack.c.l.b16 %v3065
  %v3873 = vunpack.c.l.b16 %v3066
  %v3874 = vunpack.c.l.b16 %v3067
  %v3875 = vunpack.c.l.b16 %v3068
  %v3876 = vunpack.c.l.b16 %v3069
  %v3877 = vunpack.c.l.b16 %v3070
  %v3878 = vunpack.c.l.b16 %v3071
  %v3879 = vunpack.c.l.b16 %v3072
  %v3880 = vunpack.c.l.b16 %v3073
  %v3881 = vunpack.c.l.b16 %v3074
  %v3882 = vunpack.c.l.b16 %v3075
  %v3883 = vunpack.c.l.b16 %v3076
  %v3884 = vunpack.c.l.b16 %v3077
  %v3885 = vunpack.c.l.b16 %v3078
  %v3886 = vunpack.c.l.b16 %v3079
  %v3887 = vunpack.c.l.b16 %v3080
  %v3888 = vunpack.c.l.b16 %v3081
  %v3889 = vunpack.c.l.b16 %v3082
  %v3890 = vunpack.c.l.b16 %v3083
  %v3891 = vunpack.c.l.b16 %v3084
  %v3892 = vunpack.c.l.b16 %v3085
  %v3893 = vunpack.c.l.b16 %v3086
  %v3894 = vunpack.c.l.b16 %v3087
  %v3895 = vunpack.c.l.b16 %v3088
  %v3896 = vunpack.c.l.b16 %v3089
  %v3897 = vunpack.c.l.b16 %v3090
  %v3898 = vunpack.c.l.b16 %v3091
  %v3899 = vunpack.c.l.b16 %v3092
  %v3900 = vunpack.c.l.b16 %v3093
  %v3901 = vunpack.c.l.b16 %v3094
  %v3902 = vunpack.c.l.b16 %v3095
  %v3903 = vunpack.c.l.b16 %v3096
  %v3904 = vunpack.c.l.b16 %v3097
  %v3905 = vunpack.c.l.b16 %v3098
  %v3906 = vunpack.c.l.b16 %v3099
  %v3907 = vunpack.c.l.b16 %v3100
  %v3908 = vunpack.c.l.b16 %v3101
  %v3909 = vunpack.c.l.b16 %v3102
  %v3910 = vunpack.c.l.b16 %v3103
  %v3911 = vunpack.c.l.b16 %v3104
  %v3912 = vunpack.c.l.b16 %v3105
  %v3913 = vunpack.c.l.b16 %v3106
  %v3914 = vunpack.c.l.b16 %v3107
  %v3915 = vunpack.c.l.b16 %v3108
  %v3916 = vunpack.c.l.b16 %v3109
  %v3917 = vunpack.c.l.b16 %v3110
  %v3918 = vunpack.c.l.b16 %v3111
  %v3919 = vunpack.c.l.b16 %v3112
  %v3920 = vunpack.c.l.b16 %v3113
  %v3921 = vunpack.c.l.b16 %v3114
  %v3922 = vunpack.c.l.b16 %v3115
  %v3923 = vunpack.c.l.b16 %v3116
  %v3924 = vunpack.c.l.b16 %v3117
  %v3925 = vunpack.c.l.b16 %v3118
  %v3926 = vunpack.c.l.b16 %v3119
  %v3927 = vunpack.c.l.b16 %v3120
  %v3928 = vunpack.c.l.b16 %v3121
  %v3929 = vunpack.c.l.b16 %v3122
  %v3930 = vunpack.c.l.b16 %v3123
  %v3931 = vunpack.c.l.b16 %v3124
  %v3932 = vunpack.c.l.b16 %v3125
  %v3933 = vunpack.c.l.b16 %v3126
  %v3934 = vunpack.c.l.b16 %v3127
  %v3935 = vunpack.c.l.b16 %v3128
  %v3936 = vunpack.c.l.b16 %v3129
  %v3937 = vunpack.c.l.b16 %v3130
  %v3938 = vunpack.c.l.b16 %v3131
  %v3939 = vunpack.c.l.b16 %v3132
  %v3940 = vunpack.c.l.b16 %v3133
  %v3941 = vunpack.c.l.b16 %v3134
  %v3942 = vunpack.c.l.b16 %v3135
  %v3943 = vunpack.c.l.b16 %v3136
  %v3944 = vunpack.c.l.b16 %v3137
  %v3945 = vunpack.c.l.b16 %v3138
  %v3946 = vunpack.c.l.b16 %v3139
  %v3947 = vunpack.c.l.b16 %v3140
  %v3948 = vunpack.c.l.b16 %v3141
  %v3949 = vunpack.c.l.b16 %v3142
  %v3950 = vunpack.c.l.b16 %v3143
  %v3951 = vunpack.c.l.b16 %v3144
  %v3952 = vunpack.c.l.b16 %v3145
  %v3953 = vunpack.c.l.b16 %v3146
  %v3954 = vunpack.c.l.b16 %v3147
  %v3955 = vunpack.c.l.b16 %v3148
  %v3956 = vunpack.c.l.b16 %v3149
  %v3957 = vunpack.c.l.b16 %v3150
  %v3958 = vunpack.c.l.b16 %v3151
  %v3959 = vunpack.c.l.b16 %v3152
  %v3960 = vunpack.c.l.b16 %v3153
  %v3961 = vunpack.c.l.b16 %v3154
  %v3962 = vunpack.c.l.b16 %v3155
  %v3963 = vunpack.c.l.b16 %v3156
  %v3964 = vunpack.c.l.b16 %v3157
  %v3965 = vunpack.c.l.b16 %v3158
  %v3966 = vunpack.c.l.b16 %v3159
  %v3967 = vunpack.c.l.b16 %v3160
  %v3968 = vunpack.c.l.b16 %v3161
  %v3969 = vunpack.c.l.b16 %v3162
  %v3970 = vunpack.c.l.b16 %v3163
  %v3971 = vunpack.c.l.b16 %v3164
  %v3972 = vunpack.c.l.b16 %v3165
  %v3973 = vunpack.c.l.b16 %v3166
  %v3974 = vunpack.c.l.b16 %v3167
  %v3975 = vunpack.c.l.b16 %v3168
  %v3976 = vunpack.c.l.b16 %v3169
  %v3977 = vunpack.c.l.b16 %v3170
  %v3978 = vunpack.c.l.b16 %v3171
  %v3979 = vunpack.c.l.b16 %v3172
  %v3980 = vunpack.c.l.b16 %v3173
  %v3981 = vunpack.c.l.b16 %v3174
  %v3982 = vunpack.c.l.b16 %v3175
  %v3983 = vunpack.c.l.b16 %v3176
  %v3984 = vunpack.c.l.b16 %v3177
  %v3985 = vunpack.c.l.b16 %v3178
  %v3986 = vunpack.c.l.b16 %v3179
  %v3987 = vunpack.c.l.b16 %v3180
  %v3988 = vunpack.c.l.b16 %v3181
  %v3989 = vunpack.c.l.b16 %v3182
  %v3990 = vunpack.c.l.b16 %v3183
  %v3991 = vunpack.c.l.b16 %v3184
  %v3992 = vunpack.c.l.b16 %v3185
  %v3993 = vunpack.c.l.b16 %v3186
  %v3994 = vunpack.c.l.b16 %v3187
  %v3995 = vunpack.c.l.b16 %v3188
  %v3996 = vunpack.c.l.b16 %v3189
  %v3997 = vunpack.c.l.b16 %v3190
  %v3998 = vunpack.c.l.b16 %v3191
  %v3999 = vunpack.c.l.b16 %v3192
  %v4000 = vpack.c.b16 %v3601, %v3600
  %v4001 = vpack.c.b16 %v3603, %v3602
  %v4002 = vpack.c.b16 %v3605, %v3604
  %v4003 = vpack.c.b16 %v3607, %v3606
  %v4004 = vpack.c.b16 %v3609, %v3608
  %v4005 = vpack.c.b16 %v3611, %v3610
  %v4006 = vpack.c.b16 %v3613, %v3612
  %v4007 = vpack.c.b16 %v3615, %v3614
  %v4008 = vpack.c.b16 %v3617, %v3616
  %v4009 = vpack.c.b16 %v3619, %v3618
  %v4010 = vpack.c.b16 %v3621, %v3620
  %v4011 = vpack.c.b16 %v3623, %v3622
  %v4012 = vpack.c.b16 %v3625, %v3624
  %v4013 = vpack.c.b16 %v3627, %v3626
  %v4014 = vpack.c.b16 %v3629, %v3628
  %v4015 = vpack.c.b16 %v3631, %v3630
  %v4016 = vpack.c.b16 %v3633, %v3632
  %v4017 = vpack.c.b16 %v3635, %v3634
  %v4018 = vpack.c.b16 %v3637, %v3636
  %v4019 = vpack.c.b16 %v3639, %v3638
  %v4020 = vpack.c.b16 %v3641, %v3640
  %v4021 = vpack.c.b16 %v3643, %v3642
  %v4022 = vpack.c.b16 %v3645, %v3644
  %v4023 = vpack.c.b16 %v3647, %v3646
  %v4024 = vpack.c.b16 %v3649, %v3648
  %v4025 = vpack.c.b16 %v3651, %v3650
  %v4026 = vpack.c.b16 %v3653, %v3652
  %v4027 = vpack.c.b16 %v3655, %v3654
  %v4028 = vpack.c.b16 %v3657, %v3656
  %v4029 = vpack.c.b16 %v3659, %v3658
  %v4030 = vpack.c.b16 %v3661, %v3660
  %v4031 = vpack.c.b16 %v3663, %v3662
  %v4032 = vpack.c.b16 %v3665, %v3664
  %v4033 = vpack.c.b16 %v3667, %v3666
  %v4034 = vpack.c.b16 %v3669, %v3668
  %v4035 = vpack.c.b16 %v3671, %v3670
  %v4036 = vpack.c.b16 %v3673, %v3672
  %v4037 = vpack.c.b16 %v3675, %v3674
  %v4038 = vpack.c.b16 %v3677, %v3676
  %v4039 = vpack.c.b16 %v3679, %v3678
  %v4040 = vpack.c.b16 %v3681, %v3680
  %v4041 = vpack.c.b16 %v3683, %v3682
  %v4042 = vpack.c.b16 %v3685, %v3684
  %v4043 = vpack.c.b16 %v3687, %v3686
  %v4044 = vpack.c.b16 %v3689, %v3688
  %v4045 = vpack.c.b16 %v3691, %v3690
  %v4046 = vpack.c.b16 %v3693, %v3692
  %v4047 = vpack.c.b16 %v3695, %v3694
  %v4048 = vpack.c.b16 %v3697, %v3696
  %v4049 = vpack.c.b16 %v3699, %v3698
  %v4050 = vpack.c.b16 %v3701, %v3700
  %v4051 = vpack.c.b16 %v3703, %v3702
  %v4052 = vpack.c.b16 %v3705, %v3704
  %v4053 = vpack.c.b16 %v3707, %v3706
  %v4054 = vpack.c.b16 %v3709, %v3708
  %v4055 = vpack.c.b16 %v3711, %v3710
  %v4056 = vpack.c.b16 %v3713, %v3712
  %v4057 = vpack.c.b16 %v3715, %v3714
  %v4058 = vpack.c.b16 %v3717, %v3716
  %v4059 = vpack.c.b16 %v3719, %v3718
  %v4060 = vpack.c.b16 %v3721, %v3720
  %v4061 = vpack.c.b16 %v3723, %v3722
  %v4062 = vpack.c.b16 %v3725, %v3724
  %v4063 = vpack.c.b16 %v3727, %v3726
  %v4064 = vpack.c.b16 %v3729, %v3728
  %v4065 = vpack.c.b16 %v3731, %v3730
  %v4066 = vpack.c.b16 %v3733, %v3732
  %v4067 = vpack.c.b16 %v3735, %v3734
  %v4068 = vpack.c.b16 %v3737, %v3736
  %v4069 = vpack.c.b16 %v3739, %v3738
  %v4070 = vpack.c.b16 %v3741, %v3740
  %v4071 = vpack.c.b16 %v3743, %v3742
  %v4072 = vpack.c.b16 %v3745, %v3744
  %v4073 = vpack.c.b16 %v3747, %v3746
  %v4074 = vpack.c.b16 %v3749, %v3748
  %v4075 = vpack.c.b16 %v3751, %v3750
  %v4076 = vpack.c.b16 %v3753, %v3752
  %v4077 = vpack.c.b16 %v3755, %v3754
  %v4078 = vpack.c.b16 %v3757, %v3756
  %v4079 = vpack.c.b16 %v3759, %v3758
  %v4080 = vpack.c.b16 %v3761, %v3760
  %v4081 = vpack.c.b16 %v3763, %v3762
  %v4082 = vpack.c.b16 %v3765, %v3764
  %v4083 = vpack.c.b16 %v3767, %v3766
  %v4084 = vpack.c.b16 %v3769, %v3768
  %v4085 = vpack.c.b16 %v3771, %v3770
  %v4086 = vpack.c.b16 %v3773, %v3772
  %v4087 = vpack.c.b16 %v3775, %v3774
  %v4088 = vpack.c.b16 %v3777, %v3776
  %v4089 = vpack.c.b16 %v3779, %v3778
  %v4090 = vpack.c.b16 %v3781, %v3780
  %v4091 = vpack.c.b16 %v3783, %v3782
  %v4092 = vpack.c.b16 %v3785, %v3784
  %v4093 = vpack.c.b16 %v3787, %v3786
  %v4094 = vpack.c.b16 %v3789, %v3788
  %v4095 = vpack.c.b16 %v3791, %v3790
  %v4096 = vpack.c.b16 %v3793, %v3792
  %v4097 = vpack.c.b16 %v3795, %v3794
  %v4098 = vpack.c.b16 %v3797, %v3796
  %v4099 = vpack.c.b16 %v3799, %v3798
  %v4100 = vpack.c.b16 %v3801, %v3800
  %v4101 = vpack.c.b16 %v3803, %v3802
  %v4102 = vpack.c.b16 %v3805, %v3804
  %v4103 = vpack.c.b16 %v3807, %v3806
  %v4104 = vpack.c.b16 %v3809, %v3808
  %v4105 = vpack.c.b16 %v3811, %v3810
  %v4106 = vpack.c.b16 %v3813, %v3812
  %v4107 = vpack.c.b16 %v3815, %v3814
  %v4108 = vpack.c.b16 %v3817, %v3816
  %v4109 = vpack.c.b16 %v3819, %v3818
  %v4110 = vpack.c.b16 %v3821, %v3820
  %v4111 = vpack.c.b16 %v3823, %v3822
  %v4112 = vpack.c.b16 %v3825, %v3824
  %v4113 = vpack.c.b16 %v3827, %v3826
  %v4114 = vpack.c.b16 %v3829, %v3828
  %v4115 = vpack.c.b16 %v3831, %v3830
  %v4116 = vpack.c.b16 %v3833, %v3832
  %v4117 = vpack.c.b16 %v3835, %v3834
  %v4118 = vpack.c.b16 %v3837, %v3836
  %v4119 = vpack.c.b16 %v3839, %v3838
  %v4120 = vpack.c.b16 %v3841, %v3840
  %v4121 = vpack.c.b16 %v3843, %v3842
  %v4122 = vpack.c.b16 %v3845, %v3844
  %v4123 = vpack.c.b16 %v3847, %v3846
  %v4124 = vpack.c.b16 %v3849, %v3848
  %v4125 = vpack.c.b16 %v3851, %v3850
  %v4126 = vpack.c.b16 %v3853, %v3852
  %v4127 = vpack.c.b16 %v3855, %v3854
  %v4128 = vpack.c.b16 %v3857, %v3856
  %v4129 = vpack.c.b16 %v3859, %v3858
  %v4130 = vpack.c.b16 %v3861, %v3860
  %v4131 = vpack.c.b16 %v3863, %v3862
  %v4132 = vpack.c.b16 %v3865, %v3864
  %v4133 = vpack.c.b16 %v3867, %v3866
  %v4134 = vpack.c.b16 %v3869, %v3868
  %v4135 = vpack.c.b16 %v3871, %v3870
  %v4136 = vpack.c.b16 %v3873, %v3872
  %v4137 = vpack.c.b16 %v3875, %v3874
  %v4138 = vpack.c.b16 %v3877, %v3876
  %v4139 = vpack.c.b16 %v3879, %v3878
  %v4140 = vpack.c.b16 %v3881, %v3880
  %v4141 = vpack.c.b16 %v3883, %v3882
  %v4142 = vpack.c.b16 %v3885, %v3884
  %v4143 = vpack.c.b16 %v3887, %v3886
  %v4144 = vpack.c.b16 %v3889, %v3888
  %v4145 = vpack.c.b16 %v3891, %v3890
  %v4146 = vpack.c.b16 %v3893, %v3892
  %v4147 = vpack.c.b16 %v3895, %v3894
  %v4148 = vpack.c.b16 %v3897, %v3896
  %v4149 = vpack.c.b16 %v3899, %v3898
  %v4150 = vpack.c.b16 %v3901, %v3900
  %v4151 = vpack.c.b16 %v3903, %v3902
  %v4152 = vpack.c.b16 %v3905, %v3904
  %v4153 = vpack.c.b16 %v3907, %v3906
  %v4154 = vpack.c.b16 %v3909, %v3908
  %v4155 = vpack.c.b16 %v3911, %v3910
  %v4156 = vpack.c.b16 %v3913, %v3912
  %v4157 = vpack.c.b16 %v3915, %v3914
  %v4158 = vpack.c.b16 %v3917, %v3916
  %v4159 = vpack.c.b16 %v3919, %v3918
  %v4160 = vpack.c.b16 %v3921, %v3920
  %v4161 = vpack.c.b16 %v3923, %v3922
  %v4162 = vpack.c.b16 %v3925, %v3924
  %v4163 = vpack.c.b16 %v3927, %v3926
  %v4164 = vpack.c.b16 %v3929, %v3928
  %v4165 = vpack.c.b16 %v3931, %v3930
  %v4166 = vpack.c.b16 %v3933, %v3932
  %v4167 = vpack.c.b16 %v3935, %v3934
  %v4168 = vpack.c.b16 %v3937, %v3936
  %v4169 = vpack.c.b16 %v3939, %v3938
  %v4170 = vpack.c.b16 %v3941, %v3940
  %v4171 = vpack.c.b16 %v3943, %v3942
  %v4172 = vpack.c.b16 %v3945, %v3944
  %v4173 = vpack.c.b16 %v3947, %v3946
  %v4174 = vpack.c.b16 %v3949, %v3948
  %v4175 = vpack.c.b16 %v3951, %v3950
  %v4176 = vpack.c.b16 %v3953, %v3952
  %v4177 = vpack.c.b16 %v3955, %v3954
  %v4178 = vpack.c.b16 %v3957, %v3956
  %v4179 = vpack.c.b16 %v3959, %v3958
  %v4180 = vpack.c.b16 %v3961, %v3960
  %v4181 = vpack.c.b16 %v3963, %v3962
  %v4182 = vpack.c.b16 %v3965, %v3964
  %v4183 = vpack.c.b16 %v3967, %v3966
  %v4184 = vpack.c.b16 %v3969, %v3968
  %v4185 = vpack.c.b16 %v3971, %v3970
  %v4186 = vpack.c.b16 %v3973, %v3972
  %v4187 = vpack.c.b16 %v3975, %v3974
  %v4188 = vpack.c.b16 %v3977, %v3976
  %v4189 = vpack.c.b16 %v3979, %v3978
  %v4190 = vpack.c.b16 %v3981, %v3980
  %v4191 = vpack.c.b16 %v3983, %v3982
  %v4192 = vpack.c.b16 %v3985, %v3984
  %v4193 = vpack.c.b16 %v3987, %v3986
  %v4194 = vpack.c.b16 %v3989, %v3988
  %v4195 = vpack.c.b16 %v3991, %v3990
  %v4196 = vpack.c.b16 %v3993, %v3992
  %v4197 = vpack.c.b16 %v3995, %v3994
  %v4198 = vpack.c.b16 %v3997, %v3996
  %v4199 = vpack.c.b16 %v3999, %v3998
  %4400 = vmatprep.subr.bf16.mxu0 0
  %4401 = vmatpush1.bf16.msra.mxu0 %v4007
  %4402 = vmatprep.subr.bf16.mxu0 0
  %4403 = vmatpush1.bf16.msra.mxu0 %v4006
  %4404 = vmatprep.subr.bf16.mxu0 0
  %4405 = vmatpush1.bf16.msra.mxu0 %v4005
  %4406 = vmatprep.subr.bf16.mxu0 0
  %4407 = vmatpush1.bf16.msra.mxu0 %v4004
  %4408 = vmatprep.subr.bf16.mxu0 0
  %4409 = vmatpush1.bf16.msra.mxu0 %v4003
  %4410 = vmatprep.subr.bf16.mxu0 0
  %4411 = vmatpush1.bf16.msra.mxu0 %v4002
  %4412 = vmatprep.subr.bf16.mxu0 0
  %4413 = vmatpush1.bf16.msra.mxu0 %v4001
  %4414 = vmatprep.subr.bf16.mxu0 0
  %4415 = vmatpush1.bf16.msra.mxu0 %v4000
  %4416 = vmatprep.subr.bf16.mxu0 0
  %4417 = vmatpush2.bf16.msra.mxu0 %v4015
  %4418 = vmatprep.subr.bf16.mxu0 0
  %4419 = vmatpush2.bf16.msra.mxu0 %v4014
  %4420 = vmatprep.subr.bf16.mxu0 0
  %4421 = vmatpush2.bf16.msra.mxu0 %v4013
  %4422 = vmatprep.subr.bf16.mxu0 0
  %4423 = vmatpush2.bf16.msra.mxu0 %v4012
  %4424 = vmatprep.subr.bf16.mxu0 0
  %4425 = vmatpush2.bf16.msra.mxu0 %v4011
  %4426 = vmatprep.subr.bf16.mxu0 0
  %4427 = vmatpush2.bf16.msra.mxu0 %v4010
  %4428 = vmatprep.subr.bf16.mxu0 0
  %4429 = vmatpush2.bf16.msra.mxu0 %v4009
  %4430 = vmatprep.subr.bf16.mxu0 0
  %4431 = vmatpush2.bf16.msra.mxu0 %v4008
  %4432 = vmatprep.mubr.bf16.mxu0 %v2769
  %4433 = vmatmul.mubr.bf16.gmra.mxu0 %v2768
  %v4434 = vpop.f32.mrf.mxu0
  %v4435 = vadd.f32 %v3198, %v4434
  %v4436 = vpop.f32.mrf.mxu0
  %v4437 = vpop.f32.mrf.mxu0
  %v4438 = vpop.f32.mrf.mxu0
  %4439 = vdwg.mxu0
  %4440 = vmatprep.subr.bf16.mxu0 0
  %4441 = vmatpush1.bf16.msra.mxu0 %v4023
  %4442 = vmatprep.subr.bf16.mxu0 0
  %4443 = vmatpush1.bf16.msra.mxu0 %v4022
  %4444 = vmatprep.subr.bf16.mxu0 0
  %4445 = vmatpush1.bf16.msra.mxu0 %v4021
  %4446 = vmatprep.subr.bf16.mxu0 0
  %4447 = vmatpush1.bf16.msra.mxu0 %v4020
  %4448 = vmatprep.subr.bf16.mxu0 0
  %4449 = vmatpush1.bf16.msra.mxu0 %v4019
  %4450 = vmatprep.subr.bf16.mxu0 0
  %4451 = vmatpush1.bf16.msra.mxu0 %v4018
  %4452 = vmatprep.subr.bf16.mxu0 0
  %4453 = vmatpush1.bf16.msra.mxu0 %v4017
  %4454 = vmatprep.subr.bf16.mxu0 0
  %4455 = vmatpush1.bf16.msra.mxu0 %v4016
  %4456 = vmatprep.subr.bf16.mxu0 0
  %4457 = vmatpush2.bf16.msra.mxu0 %v4031
  %4458 = vmatprep.subr.bf16.mxu0 0
  %4459 = vmatpush2.bf16.msra.mxu0 %v4030
  %4460 = vmatprep.subr.bf16.mxu0 0
  %4461 = vmatpush2.bf16.msra.mxu0 %v4029
  %4462 = vmatprep.subr.bf16.mxu0 0
  %4463 = vmatpush2.bf16.msra.mxu0 %v4028
  %4464 = vmatprep.subr.bf16.mxu0 0
  %4465 = vmatpush2.bf16.msra.mxu0 %v4027
  %4466 = vmatprep.subr.bf16.mxu0 0
  %4467 = vmatpush2.bf16.msra.mxu0 %v4026
  %4468 = vmatprep.subr.bf16.mxu0 0
  %4469 = vmatpush2.bf16.msra.mxu0 %v4025
  %4470 = vmatprep.subr.bf16.mxu0 0
  %4471 = vmatpush2.bf16.msra.mxu0 %v4024
  %4472 = vmatprep.mubr.bf16.mxu0 %v2771
  %4473 = vmatmul.mubr.bf16.gmra.mxu0 %v2770
  %v4474 = vpop.f32.mrf.mxu0
  %v4475 = vadd.f32 %v4435, %v4474
  %v4476 = vpop.f32.mrf.mxu0
  %v4477 = vpop.f32.mrf.mxu0
  %v4478 = vpop.f32.mrf.mxu0
  %4479 = vdwg.mxu0
  %4480 = vmatprep.subr.bf16.mxu0 0
  %4481 = vmatpush1.bf16.msra.mxu0 %v4039
  %4482 = vmatprep.subr.bf16.mxu0 0
  %4483 = vmatpush1.bf16.msra.mxu0 %v4038
  %4484 = vmatprep.subr.bf16.mxu0 0
  %4485 = vmatpush1.bf16.msra.mxu0 %v4037
  %4486 = vmatprep.subr.bf16.mxu0 0
  %4487 = vmatpush1.bf16.msra.mxu0 %v4036
  %4488 = vmatprep.subr.bf16.mxu0 0
  %4489 = vmatpush1.bf16.msra.mxu0 %v4035
  %4490 = vmatprep.subr.bf16.mxu0 0
  %4491 = vmatpush1.bf16.msra.mxu0 %v4034
  %4492 = vmatprep.subr.bf16.mxu0 0
  %4493 = vmatpush1.bf16.msra.mxu0 %v4033
  %4494 = vmatprep.subr.bf16.mxu0 0
  %4495 = vmatpush1.bf16.msra.mxu0 %v4032
  %4496 = vmatprep.subr.bf16.mxu0 0
  %4497 = vmatpush2.bf16.msra.mxu0 %v4047
  %4498 = vmatprep.subr.bf16.mxu0 0
  %4499 = vmatpush2.bf16.msra.mxu0 %v4046
  %4500 = vmatprep.subr.bf16.mxu0 0
  %4501 = vmatpush2.bf16.msra.mxu0 %v4045
  %4502 = vmatprep.subr.bf16.mxu0 0
  %4503 = vmatpush2.bf16.msra.mxu0 %v4044
  %4504 = vmatprep.subr.bf16.mxu0 0
  %4505 = vmatpush2.bf16.msra.mxu0 %v4043
  %4506 = vmatprep.subr.bf16.mxu0 0
  %4507 = vmatpush2.bf16.msra.mxu0 %v4042
  %4508 = vmatprep.subr.bf16.mxu0 0
  %4509 = vmatpush2.bf16.msra.mxu0 %v4041
  %4510 = vmatprep.subr.bf16.mxu0 0
  %4511 = vmatpush2.bf16.msra.mxu0 %v4040
  %4512 = vmatprep.mubr.bf16.mxu0 %v2773
  %4513 = vmatmul.mubr.bf16.gmra.mxu0 %v2772
  %v4514 = vpop.f32.mrf.mxu0
  %v4515 = vadd.f32 %v4475, %v4514
  %v4516 = vpop.f32.mrf.mxu0
  %v4517 = vpop.f32.mrf.mxu0
  %v4518 = vpop.f32.mrf.mxu0
  %4519 = vdwg.mxu0
  %4520 = vmatprep.subr.bf16.mxu0 0
  %4521 = vmatpush1.bf16.msra.mxu0 %v4055
  %4522 = vmatprep.subr.bf16.mxu0 0
  %4523 = vmatpush1.bf16.msra.mxu0 %v4054
  %4524 = vmatprep.subr.bf16.mxu0 0
  %4525 = vmatpush1.bf16.msra.mxu0 %v4053
  %4526 = vmatprep.subr.bf16.mxu0 0
  %4527 = vmatpush1.bf16.msra.mxu0 %v4052
  %4528 = vmatprep.subr.bf16.mxu0 0
  %4529 = vmatpush1.bf16.msra.mxu0 %v4051
  %4530 = vmatprep.subr.bf16.mxu0 0
  %4531 = vmatpush1.bf16.msra.mxu0 %v4050
  %4532 = vmatprep.subr.bf16.mxu0 0
  %4533 = vmatpush1.bf16.msra.mxu0 %v4049
  %4534 = vmatprep.subr.bf16.mxu0 0
  %4535 = vmatpush1.bf16.msra.mxu0 %v4048
  %4536 = vmatprep.subr.bf16.mxu0 0
  %4537 = vmatpush2.bf16.msra.mxu0 %v4063
  %4538 = vmatprep.subr.bf16.mxu0 0
  %4539 = vmatpush2.bf16.msra.mxu0 %v4062
  %4540 = vmatprep.subr.bf16.mxu0 0
  %4541 = vmatpush2.bf16.msra.mxu0 %v4061
  %4542 = vmatprep.subr.bf16.mxu0 0
  %4543 = vmatpush2.bf16.msra.mxu0 %v4060
  %4544 = vmatprep.subr.bf16.mxu0 0
  %4545 = vmatpush2.bf16.msra.mxu0 %v4059
  %4546 = vmatprep.subr.bf16.mxu0 0
  %4547 = vmatpush2.bf16.msra.mxu0 %v4058
  %4548 = vmatprep.subr.bf16.mxu0 0
  %4549 = vmatpush2.bf16.msra.mxu0 %v4057
  %4550 = vmatprep.subr.bf16.mxu0 0
  %4551 = vmatpush2.bf16.msra.mxu0 %v4056
  %4552 = vmatprep.mubr.bf16.mxu0 %v2775
  %4553 = vmatmul.mubr.bf16.gmra.mxu0 %v2774
  %v4554 = vpop.f32.mrf.mxu0
  %v4555 = vadd.f32 %v4515, %v4554
  %v4556 = vpop.f32.mrf.mxu0
  %v4557 = vpop.f32.mrf.mxu0
  %v4558 = vpop.f32.mrf.mxu0
  %4559 = vdwg.mxu0
  %4560 = vmatprep.subr.bf16.mxu0 0
  %4561 = vmatpush1.bf16.msra.mxu0 %v4071
  %4562 = vmatprep.subr.bf16.mxu0 0
  %4563 = vmatpush1.bf16.msra.mxu0 %v4070
  %4564 = vmatprep.subr.bf16.mxu0 0
  %4565 = vmatpush1.bf16.msra.mxu0 %v4069
  %4566 = vmatprep.subr.bf16.mxu0 0
  %4567 = vmatpush1.bf16.msra.mxu0 %v4068
  %4568 = vmatprep.subr.bf16.mxu0 0
  %4569 = vmatpush1.bf16.msra.mxu0 %v4067
  %4570 = vmatprep.subr.bf16.mxu0 0
  %4571 = vmatpush1.bf16.msra.mxu0 %v4066
  %4572 = vmatprep.subr.bf16.mxu0 0
  %4573 = vmatpush1.bf16.msra.mxu0 %v4065
  %4574 = vmatprep.subr.bf16.mxu0 0
  %4575 = vmatpush1.bf16.msra.mxu0 %v4064
  %4576 = vmatprep.subr.bf16.mxu0 0
  %4577 = vmatpush2.bf16.msra.mxu0 %v4079
  %4578 = vmatprep.subr.bf16.mxu0 0
  %4579 = vmatpush2.bf16.msra.mxu0 %v4078
  %4580 = vmatprep.subr.bf16.mxu0 0
  %4581 = vmatpush2.bf16.msra.mxu0 %v4077
  %4582 = vmatprep.subr.bf16.mxu0 0
  %4583 = vmatpush2.bf16.msra.mxu0 %v4076
  %4584 = vmatprep.subr.bf16.mxu0 0
  %4585 = vmatpush2.bf16.msra.mxu0 %v4075
  %4586 = vmatprep.subr.bf16.mxu0 0
  %4587 = vmatpush2.bf16.msra.mxu0 %v4074
  %4588 = vmatprep.subr.bf16.mxu0 0
  %4589 = vmatpush2.bf16.msra.mxu0 %v4073
  %4590 = vmatprep.subr.bf16.mxu0 0
  %4591 = vmatpush2.bf16.msra.mxu0 %v4072
  %4592 = vmatprep.mubr.bf16.mxu0 %v2777
  %4593 = vmatmul.mubr.bf16.gmra.mxu0 %v2776
  %v4594 = vpop.f32.mrf.mxu0
  %v4595 = vadd.f32 %v4555, %v4594
  %v4596 = vpop.f32.mrf.mxu0
  %v4597 = vpop.f32.mrf.mxu0
  %v4598 = vpop.f32.mrf.mxu0
  %4599 = vdwg.mxu0
  %4600 = vmatprep.subr.bf16.mxu0 0
  %4601 = vmatpush1.bf16.msra.mxu0 %v4087
  %4602 = vmatprep.subr.bf16.mxu0 0
  %4603 = vmatpush1.bf16.msra.mxu0 %v4086
  %4604 = vmatprep.subr.bf16.mxu0 0
  %4605 = vmatpush1.bf16.msra.mxu0 %v4085
  %4606 = vmatprep.subr.bf16.mxu0 0
  %4607 = vmatpush1.bf16.msra.mxu0 %v4084
  %4608 = vmatprep.subr.bf16.mxu0 0
  %4609 = vmatpush1.bf16.msra.mxu0 %v4083
  %4610 = vmatprep.subr.bf16.mxu0 0
  %4611 = vmatpush1.bf16.msra.mxu0 %v4082
  %4612 = vmatprep.subr.bf16.mxu0 0
  %4613 = vmatpush1.bf16.msra.mxu0 %v4081
  %4614 = vmatprep.subr.bf16.mxu0 0
  %4615 = vmatpush1.bf16.msra.mxu0 %v4080
  %4616 = vmatprep.subr.bf16.mxu0 0
  %4617 = vmatpush2.bf16.msra.mxu0 %v4095
  %4618 = vmatprep.subr.bf16.mxu0 0
  %4619 = vmatpush2.bf16.msra.mxu0 %v4094
  %4620 = vmatprep.subr.bf16.mxu0 0
  %4621 = vmatpush2.bf16.msra.mxu0 %v4093
  %4622 = vmatprep.subr.bf16.mxu0 0
  %4623 = vmatpush2.bf16.msra.mxu0 %v4092
  %4624 = vmatprep.subr.bf16.mxu0 0
  %4625 = vmatpush2.bf16.msra.mxu0 %v4091
  %4626 = vmatprep.subr.bf16.mxu0 0
  %4627 = vmatpush2.bf16.msra.mxu0 %v4090
  %4628 = vmatprep.subr.bf16.mxu0 0
  %4629 = vmatpush2.bf16.msra.mxu0 %v4089
  %4630 = vmatprep.subr.bf16.mxu0 0
  %4631 = vmatpush2.bf16.msra.mxu0 %v4088
  %4632 = vmatprep.mubr.bf16.mxu0 %v2779
  %4633 = vmatmul.mubr.bf16.gmra.mxu0 %v2778
  %v4634 = vpop.f32.mrf.mxu0
  %v4635 = vadd.f32 %v4595, %v4634
  %v4636 = vpop.f32.mrf.mxu0
  %v4637 = vpop.f32.mrf.mxu0
  %v4638 = vpop.f32.mrf.mxu0
  %4639 = vdwg.mxu0
  %4640 = vmatprep.subr.bf16.mxu0 0
  %4641 = vmatpush1.bf16.msra.mxu0 %v4103
  %4642 = vmatprep.subr.bf16.mxu0 0
  %4643 = vmatpush1.bf16.msra.mxu0 %v4102
  %4644 = vmatprep.subr.bf16.mxu0 0
  %4645 = vmatpush1.bf16.msra.mxu0 %v4101
  %4646 = vmatprep.subr.bf16.mxu0 0
  %4647 = vmatpush1.bf16.msra.mxu0 %v4100
  %4648 = vmatprep.subr.bf16.mxu0 0
  %4649 = vmatpush1.bf16.msra.mxu0 %v4099
  %4650 = vmatprep.subr.bf16.mxu0 0
  %4651 = vmatpush1.bf16.msra.mxu0 %v4098
  %4652 = vmatprep.subr.bf16.mxu0 0
  %4653 = vmatpush1.bf16.msra.mxu0 %v4097
  %4654 = vmatprep.subr.bf16.mxu0 0
  %4655 = vmatpush1.bf16.msra.mxu0 %v4096
  %4656 = vmatprep.subr.bf16.mxu0 0
  %4657 = vmatpush2.bf16.msra.mxu0 %v4111
  %4658 = vmatprep.subr.bf16.mxu0 0
  %4659 = vmatpush2.bf16.msra.mxu0 %v4110
  %4660 = vmatprep.subr.bf16.mxu0 0
  %4661 = vmatpush2.bf16.msra.mxu0 %v4109
  %4662 = vmatprep.subr.bf16.mxu0 0
  %4663 = vmatpush2.bf16.msra.mxu0 %v4108
  %4664 = vmatprep.subr.bf16.mxu0 0
  %4665 = vmatpush2.bf16.msra.mxu0 %v4107
  %4666 = vmatprep.subr.bf16.mxu0 0
  %4667 = vmatpush2.bf16.msra.mxu0 %v4106
  %4668 = vmatprep.subr.bf16.mxu0 0
  %4669 = vmatpush2.bf16.msra.mxu0 %v4105
  %4670 = vmatprep.subr.bf16.mxu0 0
  %4671 = vmatpush2.bf16.msra.mxu0 %v4104
  %4672 = vmatprep.mubr.bf16.mxu0 %v2781
  %4673 = vmatmul.mubr.bf16.gmra.mxu0 %v2780
  %v4674 = vpop.f32.mrf.mxu0
  %v4675 = vadd.f32 %v4635, %v4674
  %v4676 = vpop.f32.mrf.mxu0
  %v4677 = vpop.f32.mrf.mxu0
  %v4678 = vpop.f32.mrf.mxu0
  %4679 = vdwg.mxu0
  %4680 = vmatprep.subr.bf16.mxu0 0
  %4681 = vmatpush1.bf16.msra.mxu0 %v4119
  %4682 = vmatprep.subr.bf16.mxu0 0
  %4683 = vmatpush1.bf16.msra.mxu0 %v4118
  %4684 = vmatprep.subr.bf16.mxu0 0
  %4685 = vmatpush1.bf16.msra.mxu0 %v4117
  %4686 = vmatprep.subr.bf16.mxu0 0
  %4687 = vmatpush1.bf16.msra.mxu0 %v4116
  %4688 = vmatprep.subr.bf16.mxu0 0
  %4689 = vmatpush1.bf16.msra.mxu0 %v4115
  %4690 = vmatprep.subr.bf16.mxu0 0
  %4691 = vmatpush1.bf16.msra.mxu0 %v4114
  %4692 = vmatprep.subr.bf16.mxu0 0
  %4693 = vmatpush1.bf16.msra.mxu0 %v4113
  %4694 = vmatprep.subr.bf16.mxu0 0
  %4695 = vmatpush1.bf16.msra.mxu0 %v4112
  %4696 = vmatprep.subr.bf16.mxu0 0
  %4697 = vmatpush2.bf16.msra.mxu0 %v4127
  %4698 = vmatprep.subr.bf16.mxu0 0
  %4699 = vmatpush2.bf16.msra.mxu0 %v4126
  %4700 = vmatprep.subr.bf16.mxu0 0
  %4701 = vmatpush2.bf16.msra.mxu0 %v4125
  %4702 = vmatprep.subr.bf16.mxu0 0
  %4703 = vmatpush2.bf16.msra.mxu0 %v4124
  %4704 = vmatprep.subr.bf16.mxu0 0
  %4705 = vmatpush2.bf16.msra.mxu0 %v4123
  %4706 = vmatprep.subr.bf16.mxu0 0
  %4707 = vmatpush2.bf16.msra.mxu0 %v4122
  %4708 = vmatprep.subr.bf16.mxu0 0
  %4709 = vmatpush2.bf16.msra.mxu0 %v4121
  %4710 = vmatprep.subr.bf16.mxu0 0
  %4711 = vmatpush2.bf16.msra.mxu0 %v4120
  %4712 = vmatprep.mubr.bf16.mxu0 %v2783
  %4713 = vmatmul.mubr.bf16.gmra.mxu0 %v2782
  %v4714 = vpop.f32.mrf.mxu0
  %v4715 = vadd.f32 %v4675, %v4714
  %v4716 = vpop.f32.mrf.mxu0
  %v4717 = vpop.f32.mrf.mxu0
  %v4718 = vpop.f32.mrf.mxu0
  %4719 = vdwg.mxu0
  %4720 = vmatprep.subr.bf16.mxu0 0
  %4721 = vmatpush1.bf16.msra.mxu0 %v4135
  %4722 = vmatprep.subr.bf16.mxu0 0
  %4723 = vmatpush1.bf16.msra.mxu0 %v4134
  %4724 = vmatprep.subr.bf16.mxu0 0
  %4725 = vmatpush1.bf16.msra.mxu0 %v4133
  %4726 = vmatprep.subr.bf16.mxu0 0
  %4727 = vmatpush1.bf16.msra.mxu0 %v4132
  %4728 = vmatprep.subr.bf16.mxu0 0
  %4729 = vmatpush1.bf16.msra.mxu0 %v4131
  %4730 = vmatprep.subr.bf16.mxu0 0
  %4731 = vmatpush1.bf16.msra.mxu0 %v4130
  %4732 = vmatprep.subr.bf16.mxu0 0
  %4733 = vmatpush1.bf16.msra.mxu0 %v4129
  %4734 = vmatprep.subr.bf16.mxu0 0
  %4735 = vmatpush1.bf16.msra.mxu0 %v4128
  %4736 = vmatprep.subr.bf16.mxu0 0
  %4737 = vmatpush2.bf16.msra.mxu0 %v4143
  %4738 = vmatprep.subr.bf16.mxu0 0
  %4739 = vmatpush2.bf16.msra.mxu0 %v4142
  %4740 = vmatprep.subr.bf16.mxu0 0
  %4741 = vmatpush2.bf16.msra.mxu0 %v4141
  %4742 = vmatprep.subr.bf16.mxu0 0
  %4743 = vmatpush2.bf16.msra.mxu0 %v4140
  %4744 = vmatprep.subr.bf16.mxu0 0
  %4745 = vmatpush2.bf16.msra.mxu0 %v4139
  %4746 = vmatprep.subr.bf16.mxu0 0
  %4747 = vmatpush2.bf16.msra.mxu0 %v4138
  %4748 = vmatprep.subr.bf16.mxu0 0
  %4749 = vmatpush2.bf16.msra.mxu0 %v4137
  %4750 = vmatprep.subr.bf16.mxu0 0
  %4751 = vmatpush2.bf16.msra.mxu0 %v4136
  %4752 = vmatprep.mubr.bf16.mxu0 %v2785
  %4753 = vmatmul.mubr.bf16.gmra.mxu0 %v2784
  %v4754 = vpop.f32.mrf.mxu0
  %v4755 = vadd.f32 %v4715, %v4754
  %v4756 = vpop.f32.mrf.mxu0
  %v4757 = vpop.f32.mrf.mxu0
  %v4758 = vpop.f32.mrf.mxu0
  %4759 = vdwg.mxu0
  %4760 = vmatprep.subr.bf16.mxu0 0
  %4761 = vmatpush1.bf16.msra.mxu0 %v4151
  %4762 = vmatprep.subr.bf16.mxu0 0
  %4763 = vmatpush1.bf16.msra.mxu0 %v4150
  %4764 = vmatprep.subr.bf16.mxu0 0
  %4765 = vmatpush1.bf16.msra.mxu0 %v4149
  %4766 = vmatprep.subr.bf16.mxu0 0
  %4767 = vmatpush1.bf16.msra.mxu0 %v4148
  %4768 = vmatprep.subr.bf16.mxu0 0
  %4769 = vmatpush1.bf16.msra.mxu0 %v4147
  %4770 = vmatprep.subr.bf16.mxu0 0
  %4771 = vmatpush1.bf16.msra.mxu0 %v4146
  %4772 = vmatprep.subr.bf16.mxu0 0
  %4773 = vmatpush1.bf16.msra.mxu0 %v4145
  %4774 = vmatprep.subr.bf16.mxu0 0
  %4775 = vmatpush1.bf16.msra.mxu0 %v4144
  %4776 = vmatprep.subr.bf16.mxu0 0
  %4777 = vmatpush2.bf16.msra.mxu0 %v4159
  %4778 = vmatprep.subr.bf16.mxu0 0
  %4779 = vmatpush2.bf16.msra.mxu0 %v4158
  %4780 = vmatprep.subr.bf16.mxu0 0
  %4781 = vmatpush2.bf16.msra.mxu0 %v4157
  %4782 = vmatprep.subr.bf16.mxu0 0
  %4783 = vmatpush2.bf16.msra.mxu0 %v4156
  %4784 = vmatprep.subr.bf16.mxu0 0
  %4785 = vmatpush2.bf16.msra.mxu0 %v4155
  %4786 = vmatprep.subr.bf16.mxu0 0
  %4787 = vmatpush2.bf16.msra.mxu0 %v4154
  %4788 = vmatprep.subr.bf16.mxu0 0
  %4789 = vmatpush2.bf16.msra.mxu0 %v4153
  %4790 = vmatprep.subr.bf16.mxu0 0
  %4791 = vmatpush2.bf16.msra.mxu0 %v4152
  %4792 = vmatprep.mubr.bf16.mxu0 %v2787
  %4793 = vmatmul.mubr.bf16.gmra.mxu0 %v2786
  %v4794 = vpop.f32.mrf.mxu0
  %v4795 = vadd.f32 %v4755, %v4794
  %v4796 = vpop.f32.mrf.mxu0
  %v4797 = vpop.f32.mrf.mxu0
  %v4798 = vpop.f32.mrf.mxu0
  %4799 = vdwg.mxu0
  %4800 = vmatprep.subr.bf16.mxu0 0
  %4801 = vmatpush1.bf16.msra.mxu0 %v4167
  %4802 = vmatprep.subr.bf16.mxu0 0
  %4803 = vmatpush1.bf16.msra.mxu0 %v4166
  %4804 = vmatprep.subr.bf16.mxu0 0
  %4805 = vmatpush1.bf16.msra.mxu0 %v4165
  %4806 = vmatprep.subr.bf16.mxu0 0
  %4807 = vmatpush1.bf16.msra.mxu0 %v4164
  %4808 = vmatprep.subr.bf16.mxu0 0
  %4809 = vmatpush1.bf16.msra.mxu0 %v4163
  %4810 = vmatprep.subr.bf16.mxu0 0
  %4811 = vmatpush1.bf16.msra.mxu0 %v4162
  %4812 = vmatprep.subr.bf16.mxu0 0
  %4813 = vmatpush1.bf16.msra.mxu0 %v4161
  %4814 = vmatprep.subr.bf16.mxu0 0
  %4815 = vmatpush1.bf16.msra.mxu0 %v4160
  %4816 = vmatprep.subr.bf16.mxu0 0
  %4817 = vmatpush2.bf16.msra.mxu0 %v4175
  %4818 = vmatprep.subr.bf16.mxu0 0
  %4819 = vmatpush2.bf16.msra.mxu0 %v4174
  %4820 = vmatprep.subr.bf16.mxu0 0
  %4821 = vmatpush2.bf16.msra.mxu0 %v4173
  %4822 = vmatprep.subr.bf16.mxu0 0
  %4823 = vmatpush2.bf16.msra.mxu0 %v4172
  %4824 = vmatprep.subr.bf16.mxu0 0
  %4825 = vmatpush2.bf16.msra.mxu0 %v4171
  %4826 = vmatprep.subr.bf16.mxu0 0
  %4827 = vmatpush2.bf16.msra.mxu0 %v4170
  %4828 = vmatprep.subr.bf16.mxu0 0
  %4829 = vmatpush2.bf16.msra.mxu0 %v4169
  %4830 = vmatprep.subr.bf16.mxu0 0
  %4831 = vmatpush2.bf16.msra.mxu0 %v4168
  %4832 = vmatprep.mubr.bf16.mxu0 %v2789
  %4833 = vmatmul.mubr.bf16.gmra.mxu0 %v2788
  %v4834 = vpop.f32.mrf.mxu0
  %v4835 = vadd.f32 %v4795, %v4834
  %v4836 = vpop.f32.mrf.mxu0
  %v4837 = vpop.f32.mrf.mxu0
  %v4838 = vpop.f32.mrf.mxu0
  %4839 = vdwg.mxu0
  %4840 = vmatprep.subr.bf16.mxu0 0
  %4841 = vmatpush1.bf16.msra.mxu0 %v4183
  %4842 = vmatprep.subr.bf16.mxu0 0
  %4843 = vmatpush1.bf16.msra.mxu0 %v4182
  %4844 = vmatprep.subr.bf16.mxu0 0
  %4845 = vmatpush1.bf16.msra.mxu0 %v4181
  %4846 = vmatprep.subr.bf16.mxu0 0
  %4847 = vmatpush1.bf16.msra.mxu0 %v4180
  %4848 = vmatprep.subr.bf16.mxu0 0
  %4849 = vmatpush1.bf16.msra.mxu0 %v4179
  %4850 = vmatprep.subr.bf16.mxu0 0
  %4851 = vmatpush1.bf16.msra.mxu0 %v4178
  %4852 = vmatprep.subr.bf16.mxu0 0
  %4853 = vmatpush1.bf16.msra.mxu0 %v4177
  %4854 = vmatprep.subr.bf16.mxu0 0
  %4855 = vmatpush1.bf16.msra.mxu0 %v4176
  %4856 = vmatprep.subr.bf16.mxu0 0
  %4857 = vmatpush2.bf16.msra.mxu0 %v4191
  %4858 = vmatprep.subr.bf16.mxu0 0
  %4859 = vmatpush2.bf16.msra.mxu0 %v4190
  %4860 = vmatprep.subr.bf16.mxu0 0
  %4861 = vmatpush2.bf16.msra.mxu0 %v4189
  %4862 = vmatprep.subr.bf16.mxu0 0
  %4863 = vmatpush2.bf16.msra.mxu0 %v4188
  %4864 = vmatprep.subr.bf16.mxu0 0
  %4865 = vmatpush2.bf16.msra.mxu0 %v4187
  %4866 = vmatprep.subr.bf16.mxu0 0
  %4867 = vmatpush2.bf16.msra.mxu0 %v4186
  %4868 = vmatprep.subr.bf16.mxu0 0
  %4869 = vmatpush2.bf16.msra.mxu0 %v4185
  %4870 = vmatprep.subr.bf16.mxu0 0
  %4871 = vmatpush2.bf16.msra.mxu0 %v4184
  %4872 = vmatprep.mubr.bf16.mxu0 %v2791
  %4873 = vmatmul.mubr.bf16.gmra.mxu0 %v2790
  %v4874 = vpop.f32.mrf.mxu0
  %v4875 = vadd.f32 %v4835, %v4874
  %v4876 = vpop.f32.mrf.mxu0
  %v4877 = vpop.f32.mrf.mxu0
  %v4878 = vpop.f32.mrf.mxu0
  %4879 = vdwg.mxu0
  %4880 = vmatprep.subr.bf16.mxu0 0
  %4881 = vmatpush1.bf16.msra.mxu0 %v4199
  %4882 = vmatprep.subr.bf16.mxu0 0
  %4883 = vmatpush1.bf16.msra.mxu0 %v4198
  %4884 = vmatprep.subr.bf16.mxu0 0
  %4885 = vmatpush1.bf16.msra.mxu0 %v4197
  %4886 = vmatprep.subr.bf16.mxu0 0
  %4887 = vmatpush1.bf16.msra.mxu0 %v4196
  %4888 = vmatprep.subr.bf16.mxu0 0
  %4889 = vmatpush1.bf16.msra.mxu0 %v4195
  %4890 = vmatprep.subr.bf16.mxu0 0
  %4891 = vmatpush1.bf16.msra.mxu0 %v4194
  %4892 = vmatprep.subr.bf16.mxu0 0
  %4893 = vmatpush1.bf16.msra.mxu0 %v4193
  %4894 = vmatprep.subr.bf16.mxu0 0
  %4895 = vmatpush1.bf16.msra.mxu0 %v4192
  %4896 = vmatprep.subr.bf16.mxu0 0
  %4897 = vmatpush2.bf16.msra.mxu0 0
  %4898 = vmatprep.subr.bf16.mxu0 0
  %4899 = vmatpush2.bf16.msra.mxu0 0
  %4900 = vmatprep.subr.bf16.mxu0 0
  %4901 = vmatpush2.bf16.msra.mxu0 0
  %4902 = vmatprep.subr.bf16.mxu0 0
  %4903 = vmatpush2.bf16.msra.mxu0 0
  %4904 = vmatprep.subr.bf16.mxu0 0
  %4905 = vmatpush2.bf16.msra.mxu0 0
  %4906 = vmatprep.subr.bf16.mxu0 0
  %4907 = vmatpush2.bf16.msra.mxu0 0
  %4908 = vmatprep.subr.bf16.mxu0 0
  %4909 = vmatpush2.bf16.msra.mxu0 0
  %4910 = vmatprep.subr.bf16.mxu0 0
  %4911 = vmatpush2.bf16.msra.mxu0 0
  %4912 = vmatprep.mubr.bf16.mxu0 0
  %4913 = vmatmul.mubr.bf16.gmra.mxu0 %v2792
  %v4914 = vpop.f32.mrf.mxu0
  %v4915 = vadd.f32 %v4875, %v4914
  %v4916 = vpop.f32.mrf.mxu0
  %v4917 = vpop.f32.mrf.mxu0
  %v4918 = vpop.f32.mrf.mxu0
  %4919 = vdwg.mxu0
  %4920 = vst [vmem:[%s6] sm:$0xff] %v4915
  // Predicated region
  $region26: #{toynet_forward.1} parent=0 // pred_check
    _
  $region27: #{toynet_forward.1} parent=0 // pred_check_branch
    %4922 = sbr.rel (0) target = $region29
  $region28: #{toynet_forward.1} parent=0 // pred_region
    _
  $region29: #{toynet_forward.1} parent=0 // pred_fallthru
    _
  // Predicated region
  $region30: #{toynet_forward.1} parent=0 // pred_check
    _
  $region31: #{toynet_forward.1} parent=0 // pred_check_branch
    %4924 = sbr.rel (0) target = $region33
  $region32: #{toynet_forward.1} parent=0 // pred_region
    _
  $region33: #{toynet_forward.1} parent=0 // pred_fallthru
    _

</llo_original>
